<compile_context>
chip_gen: v7x
topology: tpu7x:2x2x1
jax: 0.10.0
libtpu: 0.0.40
codegen_flags: <defaults>
</compile_context>

<pallas_src>
import functools
import math

import numpy as np
import jax
import jax.numpy as jnp
from jax.experimental import pallas as pl
from jax.experimental.pallas import tpu as pltpu

EPS = 1e-5  # PyTorch BatchNorm2d default eps
PAD = 8     # top/bottom zero-pad rows of the activation slab (8 => tile-aligned stores)


# ----------------------------------------------------------------------------
# Host-side weight prep: banded conv matrices (one per kernel row).
# ----------------------------------------------------------------------------
def _band_matrices(w_hwio, width):
    """w_hwio: (3, 3, C, C) ndarray.  Returns (3, width*C, width*C) with
       out[kh][wi*C + ci, w*C + co] = w_hwio[kh, kw, ci, co],  wi = w + kw - 1,
    dropping entries whose input column is outside [0, width) — i.e. the dw taps and
    the horizontal 'same' zero padding are folded into the weights, so the kernel
    never needs pad columns or lane shifts on the activation side."""
    _, _, cin, cout = w_hwio.shape
    m = np.zeros((3, width * cin, width * cout), np.float32)
    for kh in range(3):
        for kw in range(3):
            for w in range(width):
                wi = w + kw - 1
                if 0 <= wi < width:
                    m[kh, wi * cin:(wi + 1) * cin, w * cout:(w + 1) * cout] = w_hwio[kh, kw]
    return m


# ----------------------------------------------------------------------------
# Fused kernel: entire forward pass, everything resident in VMEM.
# ----------------------------------------------------------------------------
def _fused_forward_kernel(x_ref, w_ref, wout_ref, bout_ref, out_ref, act_ref, *, C, W):
    """x_ref:    (B, H, W*C) f32   input embedded at channel 0 (lane = w*C + c)
       w_ref:    (n_layers+1, 3, W*C, W*C)  banded conv weights (f32 or bf16)
       wout_ref: (W*C, L) f32  classifier weight tiled so row w*C+c == W_out[c]
       bout_ref: (1, L) f32
       out_ref:  (B, L) f32
       act_ref:  (B, PAD+H+PAD, W*C) f32 VMEM slab; rows [PAD, PAD+H) hold the current
                 activation, the PAD rows above/below stay zero ('same' pad in h)."""
    B, H, WC = x_ref.shape
    n_total = w_ref.shape[0]
    inv_n = 1.0 / (B * H * W)
    mm_dtype = w_ref.dtype

    # Zero only the pad bands (aligned full-tile stores); the interior is written next.
    act_ref[:, 0:PAD, :] = jnp.zeros((B, PAD, WC), jnp.float32)
    act_ref[:, PAD + H:PAD + H + PAD, :] = jnp.zeros((B, PAD, WC), jnp.float32)
    # Place the input into the slab interior (fully (8,128)-aligned store).
    act_ref[:, PAD:PAD + H, :] = x_ref[...]

    def per_channel_sum(v):
        # v: (1, W*C) -> (1, W*C): every lane holds the sum over the W lanes sharing
        # its channel.  log2(W) XLU lane-rolls + f32 adds; exact, and already in
        # broadcast form (no reshape / gather / relayout).
        s = v
        shift = C
        while shift < WC:
            s = s + pltpu.roll(s, shift, 1)
            shift *= 2
        return s

    old = None   # residual carry: the PRE-batchnorm sum, as in the reference model
    h = None
    for i in range(n_total):
        # 3x3 'same' conv: three row-banded matmuls (K = W*C) accumulated in f32.
        y = None
        for kh in range(3):
            r0 = PAD - 1 + kh
            lhs = act_ref[:, r0:r0 + H, :].reshape(B * H, WC).astype(mm_dtype)
            part = jnp.dot(lhs, w_ref[i, kh], preferred_element_type=jnp.float32)
            y = part if y is None else y + part
        y = jnp.maximum(y, 0.0)                          # ReLU, lane-dense

        if i == 0:
            old = y
            h = y
        else:
            if i % 2 == 0:
                z = y + old                              # residual add
                old = z                                  # carry the pre-BN sum
            else:
                z = y
            # BatchNorm2d(affine=False), training-mode batch stats, two-pass variance.
            mean_b = per_channel_sum(jnp.sum(z, axis=0, keepdims=True)) * inv_n
            zc = z - mean_b
            var_b = per_channel_sum(jnp.sum(zc * zc, axis=0, keepdims=True)) * inv_n
            h = zc * jax.lax.rsqrt(var_b + EPS)

        if i + 1 < n_total:
            # Write the result straight back into the slab interior (aligned store);
            # the next layer streams it from the ref.
            act_ref[:, PAD:PAD + H, :] = h.reshape(B, H, WC)

    # Head (fused epilogue): per-channel spatial mean + Linear, via one matmul against
    # the w-tiled classifier weight, then a per-batch row reduction.
    L = wout_ref.shape[-1]
    rows = jnp.dot(h, wout_ref[...], preferred_element_type=jnp.float32)     # (B*H, L)
    pooled = jnp.sum(rows.reshape(B, H, L), axis=1) * (1.0 / (H * W))        # (B, L)
    # TODO(synk): (B, L=6) is a masked store; pad L to a lane-dense width if this
    # output ever feeds further Pallas work at production sizes.
    out_ref[...] = pooled + bout_ref[...]


# ----------------------------------------------------------------------------
# Wrapper: host-side parameter/input prep (free, one-time) + one pallas_call.
# ----------------------------------------------------------------------------
def speech_res_model_forward(x, params, *, matmul_dtype=jnp.float32):
    """x: (B, H, W) float32 — pre-unsqueeze, as the PyTorch forward expects."""
    convs = params["convs"]                    # HWIO; convs[0] has Cin = 1
    B, H, W = x.shape
    C = convs[0].shape[-1]
    L = params["w_out"].shape[-1]
    assert H % 8 == 0 and W > 0 and (W & (W - 1)) == 0, (
        "toy kernel assumes H % 8 == 0 and power-of-two W")

    # conv0 (Cin=1) is zero-extended across input channels so its band matches the
    # C-channel slab layout (no in-kernel broadcast of x, no extra MXU work).
    w0 = np.zeros((3, 3, C, C), np.float32)
    w0[:, :, 0, :] = np.asarray(convs[0], np.float32)[:, :, 0, :]
    hwio = [w0] + [np.asarray(w, np.float32) for w in convs[1:]]
    w_band = np.stack([_band_matrices(w, W) for w in hwio], axis=0)        # (n, 3, WC, WC)
    wout_big = np.tile(np.asarray(params["w_out"], np.float32), (W, 1))    # (W*C, L)

    # Input embedded at channel 0 of the lane-flattened (w, c) layout.
    x_emb = jnp.zeros((B, H, W, C), jnp.float32).at[..., 0].set(x.astype(jnp.float32))
    x_emb = x_emb.reshape(B, H, W * C)

    kernel = functools.partial(_fused_forward_kernel, C=C, W=W)
    return pl.pallas_call(
        kernel,
        out_shape=jax.ShapeDtypeStruct((B, L), jnp.float32),
        scratch_shapes=[pltpu.VMEM((B, PAD + H + PAD, W * C), jnp.float32)],
        compiler_params=pltpu.CompilerParams(vmem_limit_bytes=32 * 1024 * 1024),
    )(x_emb,
      jnp.asarray(w_band, dtype=matmul_dtype),
      jnp.asarray(wout_big, dtype=jnp.float32),
      jnp.asarray(params["b_out"], dtype=jnp.float32))


# ----------------------------------------------------------------------------
# Pure-JAX reference (for correctness check only)
# ----------------------------------------------------------------------------
def reference_forward(x, params):
    def conv(h, w):
        return jax.nn.relu(
            jax.lax.conv_general_dilated(
                h, w, window_strides=(1, 1), padding=((1, 1), (1, 1)),
                dimension_numbers=("NHWC", "HWIO", "NHWC"),
            )
        )

    def bn(z):
        mean = jnp.mean(z, axis=(0, 1, 2), keepdims=True)
        var = jnp.mean((z - mean) ** 2, axis=(0, 1, 2), keepdims=True)
        return (z - mean) / jnp.sqrt(var + EPS)

    n_layers = len(params["convs"]) - 1
    h = x[..., None]
    old_x = None
    for i in range(n_layers + 1):
        y = conv(h, params["convs"][i])
        if i == 0:
            old_x = y
            h = y
        else:
            if i % 2 == 0:
                z = y + old_x
                old_x = z
            else:
                z = y
            h = bn(z)
    m = jnp.mean(h, axis=(1, 2))
    return m @ params["w_out"] + params["b_out"][0]


# ----------------------------------------------------------------------------
if __name__ == "__main__":
    config = {"n_labels": 6, "n_feature_maps": 16, "n_layers": 4, "use_dilation": False}
    n_maps = config["n_feature_maps"]
    n_labels = config["n_labels"]
    n_layers = config["n_layers"]

    key = jax.random.PRNGKey(0)
    keys = jax.random.split(key, n_layers + 4)

    convs = [jax.random.normal(keys[0], (3, 3, 1, n_maps), jnp.float32) * (1.0 / 3.0)]
    for i in range(n_layers):
        convs.append(
            jax.random.normal(keys[1 + i], (3, 3, n_maps, n_maps), jnp.float32)
            * (1.0 / (3.0 * math.sqrt(n_maps)))
        )
    w_out = jax.random.normal(keys[n_layers + 1], (n_maps, n_labels), jnp.float32) * 0.2
    b_out = jax.random.normal(keys[n_layers + 2], (1, n_labels), jnp.float32) * 0.1
    params = {"convs": convs, "w_out": w_out, "b_out": b_out}

    # Input: (batch, time, freq) — the module unsqueezes the channel dim itself.
    x = jax.random.normal(keys[n_layers + 3], (2, 16, 16), jnp.float32)

    ref = reference_forward(x, params)

    # f32 matmul operands: tight check against the pure-JAX reference.
    out = jax.block_until_ready(speech_res_model_forward(x, params))
    assert out.shape == (2, n_labels), out.shape
    assert jnp.allclose(out, ref, atol=3e-3, rtol=3e-3), (out, ref)

    # bf16 matmul operands (production setting for v6e/v7x MXU); loose sanity check.
    out_bf16 = jax.block_until_ready(
        speech_res_model_forward(x, params, matmul_dtype=jnp.bfloat16))
    assert out_bf16.shape == (2, n_labels), out_bf16.shape
    assert bool(jnp.all(jnp.isfinite(out_bf16)))
    assert jnp.allclose(out_bf16, ref, atol=2e-1, rtol=1e-1), (out_bf16, ref)

    print("KERNEL_OK")
</pallas_src>

<mosaic_0001>
module attributes {stable_mosaic.version = 11 : i64} {
  func.func @_fused_forward_kernel(%arg0: memref<2x16x256xf32, #tpu.memory_space<vmem>>, %arg1: memref<5x3x256x256xf32, #tpu.memory_space<vmem>>, %arg2: memref<256x6xf32, #tpu.memory_space<vmem>>, %arg3: memref<1x6xf32, #tpu.memory_space<vmem>>, %arg4: memref<2x6xf32, #tpu.memory_space<vmem>>, %arg5: memref<2x32x256xf32, #tpu.memory_space<vmem>>) attributes {dimension_semantics = [], scalar_prefetch = 0 : i64, scratch_operands = 1 : i64, tpu.core_type = #tpu.core_type<tc>} {
    %cst = arith.constant 0.000000e+00 : f32
    %0 = vector.broadcast %cst : f32 to vector<2x8x256xf32>
    %c0 = arith.constant 0 : index
    %c0_0 = arith.constant 0 : index
    %c0_1 = arith.constant 0 : index
    %1 = vector.load %arg5[%c0, %c0_0, %c0_1] : memref<2x32x256xf32, #tpu.memory_space<vmem>>, vector<2x8x256xf32>
    tpu.vector_store %arg5[%c0, %c0_0, %c0_1], %0 {strides = array<i32>} : memref<2x32x256xf32, #tpu.memory_space<vmem>>, vector<2x8x256xf32>,
    %cst_2 = arith.constant 0.000000e+00 : f32
    %2 = vector.broadcast %cst_2 : f32 to vector<2x8x256xf32>
    %c0_3 = arith.constant 0 : index
    %c24 = arith.constant 24 : index
    %c0_4 = arith.constant 0 : index
    %3 = vector.load %arg5[%c0_3, %c24, %c0_4] : memref<2x32x256xf32, #tpu.memory_space<vmem>>, vector<2x8x256xf32>
    tpu.vector_store %arg5[%c0_3, %c24, %c0_4], %2 {strides = array<i32>} : memref<2x32x256xf32, #tpu.memory_space<vmem>>, vector<2x8x256xf32>,
    %c0_5 = arith.constant 0 : index
    %c0_6 = arith.constant 0 : index
    %c0_7 = arith.constant 0 : index
    %4 = vector.load %arg0[%c0_5, %c0_6, %c0_7] : memref<2x16x256xf32, #tpu.memory_space<vmem>>, vector<2x16x256xf32>
    %c0_8 = arith.constant 0 : index
    %c8 = arith.constant 8 : index
    %c0_9 = arith.constant 0 : index
    %5 = vector.load %arg5[%c0_8, %c8, %c0_9] : memref<2x32x256xf32, #tpu.memory_space<vmem>>, vector<2x16x256xf32>
    tpu.vector_store %arg5[%c0_8, %c8, %c0_9], %4 {strides = array<i32>} : memref<2x32x256xf32, #tpu.memory_space<vmem>>, vector<2x16x256xf32>,
    %c0_10 = arith.constant 0 : index
    %c7 = arith.constant 7 : index
    %c0_11 = arith.constant 0 : index
    %6 = vector.load %arg5[%c0_10, %c7, %c0_11] : memref<2x32x256xf32, #tpu.memory_space<vmem>>, vector<2x16x256xf32>
    %7 = vector.shape_cast %6 : vector<2x16x256xf32> to vector<32x256xf32>
    %c0_12 = arith.constant 0 : index
    %c0_13 = arith.constant 0 : index
    %c0_14 = arith.constant 0 : index
    %c0_15 = arith.constant 0 : index
    %8 = vector.load %arg1[%c0_12, %c0_13, %c0_14, %c0_15] : memref<5x3x256x256xf32, #tpu.memory_space<vmem>>, vector<1x1x256x256xf32>
    %9 = vector.shape_cast %8 : vector<1x1x256x256xf32> to vector<256x256xf32>
    %cst_16 = arith.constant dense<0.000000e+00> : vector<32x256xf32>
    %10 = tpu.matmul %7, %9, %cst_16 {dimension_numbers = #tpu.dot_dimension_numbers<[1], [0], [0], [1], [0, 0, 1, 1], [], []>} : vector<32x256xf32>, vector<256x256xf32>, vector<32x256xf32> -> vector<32x256xf32>
    %c0_17 = arith.constant 0 : index
    %c8_18 = arith.constant 8 : index
    %c0_19 = arith.constant 0 : index
    %11 = vector.load %arg5[%c0_17, %c8_18, %c0_19] : memref<2x32x256xf32, #tpu.memory_space<vmem>>, vector<2x16x256xf32>
    %12 = vector.shape_cast %11 : vector<2x16x256xf32> to vector<32x256xf32>
    %c0_20 = arith.constant 0 : index
    %c1 = arith.constant 1 : index
    %c0_21 = arith.constant 0 : index
    %c0_22 = arith.constant 0 : index
    %13 = vector.load %arg1[%c0_20, %c1, %c0_21, %c0_22] : memref<5x3x256x256xf32, #tpu.memory_space<vmem>>, vector<1x1x256x256xf32>
    %14 = vector.shape_cast %13 : vector<1x1x256x256xf32> to vector<256x256xf32>
    %cst_23 = arith.constant dense<0.000000e+00> : vector<32x256xf32>
    %15 = tpu.matmul %12, %14, %cst_23 {dimension_numbers = #tpu.dot_dimension_numbers<[1], [0], [0], [1], [0, 0, 1, 1], [], []>} : vector<32x256xf32>, vector<256x256xf32>, vector<32x256xf32> -> vector<32x256xf32>
    %16 = arith.addf %10, %15 : vector<32x256xf32>
    %c0_24 = arith.constant 0 : index
    %c9 = arith.constant 9 : index
    %c0_25 = arith.constant 0 : index
    %17 = vector.load %arg5[%c0_24, %c9, %c0_25] : memref<2x32x256xf32, #tpu.memory_space<vmem>>, vector<2x16x256xf32>
    %18 = vector.shape_cast %17 : vector<2x16x256xf32> to vector<32x256xf32>
    %c0_26 = arith.constant 0 : index
    %c2 = arith.constant 2 : index
    %c0_27 = arith.constant 0 : index
    %c0_28 = arith.constant 0 : index
    %19 = vector.load %arg1[%c0_26, %c2, %c0_27, %c0_28] : memref<5x3x256x256xf32, #tpu.memory_space<vmem>>, vector<1x1x256x256xf32>
    %20 = vector.shape_cast %19 : vector<1x1x256x256xf32> to vector<256x256xf32>
    %cst_29 = arith.constant dense<0.000000e+00> : vector<32x256xf32>
    %21 = tpu.matmul %18, %20, %cst_29 {dimension_numbers = #tpu.dot_dimension_numbers<[1], [0], [0], [1], [0, 0, 1, 1], [], []>} : vector<32x256xf32>, vector<256x256xf32>, vector<32x256xf32> -> vector<32x256xf32>
    %22 = arith.addf %16, %21 : vector<32x256xf32>
    %cst_30 = arith.constant 0.000000e+00 : f32
    %23 = vector.broadcast %cst_30 : f32 to vector<32x256xf32>
    %24 = arith.maximumf %22, %23 : vector<32x256xf32>
    %25 = vector.shape_cast %24 : vector<32x256xf32> to vector<2x16x256xf32>
    %c0_31 = arith.constant 0 : index
    %c8_32 = arith.constant 8 : index
    %c0_33 = arith.constant 0 : index
    %26 = vector.load %arg5[%c0_31, %c8_32, %c0_33] : memref<2x32x256xf32, #tpu.memory_space<vmem>>, vector<2x16x256xf32>
    tpu.vector_store %arg5[%c0_31, %c8_32, %c0_33], %25 {strides = array<i32>} : memref<2x32x256xf32, #tpu.memory_space<vmem>>, vector<2x16x256xf32>,
    %c0_34 = arith.constant 0 : index
    %c7_35 = arith.constant 7 : index
    %c0_36 = arith.constant 0 : index
    %27 = vector.load %arg5[%c0_34, %c7_35, %c0_36] : memref<2x32x256xf32, #tpu.memory_space<vmem>>, vector<2x16x256xf32>
    %28 = vector.shape_cast %27 : vector<2x16x256xf32> to vector<32x256xf32>
    %c1_37 = arith.constant 1 : index
    %c0_38 = arith.constant 0 : index
    %c0_39 = arith.constant 0 : index
    %c0_40 = arith.constant 0 : index
    %29 = vector.load %arg1[%c1_37, %c0_38, %c0_39, %c0_40] : memref<5x3x256x256xf32, #tpu.memory_space<vmem>>, vector<1x1x256x256xf32>
    %30 = vector.shape_cast %29 : vector<1x1x256x256xf32> to vector<256x256xf32>
    %cst_41 = arith.constant dense<0.000000e+00> : vector<32x256xf32>
    %31 = tpu.matmul %28, %30, %cst_41 {dimension_numbers = #tpu.dot_dimension_numbers<[1], [0], [0], [1], [0, 0, 1, 1], [], []>} : vector<32x256xf32>, vector<256x256xf32>, vector<32x256xf32> -> vector<32x256xf32>
    %c0_42 = arith.constant 0 : index
    %c8_43 = arith.constant 8 : index
    %c0_44 = arith.constant 0 : index
    %32 = vector.load %arg5[%c0_42, %c8_43, %c0_44] : memref<2x32x256xf32, #tpu.memory_space<vmem>>, vector<2x16x256xf32>
    %33 = vector.shape_cast %32 : vector<2x16x256xf32> to vector<32x256xf32>
    %c1_45 = arith.constant 1 : index
    %c1_46 = arith.constant 1 : index
    %c0_47 = arith.constant 0 : index
    %c0_48 = arith.constant 0 : index
    %34 = vector.load %arg1[%c1_45, %c1_46, %c0_47, %c0_48] : memref<5x3x256x256xf32, #tpu.memory_space<vmem>>, vector<1x1x256x256xf32>
    %35 = vector.shape_cast %34 : vector<1x1x256x256xf32> to vector<256x256xf32>
    %cst_49 = arith.constant dense<0.000000e+00> : vector<32x256xf32>
    %36 = tpu.matmul %33, %35, %cst_49 {dimension_numbers = #tpu.dot_dimension_numbers<[1], [0], [0], [1], [0, 0, 1, 1], [], []>} : vector<32x256xf32>, vector<256x256xf32>, vector<32x256xf32> -> vector<32x256xf32>
    %37 = arith.addf %31, %36 : vector<32x256xf32>
    %c0_50 = arith.constant 0 : index
    %c9_51 = arith.constant 9 : index
    %c0_52 = arith.constant 0 : index
    %38 = vector.load %arg5[%c0_50, %c9_51, %c0_52] : memref<2x32x256xf32, #tpu.memory_space<vmem>>, vector<2x16x256xf32>
    %39 = vector.shape_cast %38 : vector<2x16x256xf32> to vector<32x256xf32>
    %c1_53 = arith.constant 1 : index
    %c2_54 = arith.constant 2 : index
    %c0_55 = arith.constant 0 : index
    %c0_56 = arith.constant 0 : index
    %40 = vector.load %arg1[%c1_53, %c2_54, %c0_55, %c0_56] : memref<5x3x256x256xf32, #tpu.memory_space<vmem>>, vector<1x1x256x256xf32>
    %41 = vector.shape_cast %40 : vector<1x1x256x256xf32> to vector<256x256xf32>
    %cst_57 = arith.constant dense<0.000000e+00> : vector<32x256xf32>
    %42 = tpu.matmul %39, %41, %cst_57 {dimension_numbers = #tpu.dot_dimension_numbers<[1], [0], [0], [1], [0, 0, 1, 1], [], []>} : vector<32x256xf32>, vector<256x256xf32>, vector<32x256xf32> -> vector<32x256xf32>
    %43 = arith.addf %37, %42 : vector<32x256xf32>
    %cst_58 = arith.constant 0.000000e+00 : f32
    %44 = vector.broadcast %cst_58 : f32 to vector<32x256xf32>
    %45 = arith.maximumf %43, %44 : vector<32x256xf32>
    %cst_59 = arith.constant dense<0.000000e+00> : vector<256xf32>
    %46 = vector.multi_reduction <add>, %45, %cst_59 [0] : vector<32x256xf32> to vector<256xf32>
    %47 = vector.shape_cast %46 : vector<256xf32> to vector<1x256xf32>
    %c16_i32 = arith.constant 16 : i32
    %48 = tpu.dynamic_rotate %47 by %c16_i32 dim 1 : vector<1x256xf32>, i32 -> vector<1x256xf32>
    %49 = arith.addf %47, %48 : vector<1x256xf32>
    %c32_i32 = arith.constant 32 : i32
    %50 = tpu.dynamic_rotate %49 by %c32_i32 dim 1 : vector<1x256xf32>, i32 -> vector<1x256xf32>
    %51 = arith.addf %49, %50 : vector<1x256xf32>
    %c64_i32 = arith.constant 64 : i32
    %52 = tpu.dynamic_rotate %51 by %c64_i32 dim 1 : vector<1x256xf32>, i32 -> vector<1x256xf32>
    %53 = arith.addf %51, %52 : vector<1x256xf32>
    %c128_i32 = arith.constant 128 : i32
    %54 = tpu.dynamic_rotate %53 by %c128_i32 dim 1 : vector<1x256xf32>, i32 -> vector<1x256xf32>
    %55 = arith.addf %53, %54 : vector<1x256xf32>
    %cst_60 = arith.constant 0.001953125 : f32
    %56 = vector.broadcast %cst_60 : f32 to vector<1x256xf32>
    %57 = arith.mulf %55, %56 : vector<1x256xf32>
    %58 = vector.broadcast %57 : vector<1x256xf32> to vector<32x256xf32>
    %59 = arith.subf %45, %58 : vector<32x256xf32>
    %60 = arith.mulf %59, %59 : vector<32x256xf32>
    %cst_61 = arith.constant dense<0.000000e+00> : vector<256xf32>
    %61 = vector.multi_reduction <add>, %60, %cst_61 [0] : vector<32x256xf32> to vector<256xf32>
    %62 = vector.shape_cast %61 : vector<256xf32> to vector<1x256xf32>
    %c16_i32_62 = arith.constant 16 : i32
    %63 = tpu.dynamic_rotate %62 by %c16_i32_62 dim 1 : vector<1x256xf32>, i32 -> vector<1x256xf32>
    %64 = arith.addf %62, %63 : vector<1x256xf32>
    %c32_i32_63 = arith.constant 32 : i32
    %65 = tpu.dynamic_rotate %64 by %c32_i32_63 dim 1 : vector<1x256xf32>, i32 -> vector<1x256xf32>
    %66 = arith.addf %64, %65 : vector<1x256xf32>
    %c64_i32_64 = arith.constant 64 : i32
    %67 = tpu.dynamic_rotate %66 by %c64_i32_64 dim 1 : vector<1x256xf32>, i32 -> vector<1x256xf32>
    %68 = arith.addf %66, %67 : vector<1x256xf32>
    %c128_i32_65 = arith.constant 128 : i32
    %69 = tpu.dynamic_rotate %68 by %c128_i32_65 dim 1 : vector<1x256xf32>, i32 -> vector<1x256xf32>
    %70 = arith.addf %68, %69 : vector<1x256xf32>
    %cst_66 = arith.constant 0.001953125 : f32
    %71 = vector.broadcast %cst_66 : f32 to vector<1x256xf32>
    %72 = arith.mulf %70, %71 : vector<1x256xf32>
    %cst_67 = arith.constant 9.99999974E-6 : f32
    %73 = vector.broadcast %cst_67 : f32 to vector<1x256xf32>
    %74 = arith.addf %72, %73 : vector<1x256xf32>
    %75 = math.rsqrt %74 : vector<1x256xf32>
    %76 = vector.broadcast %75 : vector<1x256xf32> to vector<32x256xf32>
    %77 = arith.mulf %59, %76 : vector<32x256xf32>
    %78 = vector.shape_cast %77 : vector<32x256xf32> to vector<2x16x256xf32>
    %c0_68 = arith.constant 0 : index
    %c8_69 = arith.constant 8 : index
    %c0_70 = arith.constant 0 : index
    %79 = vector.load %arg5[%c0_68, %c8_69, %c0_70] : memref<2x32x256xf32, #tpu.memory_space<vmem>>, vector<2x16x256xf32>
    tpu.vector_store %arg5[%c0_68, %c8_69, %c0_70], %78 {strides = array<i32>} : memref<2x32x256xf32, #tpu.memory_space<vmem>>, vector<2x16x256xf32>,
    %c0_71 = arith.constant 0 : index
    %c7_72 = arith.constant 7 : index
    %c0_73 = arith.constant 0 : index
    %80 = vector.load %arg5[%c0_71, %c7_72, %c0_73] : memref<2x32x256xf32, #tpu.memory_space<vmem>>, vector<2x16x256xf32>
    %81 = vector.shape_cast %80 : vector<2x16x256xf32> to vector<32x256xf32>
    %c2_74 = arith.constant 2 : index
    %c0_75 = arith.constant 0 : index
    %c0_76 = arith.constant 0 : index
    %c0_77 = arith.constant 0 : index
    %82 = vector.load %arg1[%c2_74, %c0_75, %c0_76, %c0_77] : memref<5x3x256x256xf32, #tpu.memory_space<vmem>>, vector<1x1x256x256xf32>
    %83 = vector.shape_cast %82 : vector<1x1x256x256xf32> to vector<256x256xf32>
    %cst_78 = arith.constant dense<0.000000e+00> : vector<32x256xf32>
    %84 = tpu.matmul %81, %83, %cst_78 {dimension_numbers = #tpu.dot_dimension_numbers<[1], [0], [0], [1], [0, 0, 1, 1], [], []>} : vector<32x256xf32>, vector<256x256xf32>, vector<32x256xf32> -> vector<32x256xf32>
    %c0_79 = arith.constant 0 : index
    %c8_80 = arith.constant 8 : index
    %c0_81 = arith.constant 0 : index
    %85 = vector.load %arg5[%c0_79, %c8_80, %c0_81] : memref<2x32x256xf32, #tpu.memory_space<vmem>>, vector<2x16x256xf32>
    %86 = vector.shape_cast %85 : vector<2x16x256xf32> to vector<32x256xf32>
    %c2_82 = arith.constant 2 : index
    %c1_83 = arith.constant 1 : index
    %c0_84 = arith.constant 0 : index
    %c0_85 = arith.constant 0 : index
    %87 = vector.load %arg1[%c2_82, %c1_83, %c0_84, %c0_85] : memref<5x3x256x256xf32, #tpu.memory_space<vmem>>, vector<1x1x256x256xf32>
    %88 = vector.shape_cast %87 : vector<1x1x256x256xf32> to vector<256x256xf32>
    %cst_86 = arith.constant dense<0.000000e+00> : vector<32x256xf32>
    %89 = tpu.matmul %86, %88, %cst_86 {dimension_numbers = #tpu.dot_dimension_numbers<[1], [0], [0], [1], [0, 0, 1, 1], [], []>} : vector<32x256xf32>, vector<256x256xf32>, vector<32x256xf32> -> vector<32x256xf32>
    %90 = arith.addf %84, %89 : vector<32x256xf32>
    %c0_87 = arith.constant 0 : index
    %c9_88 = arith.constant 9 : index
    %c0_89 = arith.constant 0 : index
    %91 = vector.load %arg5[%c0_87, %c9_88, %c0_89] : memref<2x32x256xf32, #tpu.memory_space<vmem>>, vector<2x16x256xf32>
    %92 = vector.shape_cast %91 : vector<2x16x256xf32> to vector<32x256xf32>
    %c2_90 = arith.constant 2 : index
    %c2_91 = arith.constant 2 : index
    %c0_92 = arith.constant 0 : index
    %c0_93 = arith.constant 0 : index
    %93 = vector.load %arg1[%c2_90, %c2_91, %c0_92, %c0_93] : memref<5x3x256x256xf32, #tpu.memory_space<vmem>>, vector<1x1x256x256xf32>
    %94 = vector.shape_cast %93 : vector<1x1x256x256xf32> to vector<256x256xf32>
    %cst_94 = arith.constant dense<0.000000e+00> : vector<32x256xf32>
    %95 = tpu.matmul %92, %94, %cst_94 {dimension_numbers = #tpu.dot_dimension_numbers<[1], [0], [0], [1], [0, 0, 1, 1], [], []>} : vector<32x256xf32>, vector<256x256xf32>, vector<32x256xf32> -> vector<32x256xf32>
    %96 = arith.addf %90, %95 : vector<32x256xf32>
    %cst_95 = arith.constant 0.000000e+00 : f32
    %97 = vector.broadcast %cst_95 : f32 to vector<32x256xf32>
    %98 = arith.maximumf %96, %97 : vector<32x256xf32>
    %99 = arith.addf %98, %24 : vector<32x256xf32>
    %cst_96 = arith.constant dense<0.000000e+00> : vector<256xf32>
    %100 = vector.multi_reduction <add>, %99, %cst_96 [0] : vector<32x256xf32> to vector<256xf32>
    %101 = vector.shape_cast %100 : vector<256xf32> to vector<1x256xf32>
    %c16_i32_97 = arith.constant 16 : i32
    %102 = tpu.dynamic_rotate %101 by %c16_i32_97 dim 1 : vector<1x256xf32>, i32 -> vector<1x256xf32>
    %103 = arith.addf %101, %102 : vector<1x256xf32>
    %c32_i32_98 = arith.constant 32 : i32
    %104 = tpu.dynamic_rotate %103 by %c32_i32_98 dim 1 : vector<1x256xf32>, i32 -> vector<1x256xf32>
    %105 = arith.addf %103, %104 : vector<1x256xf32>
    %c64_i32_99 = arith.constant 64 : i32
    %106 = tpu.dynamic_rotate %105 by %c64_i32_99 dim 1 : vector<1x256xf32>, i32 -> vector<1x256xf32>
    %107 = arith.addf %105, %106 : vector<1x256xf32>
    %c128_i32_100 = arith.constant 128 : i32
    %108 = tpu.dynamic_rotate %107 by %c128_i32_100 dim 1 : vector<1x256xf32>, i32 -> vector<1x256xf32>
    %109 = arith.addf %107, %108 : vector<1x256xf32>
    %cst_101 = arith.constant 0.001953125 : f32
    %110 = vector.broadcast %cst_101 : f32 to vector<1x256xf32>
    %111 = arith.mulf %109, %110 : vector<1x256xf32>
    %112 = vector.broadcast %111 : vector<1x256xf32> to vector<32x256xf32>
    %113 = arith.subf %99, %112 : vector<32x256xf32>
    %114 = arith.mulf %113, %113 : vector<32x256xf32>
    %cst_102 = arith.constant dense<0.000000e+00> : vector<256xf32>
    %115 = vector.multi_reduction <add>, %114, %cst_102 [0] : vector<32x256xf32> to vector<256xf32>
    %116 = vector.shape_cast %115 : vector<256xf32> to vector<1x256xf32>
    %c16_i32_103 = arith.constant 16 : i32
    %117 = tpu.dynamic_rotate %116 by %c16_i32_103 dim 1 : vector<1x256xf32>, i32 -> vector<1x256xf32>
    %118 = arith.addf %116, %117 : vector<1x256xf32>
    %c32_i32_104 = arith.constant 32 : i32
    %119 = tpu.dynamic_rotate %118 by %c32_i32_104 dim 1 : vector<1x256xf32>, i32 -> vector<1x256xf32>
    %120 = arith.addf %118, %119 : vector<1x256xf32>
    %c64_i32_105 = arith.constant 64 : i32
    %121 = tpu.dynamic_rotate %120 by %c64_i32_105 dim 1 : vector<1x256xf32>, i32 -> vector<1x256xf32>
    %122 = arith.addf %120, %121 : vector<1x256xf32>
    %c128_i32_106 = arith.constant 128 : i32
    %123 = tpu.dynamic_rotate %122 by %c128_i32_106 dim 1 : vector<1x256xf32>, i32 -> vector<1x256xf32>
    %124 = arith.addf %122, %123 : vector<1x256xf32>
    %cst_107 = arith.constant 0.001953125 : f32
    %125 = vector.broadcast %cst_107 : f32 to vector<1x256xf32>
    %126 = arith.mulf %124, %125 : vector<1x256xf32>
    %cst_108 = arith.constant 9.99999974E-6 : f32
    %127 = vector.broadcast %cst_108 : f32 to vector<1x256xf32>
    %128 = arith.addf %126, %127 : vector<1x256xf32>
    %129 = math.rsqrt %128 : vector<1x256xf32>
    %130 = vector.broadcast %129 : vector<1x256xf32> to vector<32x256xf32>
    %131 = arith.mulf %113, %130 : vector<32x256xf32>
    %132 = vector.shape_cast %131 : vector<32x256xf32> to vector<2x16x256xf32>
    %c0_109 = arith.constant 0 : index
    %c8_110 = arith.constant 8 : index
    %c0_111 = arith.constant 0 : index
    %133 = vector.load %arg5[%c0_109, %c8_110, %c0_111] : memref<2x32x256xf32, #tpu.memory_space<vmem>>, vector<2x16x256xf32>
    tpu.vector_store %arg5[%c0_109, %c8_110, %c0_111], %132 {strides = array<i32>} : memref<2x32x256xf32, #tpu.memory_space<vmem>>, vector<2x16x256xf32>,
    %c0_112 = arith.constant 0 : index
    %c7_113 = arith.constant 7 : index
    %c0_114 = arith.constant 0 : index
    %134 = vector.load %arg5[%c0_112, %c7_113, %c0_114] : memref<2x32x256xf32, #tpu.memory_space<vmem>>, vector<2x16x256xf32>
    %135 = vector.shape_cast %134 : vector<2x16x256xf32> to vector<32x256xf32>
    %c3 = arith.constant 3 : index
    %c0_115 = arith.constant 0 : index
    %c0_116 = arith.constant 0 : index
    %c0_117 = arith.constant 0 : index
    %136 = vector.load %arg1[%c3, %c0_115, %c0_116, %c0_117] : memref<5x3x256x256xf32, #tpu.memory_space<vmem>>, vector<1x1x256x256xf32>
    %137 = vector.shape_cast %136 : vector<1x1x256x256xf32> to vector<256x256xf32>
    %cst_118 = arith.constant dense<0.000000e+00> : vector<32x256xf32>
    %138 = tpu.matmul %135, %137, %cst_118 {dimension_numbers = #tpu.dot_dimension_numbers<[1], [0], [0], [1], [0, 0, 1, 1], [], []>} : vector<32x256xf32>, vector<256x256xf32>, vector<32x256xf32> -> vector<32x256xf32>
    %c0_119 = arith.constant 0 : index
    %c8_120 = arith.constant 8 : index
    %c0_121 = arith.constant 0 : index
    %139 = vector.load %arg5[%c0_119, %c8_120, %c0_121] : memref<2x32x256xf32, #tpu.memory_space<vmem>>, vector<2x16x256xf32>
    %140 = vector.shape_cast %139 : vector<2x16x256xf32> to vector<32x256xf32>
    %c3_122 = arith.constant 3 : index
    %c1_123 = arith.constant 1 : index
    %c0_124 = arith.constant 0 : index
    %c0_125 = arith.constant 0 : index
    %141 = vector.load %arg1[%c3_122, %c1_123, %c0_124, %c0_125] : memref<5x3x256x256xf32, #tpu.memory_space<vmem>>, vector<1x1x256x256xf32>
    %142 = vector.shape_cast %141 : vector<1x1x256x256xf32> to vector<256x256xf32>
    %cst_126 = arith.constant dense<0.000000e+00> : vector<32x256xf32>
    %143 = tpu.matmul %140, %142, %cst_126 {dimension_numbers = #tpu.dot_dimension_numbers<[1], [0], [0], [1], [0, 0, 1, 1], [], []>} : vector<32x256xf32>, vector<256x256xf32>, vector<32x256xf32> -> vector<32x256xf32>
    %144 = arith.addf %138, %143 : vector<32x256xf32>
    %c0_127 = arith.constant 0 : index
    %c9_128 = arith.constant 9 : index
    %c0_129 = arith.constant 0 : index
    %145 = vector.load %arg5[%c0_127, %c9_128, %c0_129] : memref<2x32x256xf32, #tpu.memory_space<vmem>>, vector<2x16x256xf32>
    %146 = vector.shape_cast %145 : vector<2x16x256xf32> to vector<32x256xf32>
    %c3_130 = arith.constant 3 : index
    %c2_131 = arith.constant 2 : index
    %c0_132 = arith.constant 0 : index
    %c0_133 = arith.constant 0 : index
    %147 = vector.load %arg1[%c3_130, %c2_131, %c0_132, %c0_133] : memref<5x3x256x256xf32, #tpu.memory_space<vmem>>, vector<1x1x256x256xf32>
    %148 = vector.shape_cast %147 : vector<1x1x256x256xf32> to vector<256x256xf32>
    %cst_134 = arith.constant dense<0.000000e+00> : vector<32x256xf32>
    %149 = tpu.matmul %146, %148, %cst_134 {dimension_numbers = #tpu.dot_dimension_numbers<[1], [0], [0], [1], [0, 0, 1, 1], [], []>} : vector<32x256xf32>, vector<256x256xf32>, vector<32x256xf32> -> vector<32x256xf32>
    %150 = arith.addf %144, %149 : vector<32x256xf32>
    %cst_135 = arith.constant 0.000000e+00 : f32
    %151 = vector.broadcast %cst_135 : f32 to vector<32x256xf32>
    %152 = arith.maximumf %150, %151 : vector<32x256xf32>
    %cst_136 = arith.constant dense<0.000000e+00> : vector<256xf32>
    %153 = vector.multi_reduction <add>, %152, %cst_136 [0] : vector<32x256xf32> to vector<256xf32>
    %154 = vector.shape_cast %153 : vector<256xf32> to vector<1x256xf32>
    %c16_i32_137 = arith.constant 16 : i32
    %155 = tpu.dynamic_rotate %154 by %c16_i32_137 dim 1 : vector<1x256xf32>, i32 -> vector<1x256xf32>
    %156 = arith.addf %154, %155 : vector<1x256xf32>
    %c32_i32_138 = arith.constant 32 : i32
    %157 = tpu.dynamic_rotate %156 by %c32_i32_138 dim 1 : vector<1x256xf32>, i32 -> vector<1x256xf32>
    %158 = arith.addf %156, %157 : vector<1x256xf32>
    %c64_i32_139 = arith.constant 64 : i32
    %159 = tpu.dynamic_rotate %158 by %c64_i32_139 dim 1 : vector<1x256xf32>, i32 -> vector<1x256xf32>
    %160 = arith.addf %158, %159 : vector<1x256xf32>
    %c128_i32_140 = arith.constant 128 : i32
    %161 = tpu.dynamic_rotate %160 by %c128_i32_140 dim 1 : vector<1x256xf32>, i32 -> vector<1x256xf32>
    %162 = arith.addf %160, %161 : vector<1x256xf32>
    %cst_141 = arith.constant 0.001953125 : f32
    %163 = vector.broadcast %cst_141 : f32 to vector<1x256xf32>
    %164 = arith.mulf %162, %163 : vector<1x256xf32>
    %165 = vector.broadcast %164 : vector<1x256xf32> to vector<32x256xf32>
    %166 = arith.subf %152, %165 : vector<32x256xf32>
    %167 = arith.mulf %166, %166 : vector<32x256xf32>
    %cst_142 = arith.constant dense<0.000000e+00> : vector<256xf32>
    %168 = vector.multi_reduction <add>, %167, %cst_142 [0] : vector<32x256xf32> to vector<256xf32>
    %169 = vector.shape_cast %168 : vector<256xf32> to vector<1x256xf32>
    %c16_i32_143 = arith.constant 16 : i32
    %170 = tpu.dynamic_rotate %169 by %c16_i32_143 dim 1 : vector<1x256xf32>, i32 -> vector<1x256xf32>
    %171 = arith.addf %169, %170 : vector<1x256xf32>
    %c32_i32_144 = arith.constant 32 : i32
    %172 = tpu.dynamic_rotate %171 by %c32_i32_144 dim 1 : vector<1x256xf32>, i32 -> vector<1x256xf32>
    %173 = arith.addf %171, %172 : vector<1x256xf32>
    %c64_i32_145 = arith.constant 64 : i32
    %174 = tpu.dynamic_rotate %173 by %c64_i32_145 dim 1 : vector<1x256xf32>, i32 -> vector<1x256xf32>
    %175 = arith.addf %173, %174 : vector<1x256xf32>
    %c128_i32_146 = arith.constant 128 : i32
    %176 = tpu.dynamic_rotate %175 by %c128_i32_146 dim 1 : vector<1x256xf32>, i32 -> vector<1x256xf32>
    %177 = arith.addf %175, %176 : vector<1x256xf32>
    %cst_147 = arith.constant 0.001953125 : f32
    %178 = vector.broadcast %cst_147 : f32 to vector<1x256xf32>
    %179 = arith.mulf %177, %178 : vector<1x256xf32>
    %cst_148 = arith.constant 9.99999974E-6 : f32
    %180 = vector.broadcast %cst_148 : f32 to vector<1x256xf32>
    %181 = arith.addf %179, %180 : vector<1x256xf32>
    %182 = math.rsqrt %181 : vector<1x256xf32>
    %183 = vector.broadcast %182 : vector<1x256xf32> to vector<32x256xf32>
    %184 = arith.mulf %166, %183 : vector<32x256xf32>
    %185 = vector.shape_cast %184 : vector<32x256xf32> to vector<2x16x256xf32>
    %c0_149 = arith.constant 0 : index
    %c8_150 = arith.constant 8 : index
    %c0_151 = arith.constant 0 : index
    %186 = vector.load %arg5[%c0_149, %c8_150, %c0_151] : memref<2x32x256xf32, #tpu.memory_space<vmem>>, vector<2x16x256xf32>
    tpu.vector_store %arg5[%c0_149, %c8_150, %c0_151], %185 {strides = array<i32>} : memref<2x32x256xf32, #tpu.memory_space<vmem>>, vector<2x16x256xf32>,
    %c0_152 = arith.constant 0 : index
    %c7_153 = arith.constant 7 : index
    %c0_154 = arith.constant 0 : index
    %187 = vector.load %arg5[%c0_152, %c7_153, %c0_154] : memref<2x32x256xf32, #tpu.memory_space<vmem>>, vector<2x16x256xf32>
    %188 = vector.shape_cast %187 : vector<2x16x256xf32> to vector<32x256xf32>
    %c4 = arith.constant 4 : index
    %c0_155 = arith.constant 0 : index
    %c0_156 = arith.constant 0 : index
    %c0_157 = arith.constant 0 : index
    %189 = vector.load %arg1[%c4, %c0_155, %c0_156, %c0_157] : memref<5x3x256x256xf32, #tpu.memory_space<vmem>>, vector<1x1x256x256xf32>
    %190 = vector.shape_cast %189 : vector<1x1x256x256xf32> to vector<256x256xf32>
    %cst_158 = arith.constant dense<0.000000e+00> : vector<32x256xf32>
    %191 = tpu.matmul %188, %190, %cst_158 {dimension_numbers = #tpu.dot_dimension_numbers<[1], [0], [0], [1], [0, 0, 1, 1], [], []>} : vector<32x256xf32>, vector<256x256xf32>, vector<32x256xf32> -> vector<32x256xf32>
    %c0_159 = arith.constant 0 : index
    %c8_160 = arith.constant 8 : index
    %c0_161 = arith.constant 0 : index
    %192 = vector.load %arg5[%c0_159, %c8_160, %c0_161] : memref<2x32x256xf32, #tpu.memory_space<vmem>>, vector<2x16x256xf32>
    %193 = vector.shape_cast %192 : vector<2x16x256xf32> to vector<32x256xf32>
    %c4_162 = arith.constant 4 : index
    %c1_163 = arith.constant 1 : index
    %c0_164 = arith.constant 0 : index
    %c0_165 = arith.constant 0 : index
    %194 = vector.load %arg1[%c4_162, %c1_163, %c0_164, %c0_165] : memref<5x3x256x256xf32, #tpu.memory_space<vmem>>, vector<1x1x256x256xf32>
    %195 = vector.shape_cast %194 : vector<1x1x256x256xf32> to vector<256x256xf32>
    %cst_166 = arith.constant dense<0.000000e+00> : vector<32x256xf32>
    %196 = tpu.matmul %193, %195, %cst_166 {dimension_numbers = #tpu.dot_dimension_numbers<[1], [0], [0], [1], [0, 0, 1, 1], [], []>} : vector<32x256xf32>, vector<256x256xf32>, vector<32x256xf32> -> vector<32x256xf32>
    %197 = arith.addf %191, %196 : vector<32x256xf32>
    %c0_167 = arith.constant 0 : index
    %c9_168 = arith.constant 9 : index
    %c0_169 = arith.constant 0 : index
    %198 = vector.load %arg5[%c0_167, %c9_168, %c0_169] : memref<2x32x256xf32, #tpu.memory_space<vmem>>, vector<2x16x256xf32>
    %199 = vector.shape_cast %198 : vector<2x16x256xf32> to vector<32x256xf32>
    %c4_170 = arith.constant 4 : index
    %c2_171 = arith.constant 2 : index
    %c0_172 = arith.constant 0 : index
    %c0_173 = arith.constant 0 : index
    %200 = vector.load %arg1[%c4_170, %c2_171, %c0_172, %c0_173] : memref<5x3x256x256xf32, #tpu.memory_space<vmem>>, vector<1x1x256x256xf32>
    %201 = vector.shape_cast %200 : vector<1x1x256x256xf32> to vector<256x256xf32>
    %cst_174 = arith.constant dense<0.000000e+00> : vector<32x256xf32>
    %202 = tpu.matmul %199, %201, %cst_174 {dimension_numbers = #tpu.dot_dimension_numbers<[1], [0], [0], [1], [0, 0, 1, 1], [], []>} : vector<32x256xf32>, vector<256x256xf32>, vector<32x256xf32> -> vector<32x256xf32>
    %203 = arith.addf %197, %202 : vector<32x256xf32>
    %cst_175 = arith.constant 0.000000e+00 : f32
    %204 = vector.broadcast %cst_175 : f32 to vector<32x256xf32>
    %205 = arith.maximumf %203, %204 : vector<32x256xf32>
    %206 = arith.addf %205, %99 : vector<32x256xf32>
    %cst_176 = arith.constant dense<0.000000e+00> : vector<256xf32>
    %207 = vector.multi_reduction <add>, %206, %cst_176 [0] : vector<32x256xf32> to vector<256xf32>
    %208 = vector.shape_cast %207 : vector<256xf32> to vector<1x256xf32>
    %c16_i32_177 = arith.constant 16 : i32
    %209 = tpu.dynamic_rotate %208 by %c16_i32_177 dim 1 : vector<1x256xf32>, i32 -> vector<1x256xf32>
    %210 = arith.addf %208, %209 : vector<1x256xf32>
    %c32_i32_178 = arith.constant 32 : i32
    %211 = tpu.dynamic_rotate %210 by %c32_i32_178 dim 1 : vector<1x256xf32>, i32 -> vector<1x256xf32>
    %212 = arith.addf %210, %211 : vector<1x256xf32>
    %c64_i32_179 = arith.constant 64 : i32
    %213 = tpu.dynamic_rotate %212 by %c64_i32_179 dim 1 : vector<1x256xf32>, i32 -> vector<1x256xf32>
    %214 = arith.addf %212, %213 : vector<1x256xf32>
    %c128_i32_180 = arith.constant 128 : i32
    %215 = tpu.dynamic_rotate %214 by %c128_i32_180 dim 1 : vector<1x256xf32>, i32 -> vector<1x256xf32>
    %216 = arith.addf %214, %215 : vector<1x256xf32>
    %cst_181 = arith.constant 0.001953125 : f32
    %217 = vector.broadcast %cst_181 : f32 to vector<1x256xf32>
    %218 = arith.mulf %216, %217 : vector<1x256xf32>
    %219 = vector.broadcast %218 : vector<1x256xf32> to vector<32x256xf32>
    %220 = arith.subf %206, %219 : vector<32x256xf32>
    %221 = arith.mulf %220, %220 : vector<32x256xf32>
    %cst_182 = arith.constant dense<0.000000e+00> : vector<256xf32>
    %222 = vector.multi_reduction <add>, %221, %cst_182 [0] : vector<32x256xf32> to vector<256xf32>
    %223 = vector.shape_cast %222 : vector<256xf32> to vector<1x256xf32>
    %c16_i32_183 = arith.constant 16 : i32
    %224 = tpu.dynamic_rotate %223 by %c16_i32_183 dim 1 : vector<1x256xf32>, i32 -> vector<1x256xf32>
    %225 = arith.addf %223, %224 : vector<1x256xf32>
    %c32_i32_184 = arith.constant 32 : i32
    %226 = tpu.dynamic_rotate %225 by %c32_i32_184 dim 1 : vector<1x256xf32>, i32 -> vector<1x256xf32>
    %227 = arith.addf %225, %226 : vector<1x256xf32>
    %c64_i32_185 = arith.constant 64 : i32
    %228 = tpu.dynamic_rotate %227 by %c64_i32_185 dim 1 : vector<1x256xf32>, i32 -> vector<1x256xf32>
    %229 = arith.addf %227, %228 : vector<1x256xf32>
    %c128_i32_186 = arith.constant 128 : i32
    %230 = tpu.dynamic_rotate %229 by %c128_i32_186 dim 1 : vector<1x256xf32>, i32 -> vector<1x256xf32>
    %231 = arith.addf %229, %230 : vector<1x256xf32>
    %cst_187 = arith.constant 0.001953125 : f32
    %232 = vector.broadcast %cst_187 : f32 to vector<1x256xf32>
    %233 = arith.mulf %231, %232 : vector<1x256xf32>
    %cst_188 = arith.constant 9.99999974E-6 : f32
    %234 = vector.broadcast %cst_188 : f32 to vector<1x256xf32>
    %235 = arith.addf %233, %234 : vector<1x256xf32>
    %236 = math.rsqrt %235 : vector<1x256xf32>
    %237 = vector.broadcast %236 : vector<1x256xf32> to vector<32x256xf32>
    %238 = arith.mulf %220, %237 : vector<32x256xf32>
    %c0_189 = arith.constant 0 : index
    %c0_190 = arith.constant 0 : index
    %239 = vector.load %arg2[%c0_189, %c0_190] : memref<256x6xf32, #tpu.memory_space<vmem>>, vector<256x6xf32>
    %cst_191 = arith.constant dense<0.000000e+00> : vector<32x6xf32>
    %240 = tpu.matmul %238, %239, %cst_191 {dimension_numbers = #tpu.dot_dimension_numbers<[1], [0], [0], [1], [0, 0, 1, 1], [], []>} : vector<32x256xf32>, vector<256x6xf32>, vector<32x6xf32> -> vector<32x6xf32>
    %241 = vector.shape_cast %240 : vector<32x6xf32> to vector<2x16x6xf32>
    %cst_192 = arith.constant dense<0.000000e+00> : vector<2x6xf32>
    %242 = vector.multi_reduction <add>, %241, %cst_192 [1] : vector<2x16x6xf32> to vector<2x6xf32>
    %cst_193 = arith.constant 3.906250e-03 : f32
    %243 = vector.broadcast %cst_193 : f32 to vector<2x6xf32>
    %244 = arith.mulf %242, %243 : vector<2x6xf32>
    %c0_194 = arith.constant 0 : index
    %c0_195 = arith.constant 0 : index
    %245 = vector.load %arg3[%c0_194, %c0_195] : memref<1x6xf32, #tpu.memory_space<vmem>>, vector<1x6xf32>
    %246 = vector.broadcast %245 : vector<1x6xf32> to vector<2x6xf32>
    %247 = arith.addf %244, %246 : vector<2x6xf32>
    %c0_196 = arith.constant 0 : index
    %c0_197 = arith.constant 0 : index
    %248 = vector.load %arg4[%c0_196, %c0_197] : memref<2x6xf32, #tpu.memory_space<vmem>>, vector<2x6xf32>
    tpu.vector_store %arg4[%c0_196, %c0_197], %247 {strides = array<i32>} : memref<2x6xf32, #tpu.memory_space<vmem>>, vector<2x6xf32>,
    return
  }
}

</mosaic_0001>

<llo_original>
// kernel: tpu_custom_call.1
$region0: #{tpu_custom_call.1}
  #allocation0 [shape = 'u32[]', space=smem, size = 0x4, offset = 0x4, fixed_abs, tag = 'smem constant byte address 0x4 - core index']
  #allocation1 [shape = 'u32[144,128]{1,0:T(1,128)}', space=vmem, size = 0x12000, scoped, tag = 'internal scratch']
  #allocation2 [shape = 'f32[2,32,256]{2,1,0:T(8,128)}', space=vmem, size = 0x10000, scoped, tag = 'scratch operand']
  %s0 = inlined_call_operand.hbm [shape: f32[2,16,256], index: 0, kind: input, shape index: {}]
  %s1 = inlined_call_operand.hbm [shape: f32[5,3,256,256], index: 1, kind: input, shape index: {}]
  %s2 = inlined_call_operand.vmem [shape: f32[256,6], index: 2, kind: input, shape index: {}]
  %s3 = inlined_call_operand.hbm [shape: f32[1,6], index: 3, kind: input, shape index: {}]
  %s4 = inlined_call_operand.hbm [shape: f32[2,6], index: 4, kind: output, shape index: {}]
  %s5 = sld [smem:[#allocation0]]
  $region38: #{tpu_custom_call.1} parent=0
    _
  %s7 = ssub.s32 1, %s5
  %s8 = scalar_select 0, %s7, %s5
  $region1: #{tpu_custom_call.1} parent=0
    #allocation3 [shape = 'u8[32768]{0}', space=vmem, size = 0x8000, scoped, tag = 'input window, operand 0, single buffered']
    #allocation4 [shape = 's32[1]{0}', space=sflag, size = 0x4, scoped, tag = 'scoped memory for tpu_custom_call.1']
    #allocation5 [shape = 's32[1]{0}', space=sflag, size = 0x4, scoped, tag = 'scoped memory for tpu_custom_call.1']
    #allocation6 [shape = 'u8[3932160]{0}', space=vmem, size = 0x3c0000, scoped, tag = 'input window, operand 1, single buffered']
    #allocation7 [shape = 's32[1]{0}', space=sflag, size = 0x4, scoped, tag = 'scoped memory for tpu_custom_call.1']
    #allocation8 [shape = 'u8[512]{0}', space=vmem, size = 0x400, scoped, tag = 'input window, operand 3, single buffered']
    #allocation9 [shape = 'u8[1024]{0}', space=vmem, size = 0x400, scoped, tag = 'output window, operand 0, single buffered']
    %9 = vsyncpa [#allocation4], 0
    %10 = vsyncpa [#allocation7], 0
    %11 = vsyncpa [#allocation5], 0
    // Predicated region
    $region2: #{tpu_custom_call.1} parent=1 // pred_check
      _
    $region3: #{tpu_custom_call.1} parent=1 // pred_check_branch
      %13 = sbr.rel (0) target = $region5
    $region4: #{tpu_custom_call.1} parent=1 // pred_region
      %s15 = ssub.s32 1024, 1024
      %16 = vsyncadd [#allocation4], %s15
      %s17 = sshll.u32 [#allocation3], 4
      %s18 = int_to_ptr.vmem [resolvable:$true] %s17
      %23 = dma.hbm_to_vmem [thread:$0]  %s0, 1024, %s18, [#allocation4], 256, 256, 16
    $region5: #{tpu_custom_call.1} parent=1 // pred_fallthru
      _
    // Predicated region
    $region6: #{tpu_custom_call.1} parent=1 // pred_check
      _
    $region7: #{tpu_custom_call.1} parent=1 // pred_check_branch
      %25 = sbr.rel (0) target = $region9
    $region8: #{tpu_custom_call.1} parent=1 // pred_region
      %s27 = ssub.s32 122880, 122880
      %28 = vsyncadd [#allocation7], %s27
      %s29 = sshll.u32 [#allocation6], 4
      %s30 = int_to_ptr.vmem [resolvable:$true] %s29
      %35 = dma.hbm_to_vmem [thread:$0]  %s1, 122880, %s30, [#allocation7], 256, 256, 16
    $region9: #{tpu_custom_call.1} parent=1 // pred_fallthru
      _
    // Predicated region
    $region10: #{tpu_custom_call.1} parent=1 // pred_check
      _
    $region11: #{tpu_custom_call.1} parent=1 // pred_check_branch
      %37 = sbr.rel (0) target = $region13
    $region12: #{tpu_custom_call.1} parent=1 // pred_region
      _
    $region13: #{tpu_custom_call.1} parent=1 // pred_fallthru
      _
    // Predicated region
    $region14: #{tpu_custom_call.1} parent=1 // pred_check
      _
    $region15: #{tpu_custom_call.1} parent=1 // pred_check_branch
      %39 = sbr.rel (0) target = $region17
    $region16: #{tpu_custom_call.1} parent=1 // pred_region
      %s41 = ssub.s32 16, 16
      %42 = vsyncadd [#allocation7], %s41
      %s44 = sshll.u32 [#allocation8], 4
      %s45 = int_to_ptr.vmem [resolvable:$true] %s44
      %47 = dma.hbm_to_vmem [thread:$0]  %s3, 16, %s45, [#allocation7]
    $region17: #{tpu_custom_call.1} parent=1 // pred_fallthru
      _
    // Predicated region
    $region18: #{tpu_custom_call.1} parent=1 // pred_check
      _
    $region19: #{tpu_custom_call.1} parent=1 // pred_check_branch
      %49 = sbr.rel (0) target = $region21
    $region20: #{tpu_custom_call.1} parent=1 // pred_region
      %50 = dma.done [#allocation4], 1024
    $region21: #{tpu_custom_call.1} parent=1 // pred_fallthru
      _
    // Predicated region
    $region22: #{tpu_custom_call.1} parent=1 // pred_check
      _
    $region23: #{tpu_custom_call.1} parent=1 // pred_check_branch
      %52 = sbr.rel (0) target = $region25
    $region24: #{tpu_custom_call.1} parent=1 // pred_region
      %53 = dma.done [#allocation7], 122880
    $region25: #{tpu_custom_call.1} parent=1 // pred_fallthru
      _
    // Predicated region
    $region26: #{tpu_custom_call.1} parent=1 // pred_check
      _
    $region27: #{tpu_custom_call.1} parent=1 // pred_check_branch
      %55 = sbr.rel (0) target = $region29
    $region28: #{tpu_custom_call.1} parent=1 // pred_region
      %56 = dma.done [#allocation7], 16
    $region29: #{tpu_custom_call.1} parent=1 // pred_fallthru
      _
    %57 = vst [vmem:[#allocation2] sm:$0xff] 0.0
    %58 = vst [vmem:[#allocation2 + $0x8] sm:$0xff] 0.0
    %59 = vst [vmem:[#allocation2 + $0x40] sm:$0xff] 0.0
    %60 = vst [vmem:[#allocation2 + $0x48] sm:$0xff] 0.0
    %61 = vst [vmem:[#allocation2 + $0x30] sm:$0xff] 0.0
    %62 = vst [vmem:[#allocation2 + $0x38] sm:$0xff] 0.0
    %63 = vst [vmem:[#allocation2 + $0x70] sm:$0xff] 0.0
    %64 = vst [vmem:[#allocation2 + $0x78] sm:$0xff] 0.0
    %v65 = vld [vmem:[#allocation3] sm:$0xff]
    %v66 = vld [vmem:[#allocation3 + $0x8] sm:$0xff]
    %v67 = vld [vmem:[#allocation3 + $0x10] sm:$0xff]
    %v68 = vld [vmem:[#allocation3 + $0x18] sm:$0xff]
    %v69 = vld [vmem:[#allocation3 + $0x20] sm:$0xff]
    %v70 = vld [vmem:[#allocation3 + $0x28] sm:$0xff]
    %v71 = vld [vmem:[#allocation3 + $0x30] sm:$0xff]
    %v72 = vld [vmem:[#allocation3 + $0x38] sm:$0xff]
    %73 = vst [vmem:[#allocation2 + $0x10] sm:$0xff] %v65
    %74 = vst [vmem:[#allocation2 + $0x18] sm:$0xff] %v66
    %75 = vst [vmem:[#allocation2 + $0x20] sm:$0xff] %v67
    %76 = vst [vmem:[#allocation2 + $0x28] sm:$0xff] %v68
    %77 = vst [vmem:[#allocation2 + $0x50] sm:$0xff] %v69
    %78 = vst [vmem:[#allocation2 + $0x58] sm:$0xff] %v70
    %79 = vst [vmem:[#allocation2 + $0x60] sm:$0xff] %v71
    %80 = vst [vmem:[#allocation2 + $0x68] sm:$0xff] %v72
    %v81 = vld [vmem:[#allocation2] sm:$0x80]
    %v82 = vld [vmem:[#allocation2 + $0x8] sm:$0x80]
    %v83 = vld [vmem:[#allocation2 + $0x10] sm:$0xff]
    %v84 = vld [vmem:[#allocation2 + $0x18] sm:$0xff]
    %v85 = vld [vmem:[#allocation2 + $0x20] sm:$0x7f]
    %v86 = vld [vmem:[#allocation2 + $0x28] sm:$0x7f]
    %v87 = vld [vmem:[#allocation2 + $0x40] sm:$0x80]
    %v88 = vld [vmem:[#allocation2 + $0x48] sm:$0x80]
    %v89 = vld [vmem:[#allocation2 + $0x50] sm:$0xff]
    %v90 = vld [vmem:[#allocation2 + $0x58] sm:$0xff]
    %v91 = vld [vmem:[#allocation2 + $0x60] sm:$0x7f]
    %v92 = vld [vmem:[#allocation2 + $0x68] sm:$0x7f]
    %vm105 = vcmask 1040384
    %v106 = vrot.slane %v81, 7
    %v107 = vrot.slane %v83, 7
    %v108 = vsel %vm105, %v106, %v107
    %v109 = vrot.slane %v82, 7
    %v110 = vrot.slane %v84, 7
    %v111 = vsel %vm105, %v109, %v110
    %v112 = vrot.slane %v85, 7
    %v113 = vsel %vm105, %v107, %v112
    %v114 = vrot.slane %v86, 7
    %v115 = vsel %vm105, %v110, %v114
    %v116 = vrot.slane %v87, 7
    %v117 = vrot.slane %v89, 7
    %v118 = vsel %vm105, %v116, %v117
    %v119 = vrot.slane %v88, 7
    %v120 = vrot.slane %v90, 7
    %v121 = vsel %vm105, %v119, %v120
    %v122 = vrot.slane %v91, 7
    %v123 = vsel %vm105, %v117, %v122
    %v124 = vrot.slane %v92, 7
    %v125 = vsel %vm105, %v120, %v124
    %v134 = vld [vmem:[#allocation6] sm:$0xff]
    %v135 = vld [vmem:[#allocation6 + $0x8] sm:$0xff]
    %v136 = vld [vmem:[#allocation6 + $0x10] sm:$0xff]
    %v137 = vld [vmem:[#allocation6 + $0x18] sm:$0xff]
    %v138 = vld [vmem:[#allocation6 + $0x20] sm:$0xff]
    %v139 = vld [vmem:[#allocation6 + $0x28] sm:$0xff]
    %v140 = vld [vmem:[#allocation6 + $0x30] sm:$0xff]
    %v141 = vld [vmem:[#allocation6 + $0x38] sm:$0xff]
    %v142 = vld [vmem:[#allocation6 + $0x40] sm:$0xff]
    %v143 = vld [vmem:[#allocation6 + $0x48] sm:$0xff]
    %v144 = vld [vmem:[#allocation6 + $0x50] sm:$0xff]
    %v145 = vld [vmem:[#allocation6 + $0x58] sm:$0xff]
    %v146 = vld [vmem:[#allocation6 + $0x60] sm:$0xff]
    %v147 = vld [vmem:[#allocation6 + $0x68] sm:$0xff]
    %v148 = vld [vmem:[#allocation6 + $0x70] sm:$0xff]
    %v149 = vld [vmem:[#allocation6 + $0x78] sm:$0xff]
    %v150 = vld [vmem:[#allocation6 + $0x80] sm:$0xff]
    %v151 = vld [vmem:[#allocation6 + $0x88] sm:$0xff]
    %v152 = vld [vmem:[#allocation6 + $0x90] sm:$0xff]
    %v153 = vld [vmem:[#allocation6 + $0x98] sm:$0xff]
    %v154 = vld [vmem:[#allocation6 + $0xa0] sm:$0xff]
    %v155 = vld [vmem:[#allocation6 + $0xa8] sm:$0xff]
    %v156 = vld [vmem:[#allocation6 + $0xb0] sm:$0xff]
    %v157 = vld [vmem:[#allocation6 + $0xb8] sm:$0xff]
    %v158 = vld [vmem:[#allocation6 + $0xc0] sm:$0xff]
    %v159 = vld [vmem:[#allocation6 + $0xc8] sm:$0xff]
    %v160 = vld [vmem:[#allocation6 + $0xd0] sm:$0xff]
    %v161 = vld [vmem:[#allocation6 + $0xd8] sm:$0xff]
    %v162 = vld [vmem:[#allocation6 + $0xe0] sm:$0xff]
    %v163 = vld [vmem:[#allocation6 + $0xe8] sm:$0xff]
    %v164 = vld [vmem:[#allocation6 + $0xf0] sm:$0xff]
    %v165 = vld [vmem:[#allocation6 + $0xf8] sm:$0xff]
    %v166 = vld [vmem:[#allocation6 + $0x100] sm:$0xff]
    %v167 = vld [vmem:[#allocation6 + $0x108] sm:$0xff]
    %v168 = vld [vmem:[#allocation6 + $0x110] sm:$0xff]
    %v169 = vld [vmem:[#allocation6 + $0x118] sm:$0xff]
    %v170 = vld [vmem:[#allocation6 + $0x120] sm:$0xff]
    %v171 = vld [vmem:[#allocation6 + $0x128] sm:$0xff]
    %v172 = vld [vmem:[#allocation6 + $0x130] sm:$0xff]
    %v173 = vld [vmem:[#allocation6 + $0x138] sm:$0xff]
    %v174 = vld [vmem:[#allocation6 + $0x140] sm:$0xff]
    %v175 = vld [vmem:[#allocation6 + $0x148] sm:$0xff]
    %v176 = vld [vmem:[#allocation6 + $0x150] sm:$0xff]
    %v177 = vld [vmem:[#allocation6 + $0x158] sm:$0xff]
    %v178 = vld [vmem:[#allocation6 + $0x160] sm:$0xff]
    %v179 = vld [vmem:[#allocation6 + $0x168] sm:$0xff]
    %v180 = vld [vmem:[#allocation6 + $0x170] sm:$0xff]
    %v181 = vld [vmem:[#allocation6 + $0x178] sm:$0xff]
    %v182 = vld [vmem:[#allocation6 + $0x180] sm:$0xff]
    %v183 = vld [vmem:[#allocation6 + $0x188] sm:$0xff]
    %v184 = vld [vmem:[#allocation6 + $0x190] sm:$0xff]
    %v185 = vld [vmem:[#allocation6 + $0x198] sm:$0xff]
    %v186 = vld [vmem:[#allocation6 + $0x1a0] sm:$0xff]
    %v187 = vld [vmem:[#allocation6 + $0x1a8] sm:$0xff]
    %v188 = vld [vmem:[#allocation6 + $0x1b0] sm:$0xff]
    %v189 = vld [vmem:[#allocation6 + $0x1b8] sm:$0xff]
    %v190 = vld [vmem:[#allocation6 + $0x1c0] sm:$0xff]
    %v191 = vld [vmem:[#allocation6 + $0x1c8] sm:$0xff]
    %v192 = vld [vmem:[#allocation6 + $0x1d0] sm:$0xff]
    %v193 = vld [vmem:[#allocation6 + $0x1d8] sm:$0xff]
    %v194 = vld [vmem:[#allocation6 + $0x1e0] sm:$0xff]
    %v195 = vld [vmem:[#allocation6 + $0x1e8] sm:$0xff]
    %v196 = vld [vmem:[#allocation6 + $0x1f0] sm:$0xff]
    %v197 = vld [vmem:[#allocation6 + $0x1f8] sm:$0xff]
    %v198 = vld [vmem:[#allocation2 + $0x20] sm:$0xff]
    %v199 = vld [vmem:[#allocation2 + $0x28] sm:$0xff]
    %v200 = vld [vmem:[#allocation2 + $0x60] sm:$0xff]
    %v201 = vld [vmem:[#allocation2 + $0x68] sm:$0xff]
    %s202 = scalar_lea.vmem [#allocation6], 512
    %v203 = vld [vmem:[%s202] sm:$0xff]
    %v204 = vld [vmem:[%s202 + $0x8] sm:$0xff]
    %v205 = vld [vmem:[%s202 + $0x10] sm:$0xff]
    %v206 = vld [vmem:[%s202 + $0x18] sm:$0xff]
    %v207 = vld [vmem:[%s202 + $0x20] sm:$0xff]
    %v208 = vld [vmem:[%s202 + $0x28] sm:$0xff]
    %v209 = vld [vmem:[%s202 + $0x30] sm:$0xff]
    %v210 = vld [vmem:[%s202 + $0x38] sm:$0xff]
    %v211 = vld [vmem:[%s202 + $0x40] sm:$0xff]
    %v212 = vld [vmem:[%s202 + $0x48] sm:$0xff]
    %v213 = vld [vmem:[%s202 + $0x50] sm:$0xff]
    %v214 = vld [vmem:[%s202 + $0x58] sm:$0xff]
    %v215 = vld [vmem:[%s202 + $0x60] sm:$0xff]
    %v216 = vld [vmem:[%s202 + $0x68] sm:$0xff]
    %v217 = vld [vmem:[%s202 + $0x70] sm:$0xff]
    %v218 = vld [vmem:[%s202 + $0x78] sm:$0xff]
    %v219 = vld [vmem:[%s202 + $0x80] sm:$0xff]
    %v220 = vld [vmem:[%s202 + $0x88] sm:$0xff]
    %v221 = vld [vmem:[%s202 + $0x90] sm:$0xff]
    %v222 = vld [vmem:[%s202 + $0x98] sm:$0xff]
    %v223 = vld [vmem:[%s202 + $0xa0] sm:$0xff]
    %v224 = vld [vmem:[%s202 + $0xa8] sm:$0xff]
    %v225 = vld [vmem:[%s202 + $0xb0] sm:$0xff]
    %v226 = vld [vmem:[%s202 + $0xb8] sm:$0xff]
    %v227 = vld [vmem:[%s202 + $0xc0] sm:$0xff]
    %v228 = vld [vmem:[%s202 + $0xc8] sm:$0xff]
    %v229 = vld [vmem:[%s202 + $0xd0] sm:$0xff]
    %v230 = vld [vmem:[%s202 + $0xd8] sm:$0xff]
    %v231 = vld [vmem:[%s202 + $0xe0] sm:$0xff]
    %v232 = vld [vmem:[%s202 + $0xe8] sm:$0xff]
    %v233 = vld [vmem:[%s202 + $0xf0] sm:$0xff]
    %v234 = vld [vmem:[%s202 + $0xf8] sm:$0xff]
    %v235 = vld [vmem:[%s202 + $0x100] sm:$0xff]
    %v236 = vld [vmem:[%s202 + $0x108] sm:$0xff]
    %v237 = vld [vmem:[%s202 + $0x110] sm:$0xff]
    %v238 = vld [vmem:[%s202 + $0x118] sm:$0xff]
    %v239 = vld [vmem:[%s202 + $0x120] sm:$0xff]
    %v240 = vld [vmem:[%s202 + $0x128] sm:$0xff]
    %v241 = vld [vmem:[%s202 + $0x130] sm:$0xff]
    %v242 = vld [vmem:[%s202 + $0x138] sm:$0xff]
    %v243 = vld [vmem:[%s202 + $0x140] sm:$0xff]
    %v244 = vld [vmem:[%s202 + $0x148] sm:$0xff]
    %v245 = vld [vmem:[%s202 + $0x150] sm:$0xff]
    %v246 = vld [vmem:[%s202 + $0x158] sm:$0xff]
    %v247 = vld [vmem:[%s202 + $0x160] sm:$0xff]
    %v248 = vld [vmem:[%s202 + $0x168] sm:$0xff]
    %v249 = vld [vmem:[%s202 + $0x170] sm:$0xff]
    %v250 = vld [vmem:[%s202 + $0x178] sm:$0xff]
    %v251 = vld [vmem:[%s202 + $0x180] sm:$0xff]
    %v252 = vld [vmem:[%s202 + $0x188] sm:$0xff]
    %v253 = vld [vmem:[%s202 + $0x190] sm:$0xff]
    %v254 = vld [vmem:[%s202 + $0x198] sm:$0xff]
    %v255 = vld [vmem:[%s202 + $0x1a0] sm:$0xff]
    %v256 = vld [vmem:[%s202 + $0x1a8] sm:$0xff]
    %v257 = vld [vmem:[%s202 + $0x1b0] sm:$0xff]
    %v258 = vld [vmem:[%s202 + $0x1b8] sm:$0xff]
    %v259 = vld [vmem:[%s202 + $0x1c0] sm:$0xff]
    %v260 = vld [vmem:[%s202 + $0x1c8] sm:$0xff]
    %v261 = vld [vmem:[%s202 + $0x1d0] sm:$0xff]
    %v262 = vld [vmem:[%s202 + $0x1d8] sm:$0xff]
    %v263 = vld [vmem:[%s202 + $0x1e0] sm:$0xff]
    %v264 = vld [vmem:[%s202 + $0x1e8] sm:$0xff]
    %v265 = vld [vmem:[%s202 + $0x1f0] sm:$0xff]
    %v266 = vld [vmem:[%s202 + $0x1f8] sm:$0xff]
    %267 = vmatprep.subr.mxu0 %v204
    %268 = vmatpush1.msra.mxu0 %v203
    %269 = vmatprep.subr.mxu0 %v206
    %270 = vmatpush1.msra.mxu0 %v205
    %271 = vmatprep.subr.mxu0 %v208
    %272 = vmatpush1.msra.mxu0 %v207
    %273 = vmatprep.subr.mxu0 %v210
    %274 = vmatpush1.msra.mxu0 %v209
    %275 = vmatprep.subr.mxu0 %v212
    %276 = vmatpush1.msra.mxu0 %v211
    %277 = vmatprep.subr.mxu0 %v214
    %278 = vmatpush1.msra.mxu0 %v213
    %279 = vmatprep.subr.mxu0 %v216
    %280 = vmatpush1.msra.mxu0 %v215
    %281 = vmatprep.subr.mxu0 %v218
    %282 = vmatpush1.msra.mxu0 %v217
    %283 = vmatprep.subr.mxu0 %v220
    %284 = vmatpush1.msra.mxu0 %v219
    %285 = vmatprep.subr.mxu0 %v222
    %286 = vmatpush1.msra.mxu0 %v221
    %287 = vmatprep.subr.mxu0 %v224
    %288 = vmatpush1.msra.mxu0 %v223
    %289 = vmatprep.subr.mxu0 %v226
    %290 = vmatpush1.msra.mxu0 %v225
    %291 = vmatprep.subr.mxu0 %v228
    %292 = vmatpush1.msra.mxu0 %v227
    %293 = vmatprep.subr.mxu0 %v230
    %294 = vmatpush1.msra.mxu0 %v229
    %295 = vmatprep.subr.mxu0 %v232
    %296 = vmatpush1.msra.mxu0 %v231
    %297 = vmatprep.subr.mxu0 %v234
    %298 = vmatpush1.msra.mxu0 %v233
    %299 = vmatprep.subr.mxu0 %v236
    %300 = vmatpush1.msra.mxu0 %v235
    %301 = vmatprep.subr.mxu0 %v238
    %302 = vmatpush1.msra.mxu0 %v237
    %303 = vmatprep.subr.mxu0 %v240
    %304 = vmatpush1.msra.mxu0 %v239
    %305 = vmatprep.subr.mxu0 %v242
    %306 = vmatpush1.msra.mxu0 %v241
    %307 = vmatprep.subr.mxu0 %v244
    %308 = vmatpush1.msra.mxu0 %v243
    %309 = vmatprep.subr.mxu0 %v246
    %310 = vmatpush1.msra.mxu0 %v245
    %311 = vmatprep.subr.mxu0 %v248
    %312 = vmatpush1.msra.mxu0 %v247
    %313 = vmatprep.subr.mxu0 %v250
    %314 = vmatpush1.msra.mxu0 %v249
    %315 = vmatprep.subr.mxu0 %v252
    %316 = vmatpush1.msra.mxu0 %v251
    %317 = vmatprep.subr.mxu0 %v254
    %318 = vmatpush1.msra.mxu0 %v253
    %319 = vmatprep.subr.mxu0 %v256
    %320 = vmatpush1.msra.mxu0 %v255
    %321 = vmatprep.subr.mxu0 %v258
    %322 = vmatpush1.msra.mxu0 %v257
    %323 = vmatprep.subr.mxu0 %v260
    %324 = vmatpush1.msra.mxu0 %v259
    %325 = vmatprep.subr.mxu0 %v262
    %326 = vmatpush1.msra.mxu0 %v261
    %327 = vmatprep.subr.mxu0 %v264
    %328 = vmatpush1.msra.mxu0 %v263
    %329 = vmatprep.subr.mxu0 %v266
    %330 = vmatpush1.msra.mxu0 %v265
    %331 = vmatprep.mubr.f32.mxu0 %v84
    %332 = vmatmul.mubr.f32.gmra.mrb[0].mxu0 %v83
    %v333 = vpop.f32.mrb[0].mxu0
    %v334 = vadd.f32 0.0, %v333
    %v335 = vpop.f32.mrb[0].mxu0
    %v336 = vadd.f32 0.0, %v335
    %337 = vmatprep.mubr.f32.mxu0 %v199
    %338 = vmatmul.mubr.f32.gmra.mrb[0].mxu0 %v198
    %v339 = vpop.f32.mrb[0].mxu0
    %v340 = vadd.f32 0.0, %v339
    %v341 = vpop.f32.mrb[0].mxu0
    %v342 = vadd.f32 0.0, %v341
    %343 = vmatprep.mubr.f32.mxu0 %v90
    %344 = vmatmul.mubr.f32.gmra.mrb[0].mxu0 %v89
    %v345 = vpop.f32.mrb[0].mxu0
    %v346 = vadd.f32 0.0, %v345
    %v347 = vpop.f32.mrb[0].mxu0
    %v348 = vadd.f32 0.0, %v347
    %349 = vmatprep.mubr.f32.mxu0 %v201
    %350 = vmatmul.mubr.f32.gmra.mrb[0].mxu0 %v200
    %v351 = vpop.f32.mrb[0].mxu0
    %v352 = vadd.f32 0.0, %v351
    %v353 = vpop.f32.mrb[0].mxu0
    %v354 = vadd.f32 0.0, %v353
    %355 = vdwg.mxu0
    %356 = vmatprep.subr.mxu0 %v135
    %357 = vmatpush1.msra.mxu0 %v134
    %358 = vmatprep.subr.mxu0 %v137
    %359 = vmatpush1.msra.mxu0 %v136
    %360 = vmatprep.subr.mxu0 %v139
    %361 = vmatpush1.msra.mxu0 %v138
    %362 = vmatprep.subr.mxu0 %v141
    %363 = vmatpush1.msra.mxu0 %v140
    %364 = vmatprep.subr.mxu0 %v143
    %365 = vmatpush1.msra.mxu0 %v142
    %366 = vmatprep.subr.mxu0 %v145
    %367 = vmatpush1.msra.mxu0 %v144
    %368 = vmatprep.subr.mxu0 %v147
    %369 = vmatpush1.msra.mxu0 %v146
    %370 = vmatprep.subr.mxu0 %v149
    %371 = vmatpush1.msra.mxu0 %v148
    %372 = vmatprep.subr.mxu0 %v151
    %373 = vmatpush1.msra.mxu0 %v150
    %374 = vmatprep.subr.mxu0 %v153
    %375 = vmatpush1.msra.mxu0 %v152
    %376 = vmatprep.subr.mxu0 %v155
    %377 = vmatpush1.msra.mxu0 %v154
    %378 = vmatprep.subr.mxu0 %v157
    %379 = vmatpush1.msra.mxu0 %v156
    %380 = vmatprep.subr.mxu0 %v159
    %381 = vmatpush1.msra.mxu0 %v158
    %382 = vmatprep.subr.mxu0 %v161
    %383 = vmatpush1.msra.mxu0 %v160
    %384 = vmatprep.subr.mxu0 %v163
    %385 = vmatpush1.msra.mxu0 %v162
    %386 = vmatprep.subr.mxu0 %v165
    %387 = vmatpush1.msra.mxu0 %v164
    %388 = vmatprep.subr.mxu0 %v167
    %389 = vmatpush1.msra.mxu0 %v166
    %390 = vmatprep.subr.mxu0 %v169
    %391 = vmatpush1.msra.mxu0 %v168
    %392 = vmatprep.subr.mxu0 %v171
    %393 = vmatpush1.msra.mxu0 %v170
    %394 = vmatprep.subr.mxu0 %v173
    %395 = vmatpush1.msra.mxu0 %v172
    %396 = vmatprep.subr.mxu0 %v175
    %397 = vmatpush1.msra.mxu0 %v174
    %398 = vmatprep.subr.mxu0 %v177
    %399 = vmatpush1.msra.mxu0 %v176
    %400 = vmatprep.subr.mxu0 %v179
    %401 = vmatpush1.msra.mxu0 %v178
    %402 = vmatprep.subr.mxu0 %v181
    %403 = vmatpush1.msra.mxu0 %v180
    %404 = vmatprep.subr.mxu0 %v183
    %405 = vmatpush1.msra.mxu0 %v182
    %406 = vmatprep.subr.mxu0 %v185
    %407 = vmatpush1.msra.mxu0 %v184
    %408 = vmatprep.subr.mxu0 %v187
    %409 = vmatpush1.msra.mxu0 %v186
    %410 = vmatprep.subr.mxu0 %v189
    %411 = vmatpush1.msra.mxu0 %v188
    %412 = vmatprep.subr.mxu0 %v191
    %413 = vmatpush1.msra.mxu0 %v190
    %414 = vmatprep.subr.mxu0 %v193
    %415 = vmatpush1.msra.mxu0 %v192
    %416 = vmatprep.subr.mxu0 %v195
    %417 = vmatpush1.msra.mxu0 %v194
    %418 = vmatprep.subr.mxu0 %v197
    %419 = vmatpush1.msra.mxu0 %v196
    %420 = vmatprep.mubr.f32.mxu0 %v111
    %421 = vmatmul.mubr.f32.gmra.mrb[0].mxu0 %v108
    %v422 = vpop.f32.mrb[0].mxu0
    %v423 = vadd.f32 %v334, %v422
    %v424 = vpop.f32.mrb[0].mxu0
    %v425 = vadd.f32 %v336, %v424
    %426 = vmatprep.mubr.f32.mxu0 %v115
    %427 = vmatmul.mubr.f32.gmra.mrb[0].mxu0 %v113
    %v428 = vpop.f32.mrb[0].mxu0
    %v429 = vadd.f32 %v340, %v428
    %v430 = vpop.f32.mrb[0].mxu0
    %v431 = vadd.f32 %v342, %v430
    %432 = vmatprep.mubr.f32.mxu0 %v121
    %433 = vmatmul.mubr.f32.gmra.mrb[0].mxu0 %v118
    %v434 = vpop.f32.mrb[0].mxu0
    %v435 = vadd.f32 %v346, %v434
    %v436 = vpop.f32.mrb[0].mxu0
    %v437 = vadd.f32 %v348, %v436
    %438 = vmatprep.mubr.f32.mxu0 %v125
    %439 = vmatmul.mubr.f32.gmra.mrb[0].mxu0 %v123
    %v440 = vpop.f32.mrb[0].mxu0
    %v441 = vadd.f32 %v352, %v440
    %v442 = vpop.f32.mrb[0].mxu0
    %v443 = vadd.f32 %v354, %v442
    %444 = vdwg.mxu0
    %v445 = vld [vmem:[#allocation2 + $0x10] sm:$0xfe]
    %v446 = vld [vmem:[#allocation2 + $0x18] sm:$0xfe]
    %v447 = vld [vmem:[#allocation2 + $0x20] sm:$0xff]
    %v448 = vld [vmem:[#allocation2 + $0x28] sm:$0xff]
    %v449 = vld [vmem:[#allocation2 + $0x30] sm:$0x1]
    %v450 = vld [vmem:[#allocation2 + $0x38] sm:$0x1]
    %v451 = vld [vmem:[#allocation2 + $0x50] sm:$0xfe]
    %v452 = vld [vmem:[#allocation2 + $0x58] sm:$0xfe]
    %v453 = vld [vmem:[#allocation2 + $0x60] sm:$0xff]
    %v454 = vld [vmem:[#allocation2 + $0x68] sm:$0xff]
    %v455 = vld [vmem:[#allocation2 + $0x70] sm:$0x1]
    %v456 = vld [vmem:[#allocation2 + $0x78] sm:$0x1]
    %vm469 = vcmask 1046528
    %v470 = vrot.slane %v445, 1
    %v471 = vrot.slane %v447, 1
    %v472 = vsel %vm469, %v470, %v471
    %v473 = vrot.slane %v446, 1
    %v474 = vrot.slane %v448, 1
    %v475 = vsel %vm469, %v473, %v474
    %v476 = vrot.slane %v449, 1
    %v477 = vsel %vm469, %v471, %v476
    %v478 = vrot.slane %v450, 1
    %v479 = vsel %vm469, %v474, %v478
    %v480 = vrot.slane %v451, 1
    %v481 = vrot.slane %v453, 1
    %v482 = vsel %vm469, %v480, %v481
    %v483 = vrot.slane %v452, 1
    %v484 = vrot.slane %v454, 1
    %v485 = vsel %vm469, %v483, %v484
    %v486 = vrot.slane %v455, 1
    %v487 = vsel %vm469, %v481, %v486
    %v488 = vrot.slane %v456, 1
    %v489 = vsel %vm469, %v484, %v488
    %s498 = scalar_lea.vmem [#allocation6], 1024
    %v499 = vld [vmem:[%s498] sm:$0xff]
    %v500 = vld [vmem:[%s498 + $0x8] sm:$0xff]
    %v501 = vld [vmem:[%s498 + $0x10] sm:$0xff]
    %v502 = vld [vmem:[%s498 + $0x18] sm:$0xff]
    %v503 = vld [vmem:[%s498 + $0x20] sm:$0xff]
    %v504 = vld [vmem:[%s498 + $0x28] sm:$0xff]
    %v505 = vld [vmem:[%s498 + $0x30] sm:$0xff]
    %v506 = vld [vmem:[%s498 + $0x38] sm:$0xff]
    %v507 = vld [vmem:[%s498 + $0x40] sm:$0xff]
    %v508 = vld [vmem:[%s498 + $0x48] sm:$0xff]
    %v509 = vld [vmem:[%s498 + $0x50] sm:$0xff]
    %v510 = vld [vmem:[%s498 + $0x58] sm:$0xff]
    %v511 = vld [vmem:[%s498 + $0x60] sm:$0xff]
    %v512 = vld [vmem:[%s498 + $0x68] sm:$0xff]
    %v513 = vld [vmem:[%s498 + $0x70] sm:$0xff]
    %v514 = vld [vmem:[%s498 + $0x78] sm:$0xff]
    %v515 = vld [vmem:[%s498 + $0x80] sm:$0xff]
    %v516 = vld [vmem:[%s498 + $0x88] sm:$0xff]
    %v517 = vld [vmem:[%s498 + $0x90] sm:$0xff]
    %v518 = vld [vmem:[%s498 + $0x98] sm:$0xff]
    %v519 = vld [vmem:[%s498 + $0xa0] sm:$0xff]
    %v520 = vld [vmem:[%s498 + $0xa8] sm:$0xff]
    %v521 = vld [vmem:[%s498 + $0xb0] sm:$0xff]
    %v522 = vld [vmem:[%s498 + $0xb8] sm:$0xff]
    %v523 = vld [vmem:[%s498 + $0xc0] sm:$0xff]
    %v524 = vld [vmem:[%s498 + $0xc8] sm:$0xff]
    %v525 = vld [vmem:[%s498 + $0xd0] sm:$0xff]
    %v526 = vld [vmem:[%s498 + $0xd8] sm:$0xff]
    %v527 = vld [vmem:[%s498 + $0xe0] sm:$0xff]
    %v528 = vld [vmem:[%s498 + $0xe8] sm:$0xff]
    %v529 = vld [vmem:[%s498 + $0xf0] sm:$0xff]
    %v530 = vld [vmem:[%s498 + $0xf8] sm:$0xff]
    %v531 = vld [vmem:[%s498 + $0x100] sm:$0xff]
    %v532 = vld [vmem:[%s498 + $0x108] sm:$0xff]
    %v533 = vld [vmem:[%s498 + $0x110] sm:$0xff]
    %v534 = vld [vmem:[%s498 + $0x118] sm:$0xff]
    %v535 = vld [vmem:[%s498 + $0x120] sm:$0xff]
    %v536 = vld [vmem:[%s498 + $0x128] sm:$0xff]
    %v537 = vld [vmem:[%s498 + $0x130] sm:$0xff]
    %v538 = vld [vmem:[%s498 + $0x138] sm:$0xff]
    %v539 = vld [vmem:[%s498 + $0x140] sm:$0xff]
    %v540 = vld [vmem:[%s498 + $0x148] sm:$0xff]
    %v541 = vld [vmem:[%s498 + $0x150] sm:$0xff]
    %v542 = vld [vmem:[%s498 + $0x158] sm:$0xff]
    %v543 = vld [vmem:[%s498 + $0x160] sm:$0xff]
    %v544 = vld [vmem:[%s498 + $0x168] sm:$0xff]
    %v545 = vld [vmem:[%s498 + $0x170] sm:$0xff]
    %v546 = vld [vmem:[%s498 + $0x178] sm:$0xff]
    %v547 = vld [vmem:[%s498 + $0x180] sm:$0xff]
    %v548 = vld [vmem:[%s498 + $0x188] sm:$0xff]
    %v549 = vld [vmem:[%s498 + $0x190] sm:$0xff]
    %v550 = vld [vmem:[%s498 + $0x198] sm:$0xff]
    %v551 = vld [vmem:[%s498 + $0x1a0] sm:$0xff]
    %v552 = vld [vmem:[%s498 + $0x1a8] sm:$0xff]
    %v553 = vld [vmem:[%s498 + $0x1b0] sm:$0xff]
    %v554 = vld [vmem:[%s498 + $0x1b8] sm:$0xff]
    %v555 = vld [vmem:[%s498 + $0x1c0] sm:$0xff]
    %v556 = vld [vmem:[%s498 + $0x1c8] sm:$0xff]
    %v557 = vld [vmem:[%s498 + $0x1d0] sm:$0xff]
    %v558 = vld [vmem:[%s498 + $0x1d8] sm:$0xff]
    %v559 = vld [vmem:[%s498 + $0x1e0] sm:$0xff]
    %v560 = vld [vmem:[%s498 + $0x1e8] sm:$0xff]
    %v561 = vld [vmem:[%s498 + $0x1f0] sm:$0xff]
    %v562 = vld [vmem:[%s498 + $0x1f8] sm:$0xff]
    %563 = vmatprep.subr.mxu0 %v500
    %564 = vmatpush1.msra.mxu0 %v499
    %565 = vmatprep.subr.mxu0 %v502
    %566 = vmatpush1.msra.mxu0 %v501
    %567 = vmatprep.subr.mxu0 %v504
    %568 = vmatpush1.msra.mxu0 %v503
    %569 = vmatprep.subr.mxu0 %v506
    %570 = vmatpush1.msra.mxu0 %v505
    %571 = vmatprep.subr.mxu0 %v508
    %572 = vmatpush1.msra.mxu0 %v507
    %573 = vmatprep.subr.mxu0 %v510
    %574 = vmatpush1.msra.mxu0 %v509
    %575 = vmatprep.subr.mxu0 %v512
    %576 = vmatpush1.msra.mxu0 %v511
    %577 = vmatprep.subr.mxu0 %v514
    %578 = vmatpush1.msra.mxu0 %v513
    %579 = vmatprep.subr.mxu0 %v516
    %580 = vmatpush1.msra.mxu0 %v515
    %581 = vmatprep.subr.mxu0 %v518
    %582 = vmatpush1.msra.mxu0 %v517
    %583 = vmatprep.subr.mxu0 %v520
    %584 = vmatpush1.msra.mxu0 %v519
    %585 = vmatprep.subr.mxu0 %v522
    %586 = vmatpush1.msra.mxu0 %v521
    %587 = vmatprep.subr.mxu0 %v524
    %588 = vmatpush1.msra.mxu0 %v523
    %589 = vmatprep.subr.mxu0 %v526
    %590 = vmatpush1.msra.mxu0 %v525
    %591 = vmatprep.subr.mxu0 %v528
    %592 = vmatpush1.msra.mxu0 %v527
    %593 = vmatprep.subr.mxu0 %v530
    %594 = vmatpush1.msra.mxu0 %v529
    %595 = vmatprep.subr.mxu0 %v532
    %596 = vmatpush1.msra.mxu0 %v531
    %597 = vmatprep.subr.mxu0 %v534
    %598 = vmatpush1.msra.mxu0 %v533
    %599 = vmatprep.subr.mxu0 %v536
    %600 = vmatpush1.msra.mxu0 %v535
    %601 = vmatprep.subr.mxu0 %v538
    %602 = vmatpush1.msra.mxu0 %v537
    %603 = vmatprep.subr.mxu0 %v540
    %604 = vmatpush1.msra.mxu0 %v539
    %605 = vmatprep.subr.mxu0 %v542
    %606 = vmatpush1.msra.mxu0 %v541
    %607 = vmatprep.subr.mxu0 %v544
    %608 = vmatpush1.msra.mxu0 %v543
    %609 = vmatprep.subr.mxu0 %v546
    %610 = vmatpush1.msra.mxu0 %v545
    %611 = vmatprep.subr.mxu0 %v548
    %612 = vmatpush1.msra.mxu0 %v547
    %613 = vmatprep.subr.mxu0 %v550
    %614 = vmatpush1.msra.mxu0 %v549
    %615 = vmatprep.subr.mxu0 %v552
    %616 = vmatpush1.msra.mxu0 %v551
    %617 = vmatprep.subr.mxu0 %v554
    %618 = vmatpush1.msra.mxu0 %v553
    %619 = vmatprep.subr.mxu0 %v556
    %620 = vmatpush1.msra.mxu0 %v555
    %621 = vmatprep.subr.mxu0 %v558
    %622 = vmatpush1.msra.mxu0 %v557
    %623 = vmatprep.subr.mxu0 %v560
    %624 = vmatpush1.msra.mxu0 %v559
    %625 = vmatprep.subr.mxu0 %v562
    %626 = vmatpush1.msra.mxu0 %v561
    %627 = vmatprep.mubr.f32.mxu0 %v475
    %628 = vmatmul.mubr.f32.gmra.mrb[0].mxu0 %v472
    %v629 = vpop.f32.mrb[0].mxu0
    %v630 = vadd.f32 0.0, %v629
    %v631 = vpop.f32.mrb[0].mxu0
    %v632 = vadd.f32 0.0, %v631
    %633 = vmatprep.mubr.f32.mxu0 %v479
    %634 = vmatmul.mubr.f32.gmra.mrb[0].mxu0 %v477
    %v635 = vpop.f32.mrb[0].mxu0
    %v636 = vadd.f32 0.0, %v635
    %v637 = vpop.f32.mrb[0].mxu0
    %v638 = vadd.f32 0.0, %v637
    %639 = vmatprep.mubr.f32.mxu0 %v485
    %640 = vmatmul.mubr.f32.gmra.mrb[0].mxu0 %v482
    %v641 = vpop.f32.mrb[0].mxu0
    %v642 = vadd.f32 0.0, %v641
    %v643 = vpop.f32.mrb[0].mxu0
    %v644 = vadd.f32 0.0, %v643
    %645 = vmatprep.mubr.f32.mxu0 %v489
    %646 = vmatmul.mubr.f32.gmra.mrb[0].mxu0 %v487
    %v647 = vpop.f32.mrb[0].mxu0
    %v648 = vadd.f32 0.0, %v647
    %v649 = vpop.f32.mrb[0].mxu0
    %v650 = vadd.f32 0.0, %v649
    %651 = vdwg.mxu0
    %v652 = vadd.f32 %v423, %v630
    %v653 = vadd.f32 %v425, %v632
    %v654 = vadd.f32 %v429, %v636
    %v655 = vadd.f32 %v431, %v638
    %v656 = vadd.f32 %v435, %v642
    %v657 = vadd.f32 %v437, %v644
    %v658 = vadd.f32 %v441, %v648
    %v659 = vadd.f32 %v443, %v650
    %v660 = vmax.f32 %v652, 0.0
    %v661 = vmax.f32 %v653, 0.0
    %v662 = vmax.f32 %v654, 0.0
    %v663 = vmax.f32 %v655, 0.0
    %v664 = vmax.f32 %v656, 0.0
    %v665 = vmax.f32 %v657, 0.0
    %v666 = vmax.f32 %v658, 0.0
    %v667 = vmax.f32 %v659, 0.0
    %668 = vst [vmem:[#allocation2 + $0x10] sm:$0xff] %v660
    %669 = vst [vmem:[#allocation2 + $0x18] sm:$0xff] %v661
    %670 = vst [vmem:[#allocation2 + $0x20] sm:$0xff] %v662
    %671 = vst [vmem:[#allocation2 + $0x28] sm:$0xff] %v663
    %672 = vst [vmem:[#allocation2 + $0x50] sm:$0xff] %v664
    %673 = vst [vmem:[#allocation2 + $0x58] sm:$0xff] %v665
    %674 = vst [vmem:[#allocation2 + $0x60] sm:$0xff] %v666
    %675 = vst [vmem:[#allocation2 + $0x68] sm:$0xff] %v667
    %v676 = vld [vmem:[#allocation2] sm:$0x80]
    %v677 = vld [vmem:[#allocation2 + $0x8] sm:$0x80]
    %v678 = vld [vmem:[#allocation2 + $0x10] sm:$0xff]
    %v679 = vld [vmem:[#allocation2 + $0x18] sm:$0xff]
    %v680 = vld [vmem:[#allocation2 + $0x20] sm:$0x7f]
    %v681 = vld [vmem:[#allocation2 + $0x28] sm:$0x7f]
    %v682 = vld [vmem:[#allocation2 + $0x40] sm:$0x80]
    %v683 = vld [vmem:[#allocation2 + $0x48] sm:$0x80]
    %v684 = vld [vmem:[#allocation2 + $0x50] sm:$0xff]
    %v685 = vld [vmem:[#allocation2 + $0x58] sm:$0xff]
    %v686 = vld [vmem:[#allocation2 + $0x60] sm:$0x7f]
    %v687 = vld [vmem:[#allocation2 + $0x68] sm:$0x7f]
    %v700 = vrot.slane %v676, 7
    %v701 = vrot.slane %v678, 7
    %v702 = vsel %vm105, %v700, %v701
    %v703 = vrot.slane %v677, 7
    %v704 = vrot.slane %v679, 7
    %v705 = vsel %vm105, %v703, %v704
    %v706 = vrot.slane %v680, 7
    %v707 = vsel %vm105, %v701, %v706
    %v708 = vrot.slane %v681, 7
    %v709 = vsel %vm105, %v704, %v708
    %v710 = vrot.slane %v682, 7
    %v711 = vrot.slane %v684, 7
    %v712 = vsel %vm105, %v710, %v711
    %v713 = vrot.slane %v683, 7
    %v714 = vrot.slane %v685, 7
    %v715 = vsel %vm105, %v713, %v714
    %v716 = vrot.slane %v686, 7
    %v717 = vsel %vm105, %v711, %v716
    %v718 = vrot.slane %v687, 7
    %v719 = vsel %vm105, %v714, %v718
    %s728 = scalar_lea.vmem [#allocation6], 1536
    %v729 = vld [vmem:[%s728] sm:$0xff]
    %v730 = vld [vmem:[%s728 + $0x8] sm:$0xff]
    %v731 = vld [vmem:[%s728 + $0x10] sm:$0xff]
    %v732 = vld [vmem:[%s728 + $0x18] sm:$0xff]
    %v733 = vld [vmem:[%s728 + $0x20] sm:$0xff]
    %v734 = vld [vmem:[%s728 + $0x28] sm:$0xff]
    %v735 = vld [vmem:[%s728 + $0x30] sm:$0xff]
    %v736 = vld [vmem:[%s728 + $0x38] sm:$0xff]
    %v737 = vld [vmem:[%s728 + $0x40] sm:$0xff]
    %v738 = vld [vmem:[%s728 + $0x48] sm:$0xff]
    %v739 = vld [vmem:[%s728 + $0x50] sm:$0xff]
    %v740 = vld [vmem:[%s728 + $0x58] sm:$0xff]
    %v741 = vld [vmem:[%s728 + $0x60] sm:$0xff]
    %v742 = vld [vmem:[%s728 + $0x68] sm:$0xff]
    %v743 = vld [vmem:[%s728 + $0x70] sm:$0xff]
    %v744 = vld [vmem:[%s728 + $0x78] sm:$0xff]
    %v745 = vld [vmem:[%s728 + $0x80] sm:$0xff]
    %v746 = vld [vmem:[%s728 + $0x88] sm:$0xff]
    %v747 = vld [vmem:[%s728 + $0x90] sm:$0xff]
    %v748 = vld [vmem:[%s728 + $0x98] sm:$0xff]
    %v749 = vld [vmem:[%s728 + $0xa0] sm:$0xff]
    %v750 = vld [vmem:[%s728 + $0xa8] sm:$0xff]
    %v751 = vld [vmem:[%s728 + $0xb0] sm:$0xff]
    %v752 = vld [vmem:[%s728 + $0xb8] sm:$0xff]
    %v753 = vld [vmem:[%s728 + $0xc0] sm:$0xff]
    %v754 = vld [vmem:[%s728 + $0xc8] sm:$0xff]
    %v755 = vld [vmem:[%s728 + $0xd0] sm:$0xff]
    %v756 = vld [vmem:[%s728 + $0xd8] sm:$0xff]
    %v757 = vld [vmem:[%s728 + $0xe0] sm:$0xff]
    %v758 = vld [vmem:[%s728 + $0xe8] sm:$0xff]
    %v759 = vld [vmem:[%s728 + $0xf0] sm:$0xff]
    %v760 = vld [vmem:[%s728 + $0xf8] sm:$0xff]
    %v761 = vld [vmem:[%s728 + $0x100] sm:$0xff]
    %v762 = vld [vmem:[%s728 + $0x108] sm:$0xff]
    %v763 = vld [vmem:[%s728 + $0x110] sm:$0xff]
    %v764 = vld [vmem:[%s728 + $0x118] sm:$0xff]
    %v765 = vld [vmem:[%s728 + $0x120] sm:$0xff]
    %v766 = vld [vmem:[%s728 + $0x128] sm:$0xff]
    %v767 = vld [vmem:[%s728 + $0x130] sm:$0xff]
    %v768 = vld [vmem:[%s728 + $0x138] sm:$0xff]
    %v769 = vld [vmem:[%s728 + $0x140] sm:$0xff]
    %v770 = vld [vmem:[%s728 + $0x148] sm:$0xff]
    %v771 = vld [vmem:[%s728 + $0x150] sm:$0xff]
    %v772 = vld [vmem:[%s728 + $0x158] sm:$0xff]
    %v773 = vld [vmem:[%s728 + $0x160] sm:$0xff]
    %v774 = vld [vmem:[%s728 + $0x168] sm:$0xff]
    %v775 = vld [vmem:[%s728 + $0x170] sm:$0xff]
    %v776 = vld [vmem:[%s728 + $0x178] sm:$0xff]
    %v777 = vld [vmem:[%s728 + $0x180] sm:$0xff]
    %v778 = vld [vmem:[%s728 + $0x188] sm:$0xff]
    %v779 = vld [vmem:[%s728 + $0x190] sm:$0xff]
    %v780 = vld [vmem:[%s728 + $0x198] sm:$0xff]
    %v781 = vld [vmem:[%s728 + $0x1a0] sm:$0xff]
    %v782 = vld [vmem:[%s728 + $0x1a8] sm:$0xff]
    %v783 = vld [vmem:[%s728 + $0x1b0] sm:$0xff]
    %v784 = vld [vmem:[%s728 + $0x1b8] sm:$0xff]
    %v785 = vld [vmem:[%s728 + $0x1c0] sm:$0xff]
    %v786 = vld [vmem:[%s728 + $0x1c8] sm:$0xff]
    %v787 = vld [vmem:[%s728 + $0x1d0] sm:$0xff]
    %v788 = vld [vmem:[%s728 + $0x1d8] sm:$0xff]
    %v789 = vld [vmem:[%s728 + $0x1e0] sm:$0xff]
    %v790 = vld [vmem:[%s728 + $0x1e8] sm:$0xff]
    %v791 = vld [vmem:[%s728 + $0x1f0] sm:$0xff]
    %v792 = vld [vmem:[%s728 + $0x1f8] sm:$0xff]
    %v793 = vld [vmem:[#allocation2 + $0x20] sm:$0xff]
    %v794 = vld [vmem:[#allocation2 + $0x28] sm:$0xff]
    %v795 = vld [vmem:[#allocation2 + $0x60] sm:$0xff]
    %v796 = vld [vmem:[#allocation2 + $0x68] sm:$0xff]
    %s797 = scalar_lea.vmem [#allocation6], 2048
    %v798 = vld [vmem:[%s797] sm:$0xff]
    %v799 = vld [vmem:[%s797 + $0x8] sm:$0xff]
    %v800 = vld [vmem:[%s797 + $0x10] sm:$0xff]
    %v801 = vld [vmem:[%s797 + $0x18] sm:$0xff]
    %v802 = vld [vmem:[%s797 + $0x20] sm:$0xff]
    %v803 = vld [vmem:[%s797 + $0x28] sm:$0xff]
    %v804 = vld [vmem:[%s797 + $0x30] sm:$0xff]
    %v805 = vld [vmem:[%s797 + $0x38] sm:$0xff]
    %v806 = vld [vmem:[%s797 + $0x40] sm:$0xff]
    %v807 = vld [vmem:[%s797 + $0x48] sm:$0xff]
    %v808 = vld [vmem:[%s797 + $0x50] sm:$0xff]
    %v809 = vld [vmem:[%s797 + $0x58] sm:$0xff]
    %v810 = vld [vmem:[%s797 + $0x60] sm:$0xff]
    %v811 = vld [vmem:[%s797 + $0x68] sm:$0xff]
    %v812 = vld [vmem:[%s797 + $0x70] sm:$0xff]
    %v813 = vld [vmem:[%s797 + $0x78] sm:$0xff]
    %v814 = vld [vmem:[%s797 + $0x80] sm:$0xff]
    %v815 = vld [vmem:[%s797 + $0x88] sm:$0xff]
    %v816 = vld [vmem:[%s797 + $0x90] sm:$0xff]
    %v817 = vld [vmem:[%s797 + $0x98] sm:$0xff]
    %v818 = vld [vmem:[%s797 + $0xa0] sm:$0xff]
    %v819 = vld [vmem:[%s797 + $0xa8] sm:$0xff]
    %v820 = vld [vmem:[%s797 + $0xb0] sm:$0xff]
    %v821 = vld [vmem:[%s797 + $0xb8] sm:$0xff]
    %v822 = vld [vmem:[%s797 + $0xc0] sm:$0xff]
    %v823 = vld [vmem:[%s797 + $0xc8] sm:$0xff]
    %v824 = vld [vmem:[%s797 + $0xd0] sm:$0xff]
    %v825 = vld [vmem:[%s797 + $0xd8] sm:$0xff]
    %v826 = vld [vmem:[%s797 + $0xe0] sm:$0xff]
    %v827 = vld [vmem:[%s797 + $0xe8] sm:$0xff]
    %v828 = vld [vmem:[%s797 + $0xf0] sm:$0xff]
    %v829 = vld [vmem:[%s797 + $0xf8] sm:$0xff]
    %v830 = vld [vmem:[%s797 + $0x100] sm:$0xff]
    %v831 = vld [vmem:[%s797 + $0x108] sm:$0xff]
    %v832 = vld [vmem:[%s797 + $0x110] sm:$0xff]
    %v833 = vld [vmem:[%s797 + $0x118] sm:$0xff]
    %v834 = vld [vmem:[%s797 + $0x120] sm:$0xff]
    %v835 = vld [vmem:[%s797 + $0x128] sm:$0xff]
    %v836 = vld [vmem:[%s797 + $0x130] sm:$0xff]
    %v837 = vld [vmem:[%s797 + $0x138] sm:$0xff]
    %v838 = vld [vmem:[%s797 + $0x140] sm:$0xff]
    %v839 = vld [vmem:[%s797 + $0x148] sm:$0xff]
    %v840 = vld [vmem:[%s797 + $0x150] sm:$0xff]
    %v841 = vld [vmem:[%s797 + $0x158] sm:$0xff]
    %v842 = vld [vmem:[%s797 + $0x160] sm:$0xff]
    %v843 = vld [vmem:[%s797 + $0x168] sm:$0xff]
    %v844 = vld [vmem:[%s797 + $0x170] sm:$0xff]
    %v845 = vld [vmem:[%s797 + $0x178] sm:$0xff]
    %v846 = vld [vmem:[%s797 + $0x180] sm:$0xff]
    %v847 = vld [vmem:[%s797 + $0x188] sm:$0xff]
    %v848 = vld [vmem:[%s797 + $0x190] sm:$0xff]
    %v849 = vld [vmem:[%s797 + $0x198] sm:$0xff]
    %v850 = vld [vmem:[%s797 + $0x1a0] sm:$0xff]
    %v851 = vld [vmem:[%s797 + $0x1a8] sm:$0xff]
    %v852 = vld [vmem:[%s797 + $0x1b0] sm:$0xff]
    %v853 = vld [vmem:[%s797 + $0x1b8] sm:$0xff]
    %v854 = vld [vmem:[%s797 + $0x1c0] sm:$0xff]
    %v855 = vld [vmem:[%s797 + $0x1c8] sm:$0xff]
    %v856 = vld [vmem:[%s797 + $0x1d0] sm:$0xff]
    %v857 = vld [vmem:[%s797 + $0x1d8] sm:$0xff]
    %v858 = vld [vmem:[%s797 + $0x1e0] sm:$0xff]
    %v859 = vld [vmem:[%s797 + $0x1e8] sm:$0xff]
    %v860 = vld [vmem:[%s797 + $0x1f0] sm:$0xff]
    %v861 = vld [vmem:[%s797 + $0x1f8] sm:$0xff]
    %862 = vmatprep.subr.mxu0 %v799
    %863 = vmatpush1.msra.mxu0 %v798
    %864 = vmatprep.subr.mxu0 %v801
    %865 = vmatpush1.msra.mxu0 %v800
    %866 = vmatprep.subr.mxu0 %v803
    %867 = vmatpush1.msra.mxu0 %v802
    %868 = vmatprep.subr.mxu0 %v805
    %869 = vmatpush1.msra.mxu0 %v804
    %870 = vmatprep.subr.mxu0 %v807
    %871 = vmatpush1.msra.mxu0 %v806
    %872 = vmatprep.subr.mxu0 %v809
    %873 = vmatpush1.msra.mxu0 %v808
    %874 = vmatprep.subr.mxu0 %v811
    %875 = vmatpush1.msra.mxu0 %v810
    %876 = vmatprep.subr.mxu0 %v813
    %877 = vmatpush1.msra.mxu0 %v812
    %878 = vmatprep.subr.mxu0 %v815
    %879 = vmatpush1.msra.mxu0 %v814
    %880 = vmatprep.subr.mxu0 %v817
    %881 = vmatpush1.msra.mxu0 %v816
    %882 = vmatprep.subr.mxu0 %v819
    %883 = vmatpush1.msra.mxu0 %v818
    %884 = vmatprep.subr.mxu0 %v821
    %885 = vmatpush1.msra.mxu0 %v820
    %886 = vmatprep.subr.mxu0 %v823
    %887 = vmatpush1.msra.mxu0 %v822
    %888 = vmatprep.subr.mxu0 %v825
    %889 = vmatpush1.msra.mxu0 %v824
    %890 = vmatprep.subr.mxu0 %v827
    %891 = vmatpush1.msra.mxu0 %v826
    %892 = vmatprep.subr.mxu0 %v829
    %893 = vmatpush1.msra.mxu0 %v828
    %894 = vmatprep.subr.mxu0 %v831
    %895 = vmatpush1.msra.mxu0 %v830
    %896 = vmatprep.subr.mxu0 %v833
    %897 = vmatpush1.msra.mxu0 %v832
    %898 = vmatprep.subr.mxu0 %v835
    %899 = vmatpush1.msra.mxu0 %v834
    %900 = vmatprep.subr.mxu0 %v837
    %901 = vmatpush1.msra.mxu0 %v836
    %902 = vmatprep.subr.mxu0 %v839
    %903 = vmatpush1.msra.mxu0 %v838
    %904 = vmatprep.subr.mxu0 %v841
    %905 = vmatpush1.msra.mxu0 %v840
    %906 = vmatprep.subr.mxu0 %v843
    %907 = vmatpush1.msra.mxu0 %v842
    %908 = vmatprep.subr.mxu0 %v845
    %909 = vmatpush1.msra.mxu0 %v844
    %910 = vmatprep.subr.mxu0 %v847
    %911 = vmatpush1.msra.mxu0 %v846
    %912 = vmatprep.subr.mxu0 %v849
    %913 = vmatpush1.msra.mxu0 %v848
    %914 = vmatprep.subr.mxu0 %v851
    %915 = vmatpush1.msra.mxu0 %v850
    %916 = vmatprep.subr.mxu0 %v853
    %917 = vmatpush1.msra.mxu0 %v852
    %918 = vmatprep.subr.mxu0 %v855
    %919 = vmatpush1.msra.mxu0 %v854
    %920 = vmatprep.subr.mxu0 %v857
    %921 = vmatpush1.msra.mxu0 %v856
    %922 = vmatprep.subr.mxu0 %v859
    %923 = vmatpush1.msra.mxu0 %v858
    %924 = vmatprep.subr.mxu0 %v861
    %925 = vmatpush1.msra.mxu0 %v860
    %926 = vmatprep.mubr.f32.mxu0 %v679
    %927 = vmatmul.mubr.f32.gmra.mrb[0].mxu0 %v678
    %v928 = vpop.f32.mrb[0].mxu0
    %v929 = vadd.f32 0.0, %v928
    %v930 = vpop.f32.mrb[0].mxu0
    %v931 = vadd.f32 0.0, %v930
    %932 = vmatprep.mubr.f32.mxu0 %v794
    %933 = vmatmul.mubr.f32.gmra.mrb[0].mxu0 %v793
    %v934 = vpop.f32.mrb[0].mxu0
    %v935 = vadd.f32 0.0, %v934
    %v936 = vpop.f32.mrb[0].mxu0
    %v937 = vadd.f32 0.0, %v936
    %938 = vmatprep.mubr.f32.mxu0 %v685
    %939 = vmatmul.mubr.f32.gmra.mrb[0].mxu0 %v684
    %v940 = vpop.f32.mrb[0].mxu0
    %v941 = vadd.f32 0.0, %v940
    %v942 = vpop.f32.mrb[0].mxu0
    %v943 = vadd.f32 0.0, %v942
    %944 = vmatprep.mubr.f32.mxu0 %v796
    %945 = vmatmul.mubr.f32.gmra.mrb[0].mxu0 %v795
    %v946 = vpop.f32.mrb[0].mxu0
    %v947 = vadd.f32 0.0, %v946
    %v948 = vpop.f32.mrb[0].mxu0
    %v949 = vadd.f32 0.0, %v948
    %950 = vdwg.mxu0
    %951 = vmatprep.subr.mxu0 %v730
    %952 = vmatpush1.msra.mxu0 %v729
    %953 = vmatprep.subr.mxu0 %v732
    %954 = vmatpush1.msra.mxu0 %v731
    %955 = vmatprep.subr.mxu0 %v734
    %956 = vmatpush1.msra.mxu0 %v733
    %957 = vmatprep.subr.mxu0 %v736
    %958 = vmatpush1.msra.mxu0 %v735
    %959 = vmatprep.subr.mxu0 %v738
    %960 = vmatpush1.msra.mxu0 %v737
    %961 = vmatprep.subr.mxu0 %v740
    %962 = vmatpush1.msra.mxu0 %v739
    %963 = vmatprep.subr.mxu0 %v742
    %964 = vmatpush1.msra.mxu0 %v741
    %965 = vmatprep.subr.mxu0 %v744
    %966 = vmatpush1.msra.mxu0 %v743
    %967 = vmatprep.subr.mxu0 %v746
    %968 = vmatpush1.msra.mxu0 %v745
    %969 = vmatprep.subr.mxu0 %v748
    %970 = vmatpush1.msra.mxu0 %v747
    %971 = vmatprep.subr.mxu0 %v750
    %972 = vmatpush1.msra.mxu0 %v749
    %973 = vmatprep.subr.mxu0 %v752
    %974 = vmatpush1.msra.mxu0 %v751
    %975 = vmatprep.subr.mxu0 %v754
    %976 = vmatpush1.msra.mxu0 %v753
    %977 = vmatprep.subr.mxu0 %v756
    %978 = vmatpush1.msra.mxu0 %v755
    %979 = vmatprep.subr.mxu0 %v758
    %980 = vmatpush1.msra.mxu0 %v757
    %981 = vmatprep.subr.mxu0 %v760
    %982 = vmatpush1.msra.mxu0 %v759
    %983 = vmatprep.subr.mxu0 %v762
    %984 = vmatpush1.msra.mxu0 %v761
    %985 = vmatprep.subr.mxu0 %v764
    %986 = vmatpush1.msra.mxu0 %v763
    %987 = vmatprep.subr.mxu0 %v766
    %988 = vmatpush1.msra.mxu0 %v765
    %989 = vmatprep.subr.mxu0 %v768
    %990 = vmatpush1.msra.mxu0 %v767
    %991 = vmatprep.subr.mxu0 %v770
    %992 = vmatpush1.msra.mxu0 %v769
    %993 = vmatprep.subr.mxu0 %v772
    %994 = vmatpush1.msra.mxu0 %v771
    %995 = vmatprep.subr.mxu0 %v774
    %996 = vmatpush1.msra.mxu0 %v773
    %997 = vmatprep.subr.mxu0 %v776
    %998 = vmatpush1.msra.mxu0 %v775
    %999 = vmatprep.subr.mxu0 %v778
    %1000 = vmatpush1.msra.mxu0 %v777
    %1001 = vmatprep.subr.mxu0 %v780
    %1002 = vmatpush1.msra.mxu0 %v779
    %1003 = vmatprep.subr.mxu0 %v782
    %1004 = vmatpush1.msra.mxu0 %v781
    %1005 = vmatprep.subr.mxu0 %v784
    %1006 = vmatpush1.msra.mxu0 %v783
    %1007 = vmatprep.subr.mxu0 %v786
    %1008 = vmatpush1.msra.mxu0 %v785
    %1009 = vmatprep.subr.mxu0 %v788
    %1010 = vmatpush1.msra.mxu0 %v787
    %1011 = vmatprep.subr.mxu0 %v790
    %1012 = vmatpush1.msra.mxu0 %v789
    %1013 = vmatprep.subr.mxu0 %v792
    %1014 = vmatpush1.msra.mxu0 %v791
    %1015 = vmatprep.mubr.f32.mxu0 %v705
    %1016 = vmatmul.mubr.f32.gmra.mrb[0].mxu0 %v702
    %v1017 = vpop.f32.mrb[0].mxu0
    %v1018 = vadd.f32 %v929, %v1017
    %v1019 = vpop.f32.mrb[0].mxu0
    %v1020 = vadd.f32 %v931, %v1019
    %1021 = vmatprep.mubr.f32.mxu0 %v709
    %1022 = vmatmul.mubr.f32.gmra.mrb[0].mxu0 %v707
    %v1023 = vpop.f32.mrb[0].mxu0
    %v1024 = vadd.f32 %v935, %v1023
    %v1025 = vpop.f32.mrb[0].mxu0
    %v1026 = vadd.f32 %v937, %v1025
    %1027 = vmatprep.mubr.f32.mxu0 %v715
    %1028 = vmatmul.mubr.f32.gmra.mrb[0].mxu0 %v712
    %v1029 = vpop.f32.mrb[0].mxu0
    %v1030 = vadd.f32 %v941, %v1029
    %v1031 = vpop.f32.mrb[0].mxu0
    %v1032 = vadd.f32 %v943, %v1031
    %1033 = vmatprep.mubr.f32.mxu0 %v719
    %1034 = vmatmul.mubr.f32.gmra.mrb[0].mxu0 %v717
    %v1035 = vpop.f32.mrb[0].mxu0
    %v1036 = vadd.f32 %v947, %v1035
    %v1037 = vpop.f32.mrb[0].mxu0
    %v1038 = vadd.f32 %v949, %v1037
    %1039 = vdwg.mxu0
    %v1040 = vld [vmem:[#allocation2 + $0x10] sm:$0xfe]
    %v1041 = vld [vmem:[#allocation2 + $0x18] sm:$0xfe]
    %v1042 = vld [vmem:[#allocation2 + $0x20] sm:$0xff]
    %v1043 = vld [vmem:[#allocation2 + $0x28] sm:$0xff]
    %v1044 = vld [vmem:[#allocation2 + $0x30] sm:$0x1]
    %v1045 = vld [vmem:[#allocation2 + $0x38] sm:$0x1]
    %v1046 = vld [vmem:[#allocation2 + $0x50] sm:$0xfe]
    %v1047 = vld [vmem:[#allocation2 + $0x58] sm:$0xfe]
    %v1048 = vld [vmem:[#allocation2 + $0x60] sm:$0xff]
    %v1049 = vld [vmem:[#allocation2 + $0x68] sm:$0xff]
    %v1050 = vld [vmem:[#allocation2 + $0x70] sm:$0x1]
    %v1051 = vld [vmem:[#allocation2 + $0x78] sm:$0x1]
    %v1064 = vrot.slane %v1040, 1
    %v1065 = vrot.slane %v1042, 1
    %v1066 = vsel %vm469, %v1064, %v1065
    %v1067 = vrot.slane %v1041, 1
    %v1068 = vrot.slane %v1043, 1
    %v1069 = vsel %vm469, %v1067, %v1068
    %v1070 = vrot.slane %v1044, 1
    %v1071 = vsel %vm469, %v1065, %v1070
    %v1072 = vrot.slane %v1045, 1
    %v1073 = vsel %vm469, %v1068, %v1072
    %v1074 = vrot.slane %v1046, 1
    %v1075 = vrot.slane %v1048, 1
    %v1076 = vsel %vm469, %v1074, %v1075
    %v1077 = vrot.slane %v1047, 1
    %v1078 = vrot.slane %v1049, 1
    %v1079 = vsel %vm469, %v1077, %v1078
    %v1080 = vrot.slane %v1050, 1
    %v1081 = vsel %vm469, %v1075, %v1080
    %v1082 = vrot.slane %v1051, 1
    %v1083 = vsel %vm469, %v1078, %v1082
    %s1092 = scalar_lea.vmem [#allocation6], 2560
    %v1093 = vld [vmem:[%s1092] sm:$0xff]
    %v1094 = vld [vmem:[%s1092 + $0x8] sm:$0xff]
    %v1095 = vld [vmem:[%s1092 + $0x10] sm:$0xff]
    %v1096 = vld [vmem:[%s1092 + $0x18] sm:$0xff]
    %v1097 = vld [vmem:[%s1092 + $0x20] sm:$0xff]
    %v1098 = vld [vmem:[%s1092 + $0x28] sm:$0xff]
    %v1099 = vld [vmem:[%s1092 + $0x30] sm:$0xff]
    %v1100 = vld [vmem:[%s1092 + $0x38] sm:$0xff]
    %v1101 = vld [vmem:[%s1092 + $0x40] sm:$0xff]
    %v1102 = vld [vmem:[%s1092 + $0x48] sm:$0xff]
    %v1103 = vld [vmem:[%s1092 + $0x50] sm:$0xff]
    %v1104 = vld [vmem:[%s1092 + $0x58] sm:$0xff]
    %v1105 = vld [vmem:[%s1092 + $0x60] sm:$0xff]
    %v1106 = vld [vmem:[%s1092 + $0x68] sm:$0xff]
    %v1107 = vld [vmem:[%s1092 + $0x70] sm:$0xff]
    %v1108 = vld [vmem:[%s1092 + $0x78] sm:$0xff]
    %v1109 = vld [vmem:[%s1092 + $0x80] sm:$0xff]
    %v1110 = vld [vmem:[%s1092 + $0x88] sm:$0xff]
    %v1111 = vld [vmem:[%s1092 + $0x90] sm:$0xff]
    %v1112 = vld [vmem:[%s1092 + $0x98] sm:$0xff]
    %v1113 = vld [vmem:[%s1092 + $0xa0] sm:$0xff]
    %v1114 = vld [vmem:[%s1092 + $0xa8] sm:$0xff]
    %v1115 = vld [vmem:[%s1092 + $0xb0] sm:$0xff]
    %v1116 = vld [vmem:[%s1092 + $0xb8] sm:$0xff]
    %v1117 = vld [vmem:[%s1092 + $0xc0] sm:$0xff]
    %v1118 = vld [vmem:[%s1092 + $0xc8] sm:$0xff]
    %v1119 = vld [vmem:[%s1092 + $0xd0] sm:$0xff]
    %v1120 = vld [vmem:[%s1092 + $0xd8] sm:$0xff]
    %v1121 = vld [vmem:[%s1092 + $0xe0] sm:$0xff]
    %v1122 = vld [vmem:[%s1092 + $0xe8] sm:$0xff]
    %v1123 = vld [vmem:[%s1092 + $0xf0] sm:$0xff]
    %v1124 = vld [vmem:[%s1092 + $0xf8] sm:$0xff]
    %v1125 = vld [vmem:[%s1092 + $0x100] sm:$0xff]
    %v1126 = vld [vmem:[%s1092 + $0x108] sm:$0xff]
    %v1127 = vld [vmem:[%s1092 + $0x110] sm:$0xff]
    %v1128 = vld [vmem:[%s1092 + $0x118] sm:$0xff]
    %v1129 = vld [vmem:[%s1092 + $0x120] sm:$0xff]
    %v1130 = vld [vmem:[%s1092 + $0x128] sm:$0xff]
    %v1131 = vld [vmem:[%s1092 + $0x130] sm:$0xff]
    %v1132 = vld [vmem:[%s1092 + $0x138] sm:$0xff]
    %v1133 = vld [vmem:[%s1092 + $0x140] sm:$0xff]
    %v1134 = vld [vmem:[%s1092 + $0x148] sm:$0xff]
    %v1135 = vld [vmem:[%s1092 + $0x150] sm:$0xff]
    %v1136 = vld [vmem:[%s1092 + $0x158] sm:$0xff]
    %v1137 = vld [vmem:[%s1092 + $0x160] sm:$0xff]
    %v1138 = vld [vmem:[%s1092 + $0x168] sm:$0xff]
    %v1139 = vld [vmem:[%s1092 + $0x170] sm:$0xff]
    %v1140 = vld [vmem:[%s1092 + $0x178] sm:$0xff]
    %v1141 = vld [vmem:[%s1092 + $0x180] sm:$0xff]
    %v1142 = vld [vmem:[%s1092 + $0x188] sm:$0xff]
    %v1143 = vld [vmem:[%s1092 + $0x190] sm:$0xff]
    %v1144 = vld [vmem:[%s1092 + $0x198] sm:$0xff]
    %v1145 = vld [vmem:[%s1092 + $0x1a0] sm:$0xff]
    %v1146 = vld [vmem:[%s1092 + $0x1a8] sm:$0xff]
    %v1147 = vld [vmem:[%s1092 + $0x1b0] sm:$0xff]
    %v1148 = vld [vmem:[%s1092 + $0x1b8] sm:$0xff]
    %v1149 = vld [vmem:[%s1092 + $0x1c0] sm:$0xff]
    %v1150 = vld [vmem:[%s1092 + $0x1c8] sm:$0xff]
    %v1151 = vld [vmem:[%s1092 + $0x1d0] sm:$0xff]
    %v1152 = vld [vmem:[%s1092 + $0x1d8] sm:$0xff]
    %v1153 = vld [vmem:[%s1092 + $0x1e0] sm:$0xff]
    %v1154 = vld [vmem:[%s1092 + $0x1e8] sm:$0xff]
    %v1155 = vld [vmem:[%s1092 + $0x1f0] sm:$0xff]
    %v1156 = vld [vmem:[%s1092 + $0x1f8] sm:$0xff]
    %1157 = vmatprep.subr.mxu0 %v1094
    %1158 = vmatpush1.msra.mxu0 %v1093
    %1159 = vmatprep.subr.mxu0 %v1096
    %1160 = vmatpush1.msra.mxu0 %v1095
    %1161 = vmatprep.subr.mxu0 %v1098
    %1162 = vmatpush1.msra.mxu0 %v1097
    %1163 = vmatprep.subr.mxu0 %v1100
    %1164 = vmatpush1.msra.mxu0 %v1099
    %1165 = vmatprep.subr.mxu0 %v1102
    %1166 = vmatpush1.msra.mxu0 %v1101
    %1167 = vmatprep.subr.mxu0 %v1104
    %1168 = vmatpush1.msra.mxu0 %v1103
    %1169 = vmatprep.subr.mxu0 %v1106
    %1170 = vmatpush1.msra.mxu0 %v1105
    %1171 = vmatprep.subr.mxu0 %v1108
    %1172 = vmatpush1.msra.mxu0 %v1107
    %1173 = vmatprep.subr.mxu0 %v1110
    %1174 = vmatpush1.msra.mxu0 %v1109
    %1175 = vmatprep.subr.mxu0 %v1112
    %1176 = vmatpush1.msra.mxu0 %v1111
    %1177 = vmatprep.subr.mxu0 %v1114
    %1178 = vmatpush1.msra.mxu0 %v1113
    %1179 = vmatprep.subr.mxu0 %v1116
    %1180 = vmatpush1.msra.mxu0 %v1115
    %1181 = vmatprep.subr.mxu0 %v1118
    %1182 = vmatpush1.msra.mxu0 %v1117
    %1183 = vmatprep.subr.mxu0 %v1120
    %1184 = vmatpush1.msra.mxu0 %v1119
    %1185 = vmatprep.subr.mxu0 %v1122
    %1186 = vmatpush1.msra.mxu0 %v1121
    %1187 = vmatprep.subr.mxu0 %v1124
    %1188 = vmatpush1.msra.mxu0 %v1123
    %1189 = vmatprep.subr.mxu0 %v1126
    %1190 = vmatpush1.msra.mxu0 %v1125
    %1191 = vmatprep.subr.mxu0 %v1128
    %1192 = vmatpush1.msra.mxu0 %v1127
    %1193 = vmatprep.subr.mxu0 %v1130
    %1194 = vmatpush1.msra.mxu0 %v1129
    %1195 = vmatprep.subr.mxu0 %v1132
    %1196 = vmatpush1.msra.mxu0 %v1131
    %1197 = vmatprep.subr.mxu0 %v1134
    %1198 = vmatpush1.msra.mxu0 %v1133
    %1199 = vmatprep.subr.mxu0 %v1136
    %1200 = vmatpush1.msra.mxu0 %v1135
    %1201 = vmatprep.subr.mxu0 %v1138
    %1202 = vmatpush1.msra.mxu0 %v1137
    %1203 = vmatprep.subr.mxu0 %v1140
    %1204 = vmatpush1.msra.mxu0 %v1139
    %1205 = vmatprep.subr.mxu0 %v1142
    %1206 = vmatpush1.msra.mxu0 %v1141
    %1207 = vmatprep.subr.mxu0 %v1144
    %1208 = vmatpush1.msra.mxu0 %v1143
    %1209 = vmatprep.subr.mxu0 %v1146
    %1210 = vmatpush1.msra.mxu0 %v1145
    %1211 = vmatprep.subr.mxu0 %v1148
    %1212 = vmatpush1.msra.mxu0 %v1147
    %1213 = vmatprep.subr.mxu0 %v1150
    %1214 = vmatpush1.msra.mxu0 %v1149
    %1215 = vmatprep.subr.mxu0 %v1152
    %1216 = vmatpush1.msra.mxu0 %v1151
    %1217 = vmatprep.subr.mxu0 %v1154
    %1218 = vmatpush1.msra.mxu0 %v1153
    %1219 = vmatprep.subr.mxu0 %v1156
    %1220 = vmatpush1.msra.mxu0 %v1155
    %1221 = vmatprep.mubr.f32.mxu0 %v1069
    %1222 = vmatmul.mubr.f32.gmra.mrb[0].mxu0 %v1066
    %v1223 = vpop.f32.mrb[0].mxu0
    %v1224 = vadd.f32 0.0, %v1223
    %v1225 = vpop.f32.mrb[0].mxu0
    %v1226 = vadd.f32 0.0, %v1225
    %1227 = vmatprep.mubr.f32.mxu0 %v1073
    %1228 = vmatmul.mubr.f32.gmra.mrb[0].mxu0 %v1071
    %v1229 = vpop.f32.mrb[0].mxu0
    %v1230 = vadd.f32 0.0, %v1229
    %v1231 = vpop.f32.mrb[0].mxu0
    %v1232 = vadd.f32 0.0, %v1231
    %1233 = vmatprep.mubr.f32.mxu0 %v1079
    %1234 = vmatmul.mubr.f32.gmra.mrb[0].mxu0 %v1076
    %v1235 = vpop.f32.mrb[0].mxu0
    %v1236 = vadd.f32 0.0, %v1235
    %v1237 = vpop.f32.mrb[0].mxu0
    %v1238 = vadd.f32 0.0, %v1237
    %1239 = vmatprep.mubr.f32.mxu0 %v1083
    %1240 = vmatmul.mubr.f32.gmra.mrb[0].mxu0 %v1081
    %v1241 = vpop.f32.mrb[0].mxu0
    %v1242 = vadd.f32 0.0, %v1241
    %v1243 = vpop.f32.mrb[0].mxu0
    %v1244 = vadd.f32 0.0, %v1243
    %1245 = vdwg.mxu0
    %v1246 = vadd.f32 %v1018, %v1224
    %v1247 = vadd.f32 %v1020, %v1226
    %v1248 = vadd.f32 %v1024, %v1230
    %v1249 = vadd.f32 %v1026, %v1232
    %v1250 = vadd.f32 %v1030, %v1236
    %v1251 = vadd.f32 %v1032, %v1238
    %v1252 = vadd.f32 %v1036, %v1242
    %v1253 = vadd.f32 %v1038, %v1244
    %v1254 = vmax.f32 %v1246, 0.0
    %v1255 = vmax.f32 %v1247, 0.0
    %v1256 = vmax.f32 %v1248, 0.0
    %v1257 = vmax.f32 %v1249, 0.0
    %v1258 = vmax.f32 %v1250, 0.0
    %v1259 = vmax.f32 %v1251, 0.0
    %v1260 = vmax.f32 %v1252, 0.0
    %v1261 = vmax.f32 %v1253, 0.0
    %v1262 = vadd.f32 %v1254, %v1256
    %v1263 = vadd.f32 %v1262, %v1258
    %v1264 = vadd.f32 %v1263, %v1260
    %v1265 = vrot.slane %v1264, 4
    %v1266 = vadd.f32 %v1264, %v1265
    %v1267 = vrot.slane %v1266, 2
    %v1268 = vadd.f32 %v1266, %v1267
    %v1269 = vrot.slane %v1268, 1
    %v1270 = vadd.f32 %v1268, %v1269
    %v1271 = vadd.f32 %v1255, %v1257
    %v1272 = vadd.f32 %v1271, %v1259
    %v1273 = vadd.f32 %v1272, %v1261
    %v1274 = vrot.slane %v1273, 4
    %v1275 = vadd.f32 %v1273, %v1274
    %v1276 = vrot.slane %v1275, 2
    %v1277 = vadd.f32 %v1275, %v1276
    %v1278 = vrot.slane %v1277, 1
    %v1279 = vadd.f32 %v1277, %v1278
    %1280 = vrot.lane.b32.xlu0 %v1270, 16
    %v1281 = vpop.permute.xlu0 %1280
    %1282 = vrot.lane.b32.xlu0 %v1279, 16
    %v1283 = vpop.permute.xlu0 %1282
    %v1284 = vlaneseq
    %v1285 = vand.u32 %v1284, 127
    %vm1286 = vcmp.lt.s32.totalorder %v1285, 16
    %v1287 = vsel %vm1286, %v1281, %v1283
    %v1288 = vsel %vm1286, %v1283, %v1281
    %v1289 = vadd.f32 %v1270, %v1288
    %v1290 = vadd.f32 %v1279, %v1287
    %1291 = vrot.lane.b32.xlu0 %v1289, 32
    %v1292 = vpop.permute.xlu0 %1291
    %1293 = vrot.lane.b32.xlu0 %v1290, 32
    %v1294 = vpop.permute.xlu0 %1293
    %vm1295 = vcmp.lt.s32.totalorder %v1285, 32
    %v1296 = vsel %vm1295, %v1292, %v1294
    %v1297 = vsel %vm1295, %v1294, %v1292
    %v1298 = vadd.f32 %v1289, %v1297
    %v1299 = vadd.f32 %v1290, %v1296
    %1300 = vrot.lane.b32.xlu0 %v1298, 64
    %v1301 = vpop.permute.xlu0 %1300
    %1302 = vrot.lane.b32.xlu0 %v1299, 64
    %v1303 = vpop.permute.xlu0 %1302
    %vm1304 = vcmp.lt.s32.totalorder %v1285, 64
    %v1305 = vsel %vm1304, %v1301, %v1303
    %v1306 = vsel %vm1304, %v1303, %v1301
    %v1307 = vadd.f32 %v1298, %v1306
    %v1308 = vadd.f32 %v1299, %v1305
    %v1309 = vadd.f32 %v1307, %v1308
    %v1310 = vmul.f32 %v1309, 0.001953125
    %v1311 = vlaneseq
    %v1312 = vshrl.u32 %v1311, 7
    %v1313 = vsub.s32 0, %v1312
    %v1314 = vrot.slane %v1310, %v1313
    %v1315 = vsub.f32 %v1254, %v1314
    %v1316 = vsub.f32 %v1255, %v1314
    %v1317 = vsub.f32 %v1256, %v1314
    %v1318 = vsub.f32 %v1257, %v1314
    %v1319 = vsub.f32 %v1258, %v1314
    %v1320 = vsub.f32 %v1259, %v1314
    %v1321 = vsub.f32 %v1260, %v1314
    %v1322 = vsub.f32 %v1261, %v1314
    %v1323 = vmul.f32 %v1315, %v1315
    %v1324 = vmul.f32 %v1316, %v1316
    %v1325 = vmul.f32 %v1317, %v1317
    %v1326 = vmul.f32 %v1318, %v1318
    %v1327 = vmul.f32 %v1319, %v1319
    %v1328 = vmul.f32 %v1320, %v1320
    %v1329 = vmul.f32 %v1321, %v1321
    %v1330 = vmul.f32 %v1322, %v1322
    %v1331 = vadd.f32 %v1323, %v1325
    %v1332 = vadd.f32 %v1331, %v1327
    %v1333 = vadd.f32 %v1332, %v1329
    %v1334 = vrot.slane %v1333, 4
    %v1335 = vadd.f32 %v1333, %v1334
    %v1336 = vrot.slane %v1335, 2
    %v1337 = vadd.f32 %v1335, %v1336
    %v1338 = vrot.slane %v1337, 1
    %v1339 = vadd.f32 %v1337, %v1338
    %v1340 = vadd.f32 %v1324, %v1326
    %v1341 = vadd.f32 %v1340, %v1328
    %v1342 = vadd.f32 %v1341, %v1330
    %v1343 = vrot.slane %v1342, 4
    %v1344 = vadd.f32 %v1342, %v1343
    %v1345 = vrot.slane %v1344, 2
    %v1346 = vadd.f32 %v1344, %v1345
    %v1347 = vrot.slane %v1346, 1
    %v1348 = vadd.f32 %v1346, %v1347
    %1349 = vrot.lane.b32.xlu0 %v1339, 16
    %v1350 = vpop.permute.xlu0 %1349
    %1351 = vrot.lane.b32.xlu0 %v1348, 16
    %v1352 = vpop.permute.xlu0 %1351
    %v1353 = vsel %vm1286, %v1350, %v1352
    %v1354 = vsel %vm1286, %v1352, %v1350
    %v1355 = vadd.f32 %v1339, %v1354
    %v1356 = vadd.f32 %v1348, %v1353
    %1357 = vrot.lane.b32.xlu0 %v1355, 32
    %v1358 = vpop.permute.xlu0 %1357
    %1359 = vrot.lane.b32.xlu0 %v1356, 32
    %v1360 = vpop.permute.xlu0 %1359
    %v1361 = vsel %vm1295, %v1358, %v1360
    %v1362 = vsel %vm1295, %v1360, %v1358
    %v1363 = vadd.f32 %v1355, %v1362
    %v1364 = vadd.f32 %v1356, %v1361
    %1365 = vrot.lane.b32.xlu0 %v1363, 64
    %v1366 = vpop.permute.xlu0 %1365
    %1367 = vrot.lane.b32.xlu0 %v1364, 64
    %v1368 = vpop.permute.xlu0 %1367
    %v1369 = vsel %vm1304, %v1366, %v1368
    %v1370 = vsel %vm1304, %v1368, %v1366
    %v1371 = vadd.f32 %v1363, %v1370
    %v1372 = vadd.f32 %v1364, %v1369
    %v1373 = vadd.f32 %v1371, %v1372
    %v1374 = vmul.f32 %v1373, 0.001953125
    %v1375 = vadd.f32 %v1374, 1e-05
    %v1376 = vrsqrt.pop %v1375
    %v1377 = vlaneseq
    %v1378 = vshrl.u32 %v1377, 7
    %v1379 = vsub.s32 0, %v1378
    %v1380 = vrot.slane %v1376, %v1379
    %v1381 = vmul.f32 %v1315, %v1380
    %v1382 = vmul.f32 %v1316, %v1380
    %v1383 = vmul.f32 %v1317, %v1380
    %v1384 = vmul.f32 %v1318, %v1380
    %v1385 = vmul.f32 %v1319, %v1380
    %v1386 = vmul.f32 %v1320, %v1380
    %v1387 = vmul.f32 %v1321, %v1380
    %v1388 = vmul.f32 %v1322, %v1380
    %1389 = vst [vmem:[#allocation2 + $0x10] sm:$0xff] %v1381
    %1390 = vst [vmem:[#allocation2 + $0x18] sm:$0xff] %v1382
    %1391 = vst [vmem:[#allocation2 + $0x20] sm:$0xff] %v1383
    %1392 = vst [vmem:[#allocation2 + $0x28] sm:$0xff] %v1384
    %1393 = vst [vmem:[#allocation2 + $0x50] sm:$0xff] %v1385
    %1394 = vst [vmem:[#allocation2 + $0x58] sm:$0xff] %v1386
    %1395 = vst [vmem:[#allocation2 + $0x60] sm:$0xff] %v1387
    %1396 = vst [vmem:[#allocation2 + $0x68] sm:$0xff] %v1388
    %v1397 = vld [vmem:[#allocation2] sm:$0x80]
    %v1398 = vld [vmem:[#allocation2 + $0x8] sm:$0x80]
    %v1399 = vld [vmem:[#allocation2 + $0x10] sm:$0xff]
    %v1400 = vld [vmem:[#allocation2 + $0x18] sm:$0xff]
    %v1401 = vld [vmem:[#allocation2 + $0x20] sm:$0x7f]
    %v1402 = vld [vmem:[#allocation2 + $0x28] sm:$0x7f]
    %v1403 = vld [vmem:[#allocation2 + $0x40] sm:$0x80]
    %v1404 = vld [vmem:[#allocation2 + $0x48] sm:$0x80]
    %v1405 = vld [vmem:[#allocation2 + $0x50] sm:$0xff]
    %v1406 = vld [vmem:[#allocation2 + $0x58] sm:$0xff]
    %v1407 = vld [vmem:[#allocation2 + $0x60] sm:$0x7f]
    %v1408 = vld [vmem:[#allocation2 + $0x68] sm:$0x7f]
    %v1421 = vrot.slane %v1397, 7
    %v1422 = vrot.slane %v1399, 7
    %v1423 = vsel %vm105, %v1421, %v1422
    %v1424 = vrot.slane %v1398, 7
    %v1425 = vrot.slane %v1400, 7
    %v1426 = vsel %vm105, %v1424, %v1425
    %v1427 = vrot.slane %v1401, 7
    %v1428 = vsel %vm105, %v1422, %v1427
    %v1429 = vrot.slane %v1402, 7
    %v1430 = vsel %vm105, %v1425, %v1429
    %v1431 = vrot.slane %v1403, 7
    %v1432 = vrot.slane %v1405, 7
    %v1433 = vsel %vm105, %v1431, %v1432
    %v1434 = vrot.slane %v1404, 7
    %v1435 = vrot.slane %v1406, 7
    %v1436 = vsel %vm105, %v1434, %v1435
    %v1437 = vrot.slane %v1407, 7
    %v1438 = vsel %vm105, %v1432, %v1437
    %v1439 = vrot.slane %v1408, 7
    %v1440 = vsel %vm105, %v1435, %v1439
    %s1449 = scalar_lea.vmem [#allocation6], 3072
    %v1450 = vld [vmem:[%s1449] sm:$0xff]
    %v1451 = vld [vmem:[%s1449 + $0x8] sm:$0xff]
    %v1452 = vld [vmem:[%s1449 + $0x10] sm:$0xff]
    %v1453 = vld [vmem:[%s1449 + $0x18] sm:$0xff]
    %v1454 = vld [vmem:[%s1449 + $0x20] sm:$0xff]
    %v1455 = vld [vmem:[%s1449 + $0x28] sm:$0xff]
    %v1456 = vld [vmem:[%s1449 + $0x30] sm:$0xff]
    %v1457 = vld [vmem:[%s1449 + $0x38] sm:$0xff]
    %v1458 = vld [vmem:[%s1449 + $0x40] sm:$0xff]
    %v1459 = vld [vmem:[%s1449 + $0x48] sm:$0xff]
    %v1460 = vld [vmem:[%s1449 + $0x50] sm:$0xff]
    %v1461 = vld [vmem:[%s1449 + $0x58] sm:$0xff]
    %v1462 = vld [vmem:[%s1449 + $0x60] sm:$0xff]
    %v1463 = vld [vmem:[%s1449 + $0x68] sm:$0xff]
    %v1464 = vld [vmem:[%s1449 + $0x70] sm:$0xff]
    %v1465 = vld [vmem:[%s1449 + $0x78] sm:$0xff]
    %v1466 = vld [vmem:[%s1449 + $0x80] sm:$0xff]
    %v1467 = vld [vmem:[%s1449 + $0x88] sm:$0xff]
    %v1468 = vld [vmem:[%s1449 + $0x90] sm:$0xff]
    %v1469 = vld [vmem:[%s1449 + $0x98] sm:$0xff]
    %v1470 = vld [vmem:[%s1449 + $0xa0] sm:$0xff]
    %v1471 = vld [vmem:[%s1449 + $0xa8] sm:$0xff]
    %v1472 = vld [vmem:[%s1449 + $0xb0] sm:$0xff]
    %v1473 = vld [vmem:[%s1449 + $0xb8] sm:$0xff]
    %v1474 = vld [vmem:[%s1449 + $0xc0] sm:$0xff]
    %v1475 = vld [vmem:[%s1449 + $0xc8] sm:$0xff]
    %v1476 = vld [vmem:[%s1449 + $0xd0] sm:$0xff]
    %v1477 = vld [vmem:[%s1449 + $0xd8] sm:$0xff]
    %v1478 = vld [vmem:[%s1449 + $0xe0] sm:$0xff]
    %v1479 = vld [vmem:[%s1449 + $0xe8] sm:$0xff]
    %v1480 = vld [vmem:[%s1449 + $0xf0] sm:$0xff]
    %v1481 = vld [vmem:[%s1449 + $0xf8] sm:$0xff]
    %v1482 = vld [vmem:[%s1449 + $0x100] sm:$0xff]
    %v1483 = vld [vmem:[%s1449 + $0x108] sm:$0xff]
    %v1484 = vld [vmem:[%s1449 + $0x110] sm:$0xff]
    %v1485 = vld [vmem:[%s1449 + $0x118] sm:$0xff]
    %v1486 = vld [vmem:[%s1449 + $0x120] sm:$0xff]
    %v1487 = vld [vmem:[%s1449 + $0x128] sm:$0xff]
    %v1488 = vld [vmem:[%s1449 + $0x130] sm:$0xff]
    %v1489 = vld [vmem:[%s1449 + $0x138] sm:$0xff]
    %v1490 = vld [vmem:[%s1449 + $0x140] sm:$0xff]
    %v1491 = vld [vmem:[%s1449 + $0x148] sm:$0xff]
    %v1492 = vld [vmem:[%s1449 + $0x150] sm:$0xff]
    %v1493 = vld [vmem:[%s1449 + $0x158] sm:$0xff]
    %v1494 = vld [vmem:[%s1449 + $0x160] sm:$0xff]
    %v1495 = vld [vmem:[%s1449 + $0x168] sm:$0xff]
    %v1496 = vld [vmem:[%s1449 + $0x170] sm:$0xff]
    %v1497 = vld [vmem:[%s1449 + $0x178] sm:$0xff]
    %v1498 = vld [vmem:[%s1449 + $0x180] sm:$0xff]
    %v1499 = vld [vmem:[%s1449 + $0x188] sm:$0xff]
    %v1500 = vld [vmem:[%s1449 + $0x190] sm:$0xff]
    %v1501 = vld [vmem:[%s1449 + $0x198] sm:$0xff]
    %v1502 = vld [vmem:[%s1449 + $0x1a0] sm:$0xff]
    %v1503 = vld [vmem:[%s1449 + $0x1a8] sm:$0xff]
    %v1504 = vld [vmem:[%s1449 + $0x1b0] sm:$0xff]
    %v1505 = vld [vmem:[%s1449 + $0x1b8] sm:$0xff]
    %v1506 = vld [vmem:[%s1449 + $0x1c0] sm:$0xff]
    %v1507 = vld [vmem:[%s1449 + $0x1c8] sm:$0xff]
    %v1508 = vld [vmem:[%s1449 + $0x1d0] sm:$0xff]
    %v1509 = vld [vmem:[%s1449 + $0x1d8] sm:$0xff]
    %v1510 = vld [vmem:[%s1449 + $0x1e0] sm:$0xff]
    %v1511 = vld [vmem:[%s1449 + $0x1e8] sm:$0xff]
    %v1512 = vld [vmem:[%s1449 + $0x1f0] sm:$0xff]
    %v1513 = vld [vmem:[%s1449 + $0x1f8] sm:$0xff]
    %v1514 = vld [vmem:[#allocation2 + $0x20] sm:$0xff]
    %v1515 = vld [vmem:[#allocation2 + $0x28] sm:$0xff]
    %v1516 = vld [vmem:[#allocation2 + $0x60] sm:$0xff]
    %v1517 = vld [vmem:[#allocation2 + $0x68] sm:$0xff]
    %s1518 = scalar_lea.vmem [#allocation6], 3584
    %v1519 = vld [vmem:[%s1518] sm:$0xff]
    %v1520 = vld [vmem:[%s1518 + $0x8] sm:$0xff]
    %v1521 = vld [vmem:[%s1518 + $0x10] sm:$0xff]
    %v1522 = vld [vmem:[%s1518 + $0x18] sm:$0xff]
    %v1523 = vld [vmem:[%s1518 + $0x20] sm:$0xff]
    %v1524 = vld [vmem:[%s1518 + $0x28] sm:$0xff]
    %v1525 = vld [vmem:[%s1518 + $0x30] sm:$0xff]
    %v1526 = vld [vmem:[%s1518 + $0x38] sm:$0xff]
    %v1527 = vld [vmem:[%s1518 + $0x40] sm:$0xff]
    %v1528 = vld [vmem:[%s1518 + $0x48] sm:$0xff]
    %v1529 = vld [vmem:[%s1518 + $0x50] sm:$0xff]
    %v1530 = vld [vmem:[%s1518 + $0x58] sm:$0xff]
    %v1531 = vld [vmem:[%s1518 + $0x60] sm:$0xff]
    %v1532 = vld [vmem:[%s1518 + $0x68] sm:$0xff]
    %v1533 = vld [vmem:[%s1518 + $0x70] sm:$0xff]
    %v1534 = vld [vmem:[%s1518 + $0x78] sm:$0xff]
    %v1535 = vld [vmem:[%s1518 + $0x80] sm:$0xff]
    %v1536 = vld [vmem:[%s1518 + $0x88] sm:$0xff]
    %v1537 = vld [vmem:[%s1518 + $0x90] sm:$0xff]
    %v1538 = vld [vmem:[%s1518 + $0x98] sm:$0xff]
    %v1539 = vld [vmem:[%s1518 + $0xa0] sm:$0xff]
    %v1540 = vld [vmem:[%s1518 + $0xa8] sm:$0xff]
    %v1541 = vld [vmem:[%s1518 + $0xb0] sm:$0xff]
    %v1542 = vld [vmem:[%s1518 + $0xb8] sm:$0xff]
    %v1543 = vld [vmem:[%s1518 + $0xc0] sm:$0xff]
    %v1544 = vld [vmem:[%s1518 + $0xc8] sm:$0xff]
    %v1545 = vld [vmem:[%s1518 + $0xd0] sm:$0xff]
    %v1546 = vld [vmem:[%s1518 + $0xd8] sm:$0xff]
    %v1547 = vld [vmem:[%s1518 + $0xe0] sm:$0xff]
    %v1548 = vld [vmem:[%s1518 + $0xe8] sm:$0xff]
    %v1549 = vld [vmem:[%s1518 + $0xf0] sm:$0xff]
    %v1550 = vld [vmem:[%s1518 + $0xf8] sm:$0xff]
    %v1551 = vld [vmem:[%s1518 + $0x100] sm:$0xff]
    %v1552 = vld [vmem:[%s1518 + $0x108] sm:$0xff]
    %v1553 = vld [vmem:[%s1518 + $0x110] sm:$0xff]
    %v1554 = vld [vmem:[%s1518 + $0x118] sm:$0xff]
    %v1555 = vld [vmem:[%s1518 + $0x120] sm:$0xff]
    %v1556 = vld [vmem:[%s1518 + $0x128] sm:$0xff]
    %v1557 = vld [vmem:[%s1518 + $0x130] sm:$0xff]
    %v1558 = vld [vmem:[%s1518 + $0x138] sm:$0xff]
    %v1559 = vld [vmem:[%s1518 + $0x140] sm:$0xff]
    %v1560 = vld [vmem:[%s1518 + $0x148] sm:$0xff]
    %v1561 = vld [vmem:[%s1518 + $0x150] sm:$0xff]
    %v1562 = vld [vmem:[%s1518 + $0x158] sm:$0xff]
    %v1563 = vld [vmem:[%s1518 + $0x160] sm:$0xff]
    %v1564 = vld [vmem:[%s1518 + $0x168] sm:$0xff]
    %v1565 = vld [vmem:[%s1518 + $0x170] sm:$0xff]
    %v1566 = vld [vmem:[%s1518 + $0x178] sm:$0xff]
    %v1567 = vld [vmem:[%s1518 + $0x180] sm:$0xff]
    %v1568 = vld [vmem:[%s1518 + $0x188] sm:$0xff]
    %v1569 = vld [vmem:[%s1518 + $0x190] sm:$0xff]
    %v1570 = vld [vmem:[%s1518 + $0x198] sm:$0xff]
    %v1571 = vld [vmem:[%s1518 + $0x1a0] sm:$0xff]
    %v1572 = vld [vmem:[%s1518 + $0x1a8] sm:$0xff]
    %v1573 = vld [vmem:[%s1518 + $0x1b0] sm:$0xff]
    %v1574 = vld [vmem:[%s1518 + $0x1b8] sm:$0xff]
    %v1575 = vld [vmem:[%s1518 + $0x1c0] sm:$0xff]
    %v1576 = vld [vmem:[%s1518 + $0x1c8] sm:$0xff]
    %v1577 = vld [vmem:[%s1518 + $0x1d0] sm:$0xff]
    %v1578 = vld [vmem:[%s1518 + $0x1d8] sm:$0xff]
    %v1579 = vld [vmem:[%s1518 + $0x1e0] sm:$0xff]
    %v1580 = vld [vmem:[%s1518 + $0x1e8] sm:$0xff]
    %v1581 = vld [vmem:[%s1518 + $0x1f0] sm:$0xff]
    %v1582 = vld [vmem:[%s1518 + $0x1f8] sm:$0xff]
    %1583 = vmatprep.subr.mxu0 %v1520
    %1584 = vmatpush1.msra.mxu0 %v1519
    %1585 = vmatprep.subr.mxu0 %v1522
    %1586 = vmatpush1.msra.mxu0 %v1521
    %1587 = vmatprep.subr.mxu0 %v1524
    %1588 = vmatpush1.msra.mxu0 %v1523
    %1589 = vmatprep.subr.mxu0 %v1526
    %1590 = vmatpush1.msra.mxu0 %v1525
    %1591 = vmatprep.subr.mxu0 %v1528
    %1592 = vmatpush1.msra.mxu0 %v1527
    %1593 = vmatprep.subr.mxu0 %v1530
    %1594 = vmatpush1.msra.mxu0 %v1529
    %1595 = vmatprep.subr.mxu0 %v1532
    %1596 = vmatpush1.msra.mxu0 %v1531
    %1597 = vmatprep.subr.mxu0 %v1534
    %1598 = vmatpush1.msra.mxu0 %v1533
    %1599 = vmatprep.subr.mxu0 %v1536
    %1600 = vmatpush1.msra.mxu0 %v1535
    %1601 = vmatprep.subr.mxu0 %v1538
    %1602 = vmatpush1.msra.mxu0 %v1537
    %1603 = vmatprep.subr.mxu0 %v1540
    %1604 = vmatpush1.msra.mxu0 %v1539
    %1605 = vmatprep.subr.mxu0 %v1542
    %1606 = vmatpush1.msra.mxu0 %v1541
    %1607 = vmatprep.subr.mxu0 %v1544
    %1608 = vmatpush1.msra.mxu0 %v1543
    %1609 = vmatprep.subr.mxu0 %v1546
    %1610 = vmatpush1.msra.mxu0 %v1545
    %1611 = vmatprep.subr.mxu0 %v1548
    %1612 = vmatpush1.msra.mxu0 %v1547
    %1613 = vmatprep.subr.mxu0 %v1550
    %1614 = vmatpush1.msra.mxu0 %v1549
    %1615 = vmatprep.subr.mxu0 %v1552
    %1616 = vmatpush1.msra.mxu0 %v1551
    %1617 = vmatprep.subr.mxu0 %v1554
    %1618 = vmatpush1.msra.mxu0 %v1553
    %1619 = vmatprep.subr.mxu0 %v1556
    %1620 = vmatpush1.msra.mxu0 %v1555
    %1621 = vmatprep.subr.mxu0 %v1558
    %1622 = vmatpush1.msra.mxu0 %v1557
    %1623 = vmatprep.subr.mxu0 %v1560
    %1624 = vmatpush1.msra.mxu0 %v1559
    %1625 = vmatprep.subr.mxu0 %v1562
    %1626 = vmatpush1.msra.mxu0 %v1561
    %1627 = vmatprep.subr.mxu0 %v1564
    %1628 = vmatpush1.msra.mxu0 %v1563
    %1629 = vmatprep.subr.mxu0 %v1566
    %1630 = vmatpush1.msra.mxu0 %v1565
    %1631 = vmatprep.subr.mxu0 %v1568
    %1632 = vmatpush1.msra.mxu0 %v1567
    %1633 = vmatprep.subr.mxu0 %v1570
    %1634 = vmatpush1.msra.mxu0 %v1569
    %1635 = vmatprep.subr.mxu0 %v1572
    %1636 = vmatpush1.msra.mxu0 %v1571
    %1637 = vmatprep.subr.mxu0 %v1574
    %1638 = vmatpush1.msra.mxu0 %v1573
    %1639 = vmatprep.subr.mxu0 %v1576
    %1640 = vmatpush1.msra.mxu0 %v1575
    %1641 = vmatprep.subr.mxu0 %v1578
    %1642 = vmatpush1.msra.mxu0 %v1577
    %1643 = vmatprep.subr.mxu0 %v1580
    %1644 = vmatpush1.msra.mxu0 %v1579
    %1645 = vmatprep.subr.mxu0 %v1582
    %1646 = vmatpush1.msra.mxu0 %v1581
    %1647 = vmatprep.mubr.f32.mxu0 %v1400
    %1648 = vmatmul.mubr.f32.gmra.mrb[0].mxu0 %v1399
    %v1649 = vpop.f32.mrb[0].mxu0
    %v1650 = vadd.f32 0.0, %v1649
    %v1651 = vpop.f32.mrb[0].mxu0
    %v1652 = vadd.f32 0.0, %v1651
    %1653 = vmatprep.mubr.f32.mxu0 %v1515
    %1654 = vmatmul.mubr.f32.gmra.mrb[0].mxu0 %v1514
    %v1655 = vpop.f32.mrb[0].mxu0
    %v1656 = vadd.f32 0.0, %v1655
    %v1657 = vpop.f32.mrb[0].mxu0
    %v1658 = vadd.f32 0.0, %v1657
    %1659 = vmatprep.mubr.f32.mxu0 %v1406
    %1660 = vmatmul.mubr.f32.gmra.mrb[0].mxu0 %v1405
    %v1661 = vpop.f32.mrb[0].mxu0
    %v1662 = vadd.f32 0.0, %v1661
    %v1663 = vpop.f32.mrb[0].mxu0
    %v1664 = vadd.f32 0.0, %v1663
    %1665 = vmatprep.mubr.f32.mxu0 %v1517
    %1666 = vmatmul.mubr.f32.gmra.mrb[0].mxu0 %v1516
    %v1667 = vpop.f32.mrb[0].mxu0
    %v1668 = vadd.f32 0.0, %v1667
    %v1669 = vpop.f32.mrb[0].mxu0
    %v1670 = vadd.f32 0.0, %v1669
    %1671 = vdwg.mxu0
    %1672 = vmatprep.subr.mxu0 %v1451
    %1673 = vmatpush1.msra.mxu0 %v1450
    %1674 = vmatprep.subr.mxu0 %v1453
    %1675 = vmatpush1.msra.mxu0 %v1452
    %1676 = vmatprep.subr.mxu0 %v1455
    %1677 = vmatpush1.msra.mxu0 %v1454
    %1678 = vmatprep.subr.mxu0 %v1457
    %1679 = vmatpush1.msra.mxu0 %v1456
    %1680 = vmatprep.subr.mxu0 %v1459
    %1681 = vmatpush1.msra.mxu0 %v1458
    %1682 = vmatprep.subr.mxu0 %v1461
    %1683 = vmatpush1.msra.mxu0 %v1460
    %1684 = vmatprep.subr.mxu0 %v1463
    %1685 = vmatpush1.msra.mxu0 %v1462
    %1686 = vmatprep.subr.mxu0 %v1465
    %1687 = vmatpush1.msra.mxu0 %v1464
    %1688 = vmatprep.subr.mxu0 %v1467
    %1689 = vmatpush1.msra.mxu0 %v1466
    %1690 = vmatprep.subr.mxu0 %v1469
    %1691 = vmatpush1.msra.mxu0 %v1468
    %1692 = vmatprep.subr.mxu0 %v1471
    %1693 = vmatpush1.msra.mxu0 %v1470
    %1694 = vmatprep.subr.mxu0 %v1473
    %1695 = vmatpush1.msra.mxu0 %v1472
    %1696 = vmatprep.subr.mxu0 %v1475
    %1697 = vmatpush1.msra.mxu0 %v1474
    %1698 = vmatprep.subr.mxu0 %v1477
    %1699 = vmatpush1.msra.mxu0 %v1476
    %1700 = vmatprep.subr.mxu0 %v1479
    %1701 = vmatpush1.msra.mxu0 %v1478
    %1702 = vmatprep.subr.mxu0 %v1481
    %1703 = vmatpush1.msra.mxu0 %v1480
    %1704 = vmatprep.subr.mxu0 %v1483
    %1705 = vmatpush1.msra.mxu0 %v1482
    %1706 = vmatprep.subr.mxu0 %v1485
    %1707 = vmatpush1.msra.mxu0 %v1484
    %1708 = vmatprep.subr.mxu0 %v1487
    %1709 = vmatpush1.msra.mxu0 %v1486
    %1710 = vmatprep.subr.mxu0 %v1489
    %1711 = vmatpush1.msra.mxu0 %v1488
    %1712 = vmatprep.subr.mxu0 %v1491
    %1713 = vmatpush1.msra.mxu0 %v1490
    %1714 = vmatprep.subr.mxu0 %v1493
    %1715 = vmatpush1.msra.mxu0 %v1492
    %1716 = vmatprep.subr.mxu0 %v1495
    %1717 = vmatpush1.msra.mxu0 %v1494
    %1718 = vmatprep.subr.mxu0 %v1497
    %1719 = vmatpush1.msra.mxu0 %v1496
    %1720 = vmatprep.subr.mxu0 %v1499
    %1721 = vmatpush1.msra.mxu0 %v1498
    %1722 = vmatprep.subr.mxu0 %v1501
    %1723 = vmatpush1.msra.mxu0 %v1500
    %1724 = vmatprep.subr.mxu0 %v1503
    %1725 = vmatpush1.msra.mxu0 %v1502
    %1726 = vmatprep.subr.mxu0 %v1505
    %1727 = vmatpush1.msra.mxu0 %v1504
    %1728 = vmatprep.subr.mxu0 %v1507
    %1729 = vmatpush1.msra.mxu0 %v1506
    %1730 = vmatprep.subr.mxu0 %v1509
    %1731 = vmatpush1.msra.mxu0 %v1508
    %1732 = vmatprep.subr.mxu0 %v1511
    %1733 = vmatpush1.msra.mxu0 %v1510
    %1734 = vmatprep.subr.mxu0 %v1513
    %1735 = vmatpush1.msra.mxu0 %v1512
    %1736 = vmatprep.mubr.f32.mxu0 %v1426
    %1737 = vmatmul.mubr.f32.gmra.mrb[0].mxu0 %v1423
    %v1738 = vpop.f32.mrb[0].mxu0
    %v1739 = vadd.f32 %v1650, %v1738
    %v1740 = vpop.f32.mrb[0].mxu0
    %v1741 = vadd.f32 %v1652, %v1740
    %1742 = vmatprep.mubr.f32.mxu0 %v1430
    %1743 = vmatmul.mubr.f32.gmra.mrb[0].mxu0 %v1428
    %v1744 = vpop.f32.mrb[0].mxu0
    %v1745 = vadd.f32 %v1656, %v1744
    %v1746 = vpop.f32.mrb[0].mxu0
    %v1747 = vadd.f32 %v1658, %v1746
    %1748 = vmatprep.mubr.f32.mxu0 %v1436
    %1749 = vmatmul.mubr.f32.gmra.mrb[0].mxu0 %v1433
    %v1750 = vpop.f32.mrb[0].mxu0
    %v1751 = vadd.f32 %v1662, %v1750
    %v1752 = vpop.f32.mrb[0].mxu0
    %v1753 = vadd.f32 %v1664, %v1752
    %1754 = vmatprep.mubr.f32.mxu0 %v1440
    %1755 = vmatmul.mubr.f32.gmra.mrb[0].mxu0 %v1438
    %v1756 = vpop.f32.mrb[0].mxu0
    %v1757 = vadd.f32 %v1668, %v1756
    %v1758 = vpop.f32.mrb[0].mxu0
    %v1759 = vadd.f32 %v1670, %v1758
    %1760 = vdwg.mxu0
    %v1761 = vld [vmem:[#allocation2 + $0x10] sm:$0xfe]
    %v1762 = vld [vmem:[#allocation2 + $0x18] sm:$0xfe]
    %v1763 = vld [vmem:[#allocation2 + $0x20] sm:$0xff]
    %v1764 = vld [vmem:[#allocation2 + $0x28] sm:$0xff]
    %v1765 = vld [vmem:[#allocation2 + $0x30] sm:$0x1]
    %v1766 = vld [vmem:[#allocation2 + $0x38] sm:$0x1]
    %v1767 = vld [vmem:[#allocation2 + $0x50] sm:$0xfe]
    %v1768 = vld [vmem:[#allocation2 + $0x58] sm:$0xfe]
    %v1769 = vld [vmem:[#allocation2 + $0x60] sm:$0xff]
    %v1770 = vld [vmem:[#allocation2 + $0x68] sm:$0xff]
    %v1771 = vld [vmem:[#allocation2 + $0x70] sm:$0x1]
    %v1772 = vld [vmem:[#allocation2 + $0x78] sm:$0x1]
    %v1785 = vrot.slane %v1761, 1
    %v1786 = vrot.slane %v1763, 1
    %v1787 = vsel %vm469, %v1785, %v1786
    %v1788 = vrot.slane %v1762, 1
    %v1789 = vrot.slane %v1764, 1
    %v1790 = vsel %vm469, %v1788, %v1789
    %v1791 = vrot.slane %v1765, 1
    %v1792 = vsel %vm469, %v1786, %v1791
    %v1793 = vrot.slane %v1766, 1
    %v1794 = vsel %vm469, %v1789, %v1793
    %v1795 = vrot.slane %v1767, 1
    %v1796 = vrot.slane %v1769, 1
    %v1797 = vsel %vm469, %v1795, %v1796
    %v1798 = vrot.slane %v1768, 1
    %v1799 = vrot.slane %v1770, 1
    %v1800 = vsel %vm469, %v1798, %v1799
    %v1801 = vrot.slane %v1771, 1
    %v1802 = vsel %vm469, %v1796, %v1801
    %v1803 = vrot.slane %v1772, 1
    %v1804 = vsel %vm469, %v1799, %v1803
    %s1813 = scalar_lea.vmem [#allocation6], 4096
    %v1814 = vld [vmem:[%s1813] sm:$0xff]
    %v1815 = vld [vmem:[%s1813 + $0x8] sm:$0xff]
    %v1816 = vld [vmem:[%s1813 + $0x10] sm:$0xff]
    %v1817 = vld [vmem:[%s1813 + $0x18] sm:$0xff]
    %v1818 = vld [vmem:[%s1813 + $0x20] sm:$0xff]
    %v1819 = vld [vmem:[%s1813 + $0x28] sm:$0xff]
    %v1820 = vld [vmem:[%s1813 + $0x30] sm:$0xff]
    %v1821 = vld [vmem:[%s1813 + $0x38] sm:$0xff]
    %v1822 = vld [vmem:[%s1813 + $0x40] sm:$0xff]
    %v1823 = vld [vmem:[%s1813 + $0x48] sm:$0xff]
    %v1824 = vld [vmem:[%s1813 + $0x50] sm:$0xff]
    %v1825 = vld [vmem:[%s1813 + $0x58] sm:$0xff]
    %v1826 = vld [vmem:[%s1813 + $0x60] sm:$0xff]
    %v1827 = vld [vmem:[%s1813 + $0x68] sm:$0xff]
    %v1828 = vld [vmem:[%s1813 + $0x70] sm:$0xff]
    %v1829 = vld [vmem:[%s1813 + $0x78] sm:$0xff]
    %v1830 = vld [vmem:[%s1813 + $0x80] sm:$0xff]
    %v1831 = vld [vmem:[%s1813 + $0x88] sm:$0xff]
    %v1832 = vld [vmem:[%s1813 + $0x90] sm:$0xff]
    %v1833 = vld [vmem:[%s1813 + $0x98] sm:$0xff]
    %v1834 = vld [vmem:[%s1813 + $0xa0] sm:$0xff]
    %v1835 = vld [vmem:[%s1813 + $0xa8] sm:$0xff]
    %v1836 = vld [vmem:[%s1813 + $0xb0] sm:$0xff]
    %v1837 = vld [vmem:[%s1813 + $0xb8] sm:$0xff]
    %v1838 = vld [vmem:[%s1813 + $0xc0] sm:$0xff]
    %v1839 = vld [vmem:[%s1813 + $0xc8] sm:$0xff]
    %v1840 = vld [vmem:[%s1813 + $0xd0] sm:$0xff]
    %v1841 = vld [vmem:[%s1813 + $0xd8] sm:$0xff]
    %v1842 = vld [vmem:[%s1813 + $0xe0] sm:$0xff]
    %v1843 = vld [vmem:[%s1813 + $0xe8] sm:$0xff]
    %v1844 = vld [vmem:[%s1813 + $0xf0] sm:$0xff]
    %v1845 = vld [vmem:[%s1813 + $0xf8] sm:$0xff]
    %v1846 = vld [vmem:[%s1813 + $0x100] sm:$0xff]
    %v1847 = vld [vmem:[%s1813 + $0x108] sm:$0xff]
    %v1848 = vld [vmem:[%s1813 + $0x110] sm:$0xff]
    %v1849 = vld [vmem:[%s1813 + $0x118] sm:$0xff]
    %v1850 = vld [vmem:[%s1813 + $0x120] sm:$0xff]
    %v1851 = vld [vmem:[%s1813 + $0x128] sm:$0xff]
    %v1852 = vld [vmem:[%s1813 + $0x130] sm:$0xff]
    %v1853 = vld [vmem:[%s1813 + $0x138] sm:$0xff]
    %v1854 = vld [vmem:[%s1813 + $0x140] sm:$0xff]
    %v1855 = vld [vmem:[%s1813 + $0x148] sm:$0xff]
    %v1856 = vld [vmem:[%s1813 + $0x150] sm:$0xff]
    %v1857 = vld [vmem:[%s1813 + $0x158] sm:$0xff]
    %v1858 = vld [vmem:[%s1813 + $0x160] sm:$0xff]
    %v1859 = vld [vmem:[%s1813 + $0x168] sm:$0xff]
    %v1860 = vld [vmem:[%s1813 + $0x170] sm:$0xff]
    %v1861 = vld [vmem:[%s1813 + $0x178] sm:$0xff]
    %v1862 = vld [vmem:[%s1813 + $0x180] sm:$0xff]
    %v1863 = vld [vmem:[%s1813 + $0x188] sm:$0xff]
    %v1864 = vld [vmem:[%s1813 + $0x190] sm:$0xff]
    %v1865 = vld [vmem:[%s1813 + $0x198] sm:$0xff]
    %v1866 = vld [vmem:[%s1813 + $0x1a0] sm:$0xff]
    %v1867 = vld [vmem:[%s1813 + $0x1a8] sm:$0xff]
    %v1868 = vld [vmem:[%s1813 + $0x1b0] sm:$0xff]
    %v1869 = vld [vmem:[%s1813 + $0x1b8] sm:$0xff]
    %v1870 = vld [vmem:[%s1813 + $0x1c0] sm:$0xff]
    %v1871 = vld [vmem:[%s1813 + $0x1c8] sm:$0xff]
    %v1872 = vld [vmem:[%s1813 + $0x1d0] sm:$0xff]
    %v1873 = vld [vmem:[%s1813 + $0x1d8] sm:$0xff]
    %v1874 = vld [vmem:[%s1813 + $0x1e0] sm:$0xff]
    %v1875 = vld [vmem:[%s1813 + $0x1e8] sm:$0xff]
    %v1876 = vld [vmem:[%s1813 + $0x1f0] sm:$0xff]
    %v1877 = vld [vmem:[%s1813 + $0x1f8] sm:$0xff]
    %1878 = vmatprep.subr.mxu0 %v1815
    %1879 = vmatpush1.msra.mxu0 %v1814
    %1880 = vmatprep.subr.mxu0 %v1817
    %1881 = vmatpush1.msra.mxu0 %v1816
    %1882 = vmatprep.subr.mxu0 %v1819
    %1883 = vmatpush1.msra.mxu0 %v1818
    %1884 = vmatprep.subr.mxu0 %v1821
    %1885 = vmatpush1.msra.mxu0 %v1820
    %1886 = vmatprep.subr.mxu0 %v1823
    %1887 = vmatpush1.msra.mxu0 %v1822
    %1888 = vmatprep.subr.mxu0 %v1825
    %1889 = vmatpush1.msra.mxu0 %v1824
    %1890 = vmatprep.subr.mxu0 %v1827
    %1891 = vmatpush1.msra.mxu0 %v1826
    %1892 = vmatprep.subr.mxu0 %v1829
    %1893 = vmatpush1.msra.mxu0 %v1828
    %1894 = vmatprep.subr.mxu0 %v1831
    %1895 = vmatpush1.msra.mxu0 %v1830
    %1896 = vmatprep.subr.mxu0 %v1833
    %1897 = vmatpush1.msra.mxu0 %v1832
    %1898 = vmatprep.subr.mxu0 %v1835
    %1899 = vmatpush1.msra.mxu0 %v1834
    %1900 = vmatprep.subr.mxu0 %v1837
    %1901 = vmatpush1.msra.mxu0 %v1836
    %1902 = vmatprep.subr.mxu0 %v1839
    %1903 = vmatpush1.msra.mxu0 %v1838
    %1904 = vmatprep.subr.mxu0 %v1841
    %1905 = vmatpush1.msra.mxu0 %v1840
    %1906 = vmatprep.subr.mxu0 %v1843
    %1907 = vmatpush1.msra.mxu0 %v1842
    %1908 = vmatprep.subr.mxu0 %v1845
    %1909 = vmatpush1.msra.mxu0 %v1844
    %1910 = vmatprep.subr.mxu0 %v1847
    %1911 = vmatpush1.msra.mxu0 %v1846
    %1912 = vmatprep.subr.mxu0 %v1849
    %1913 = vmatpush1.msra.mxu0 %v1848
    %1914 = vmatprep.subr.mxu0 %v1851
    %1915 = vmatpush1.msra.mxu0 %v1850
    %1916 = vmatprep.subr.mxu0 %v1853
    %1917 = vmatpush1.msra.mxu0 %v1852
    %1918 = vmatprep.subr.mxu0 %v1855
    %1919 = vmatpush1.msra.mxu0 %v1854
    %1920 = vmatprep.subr.mxu0 %v1857
    %1921 = vmatpush1.msra.mxu0 %v1856
    %1922 = vmatprep.subr.mxu0 %v1859
    %1923 = vmatpush1.msra.mxu0 %v1858
    %1924 = vmatprep.subr.mxu0 %v1861
    %1925 = vmatpush1.msra.mxu0 %v1860
    %1926 = vmatprep.subr.mxu0 %v1863
    %1927 = vmatpush1.msra.mxu0 %v1862
    %1928 = vmatprep.subr.mxu0 %v1865
    %1929 = vmatpush1.msra.mxu0 %v1864
    %1930 = vmatprep.subr.mxu0 %v1867
    %1931 = vmatpush1.msra.mxu0 %v1866
    %1932 = vmatprep.subr.mxu0 %v1869
    %1933 = vmatpush1.msra.mxu0 %v1868
    %1934 = vmatprep.subr.mxu0 %v1871
    %1935 = vmatpush1.msra.mxu0 %v1870
    %1936 = vmatprep.subr.mxu0 %v1873
    %1937 = vmatpush1.msra.mxu0 %v1872
    %1938 = vmatprep.subr.mxu0 %v1875
    %1939 = vmatpush1.msra.mxu0 %v1874
    %1940 = vmatprep.subr.mxu0 %v1877
    %1941 = vmatpush1.msra.mxu0 %v1876
    %1942 = vmatprep.mubr.f32.mxu0 %v1790
    %1943 = vmatmul.mubr.f32.gmra.mrb[0].mxu0 %v1787
    %v1944 = vpop.f32.mrb[0].mxu0
    %v1945 = vadd.f32 0.0, %v1944
    %v1946 = vpop.f32.mrb[0].mxu0
    %v1947 = vadd.f32 0.0, %v1946
    %1948 = vmatprep.mubr.f32.mxu0 %v1794
    %1949 = vmatmul.mubr.f32.gmra.mrb[0].mxu0 %v1792
    %v1950 = vpop.f32.mrb[0].mxu0
    %v1951 = vadd.f32 0.0, %v1950
    %v1952 = vpop.f32.mrb[0].mxu0
    %v1953 = vadd.f32 0.0, %v1952
    %1954 = vmatprep.mubr.f32.mxu0 %v1800
    %1955 = vmatmul.mubr.f32.gmra.mrb[0].mxu0 %v1797
    %v1956 = vpop.f32.mrb[0].mxu0
    %v1957 = vadd.f32 0.0, %v1956
    %v1958 = vpop.f32.mrb[0].mxu0
    %v1959 = vadd.f32 0.0, %v1958
    %1960 = vmatprep.mubr.f32.mxu0 %v1804
    %1961 = vmatmul.mubr.f32.gmra.mrb[0].mxu0 %v1802
    %v1962 = vpop.f32.mrb[0].mxu0
    %v1963 = vadd.f32 0.0, %v1962
    %v1964 = vpop.f32.mrb[0].mxu0
    %v1965 = vadd.f32 0.0, %v1964
    %1966 = vdwg.mxu0
    %v1967 = vadd.f32 %v1739, %v1945
    %v1968 = vadd.f32 %v1741, %v1947
    %v1969 = vadd.f32 %v1745, %v1951
    %v1970 = vadd.f32 %v1747, %v1953
    %v1971 = vadd.f32 %v1751, %v1957
    %v1972 = vadd.f32 %v1753, %v1959
    %v1973 = vadd.f32 %v1757, %v1963
    %v1974 = vadd.f32 %v1759, %v1965
    %v1975 = vmax.f32 %v1967, 0.0
    %v1976 = vmax.f32 %v1968, 0.0
    %v1977 = vmax.f32 %v1969, 0.0
    %v1978 = vmax.f32 %v1970, 0.0
    %v1979 = vmax.f32 %v1971, 0.0
    %v1980 = vmax.f32 %v1972, 0.0
    %v1981 = vmax.f32 %v1973, 0.0
    %v1982 = vmax.f32 %v1974, 0.0
    %v1983 = vadd.f32 %v1975, %v660
    %v1984 = vadd.f32 %v1976, %v661
    %v1985 = vadd.f32 %v1977, %v662
    %v1986 = vadd.f32 %v1978, %v663
    %v1987 = vadd.f32 %v1979, %v664
    %v1988 = vadd.f32 %v1980, %v665
    %v1989 = vadd.f32 %v1981, %v666
    %v1990 = vadd.f32 %v1982, %v667
    %v1991 = vadd.f32 %v1983, %v1985
    %v1992 = vadd.f32 %v1991, %v1987
    %v1993 = vadd.f32 %v1992, %v1989
    %v1994 = vrot.slane %v1993, 4
    %v1995 = vadd.f32 %v1993, %v1994
    %v1996 = vrot.slane %v1995, 2
    %v1997 = vadd.f32 %v1995, %v1996
    %v1998 = vrot.slane %v1997, 1
    %v1999 = vadd.f32 %v1997, %v1998
    %v2000 = vadd.f32 %v1984, %v1986
    %v2001 = vadd.f32 %v2000, %v1988
    %v2002 = vadd.f32 %v2001, %v1990
    %v2003 = vrot.slane %v2002, 4
    %v2004 = vadd.f32 %v2002, %v2003
    %v2005 = vrot.slane %v2004, 2
    %v2006 = vadd.f32 %v2004, %v2005
    %v2007 = vrot.slane %v2006, 1
    %v2008 = vadd.f32 %v2006, %v2007
    %2009 = vrot.lane.b32.xlu0 %v1999, 16
    %v2010 = vpop.permute.xlu0 %2009
    %2011 = vrot.lane.b32.xlu0 %v2008, 16
    %v2012 = vpop.permute.xlu0 %2011
    %v2013 = vsel %vm1286, %v2010, %v2012
    %v2014 = vsel %vm1286, %v2012, %v2010
    %v2015 = vadd.f32 %v1999, %v2014
    %v2016 = vadd.f32 %v2008, %v2013
    %2017 = vrot.lane.b32.xlu0 %v2015, 32
    %v2018 = vpop.permute.xlu0 %2017
    %2019 = vrot.lane.b32.xlu0 %v2016, 32
    %v2020 = vpop.permute.xlu0 %2019
    %v2021 = vsel %vm1295, %v2018, %v2020
    %v2022 = vsel %vm1295, %v2020, %v2018
    %v2023 = vadd.f32 %v2015, %v2022
    %v2024 = vadd.f32 %v2016, %v2021
    %2025 = vrot.lane.b32.xlu0 %v2023, 64
    %v2026 = vpop.permute.xlu0 %2025
    %2027 = vrot.lane.b32.xlu0 %v2024, 64
    %v2028 = vpop.permute.xlu0 %2027
    %v2029 = vsel %vm1304, %v2026, %v2028
    %v2030 = vsel %vm1304, %v2028, %v2026
    %v2031 = vadd.f32 %v2023, %v2030
    %v2032 = vadd.f32 %v2024, %v2029
    %v2033 = vadd.f32 %v2031, %v2032
    %v2034 = vmul.f32 %v2033, 0.001953125
    %v2035 = vlaneseq
    %v2036 = vshrl.u32 %v2035, 7
    %v2037 = vsub.s32 0, %v2036
    %v2038 = vrot.slane %v2034, %v2037
    %v2039 = vsub.f32 %v1983, %v2038
    %v2040 = vsub.f32 %v1984, %v2038
    %v2041 = vsub.f32 %v1985, %v2038
    %v2042 = vsub.f32 %v1986, %v2038
    %v2043 = vsub.f32 %v1987, %v2038
    %v2044 = vsub.f32 %v1988, %v2038
    %v2045 = vsub.f32 %v1989, %v2038
    %v2046 = vsub.f32 %v1990, %v2038
    %v2047 = vmul.f32 %v2039, %v2039
    %v2048 = vmul.f32 %v2040, %v2040
    %v2049 = vmul.f32 %v2041, %v2041
    %v2050 = vmul.f32 %v2042, %v2042
    %v2051 = vmul.f32 %v2043, %v2043
    %v2052 = vmul.f32 %v2044, %v2044
    %v2053 = vmul.f32 %v2045, %v2045
    %v2054 = vmul.f32 %v2046, %v2046
    %v2055 = vadd.f32 %v2047, %v2049
    %v2056 = vadd.f32 %v2055, %v2051
    %v2057 = vadd.f32 %v2056, %v2053
    %v2058 = vrot.slane %v2057, 4
    %v2059 = vadd.f32 %v2057, %v2058
    %v2060 = vrot.slane %v2059, 2
    %v2061 = vadd.f32 %v2059, %v2060
    %v2062 = vrot.slane %v2061, 1
    %v2063 = vadd.f32 %v2061, %v2062
    %v2064 = vadd.f32 %v2048, %v2050
    %v2065 = vadd.f32 %v2064, %v2052
    %v2066 = vadd.f32 %v2065, %v2054
    %v2067 = vrot.slane %v2066, 4
    %v2068 = vadd.f32 %v2066, %v2067
    %v2069 = vrot.slane %v2068, 2
    %v2070 = vadd.f32 %v2068, %v2069
    %v2071 = vrot.slane %v2070, 1
    %v2072 = vadd.f32 %v2070, %v2071
    %2073 = vrot.lane.b32.xlu0 %v2063, 16
    %v2074 = vpop.permute.xlu0 %2073
    %2075 = vrot.lane.b32.xlu0 %v2072, 16
    %v2076 = vpop.permute.xlu0 %2075
    %v2077 = vsel %vm1286, %v2074, %v2076
    %v2078 = vsel %vm1286, %v2076, %v2074
    %v2079 = vadd.f32 %v2063, %v2078
    %v2080 = vadd.f32 %v2072, %v2077
    %2081 = vrot.lane.b32.xlu0 %v2079, 32
    %v2082 = vpop.permute.xlu0 %2081
    %2083 = vrot.lane.b32.xlu0 %v2080, 32
    %v2084 = vpop.permute.xlu0 %2083
    %v2085 = vsel %vm1295, %v2082, %v2084
    %v2086 = vsel %vm1295, %v2084, %v2082
    %v2087 = vadd.f32 %v2079, %v2086
    %v2088 = vadd.f32 %v2080, %v2085
    %2089 = vrot.lane.b32.xlu0 %v2087, 64
    %v2090 = vpop.permute.xlu0 %2089
    %2091 = vrot.lane.b32.xlu0 %v2088, 64
    %v2092 = vpop.permute.xlu0 %2091
    %v2093 = vsel %vm1304, %v2090, %v2092
    %v2094 = vsel %vm1304, %v2092, %v2090
    %v2095 = vadd.f32 %v2087, %v2094
    %v2096 = vadd.f32 %v2088, %v2093
    %v2097 = vadd.f32 %v2095, %v2096
    %v2098 = vmul.f32 %v2097, 0.001953125
    %v2099 = vadd.f32 %v2098, 1e-05
    %v2100 = vrsqrt.pop %v2099
    %v2101 = vlaneseq
    %v2102 = vshrl.u32 %v2101, 7
    %v2103 = vsub.s32 0, %v2102
    %v2104 = vrot.slane %v2100, %v2103
    %v2105 = vmul.f32 %v2039, %v2104
    %v2106 = vmul.f32 %v2040, %v2104
    %v2107 = vmul.f32 %v2041, %v2104
    %v2108 = vmul.f32 %v2042, %v2104
    %v2109 = vmul.f32 %v2043, %v2104
    %v2110 = vmul.f32 %v2044, %v2104
    %v2111 = vmul.f32 %v2045, %v2104
    %v2112 = vmul.f32 %v2046, %v2104
    %2113 = vst [vmem:[#allocation2 + $0x10] sm:$0xff] %v2105
    %2114 = vst [vmem:[#allocation2 + $0x18] sm:$0xff] %v2106
    %2115 = vst [vmem:[#allocation2 + $0x20] sm:$0xff] %v2107
    %2116 = vst [vmem:[#allocation2 + $0x28] sm:$0xff] %v2108
    %2117 = vst [vmem:[#allocation2 + $0x50] sm:$0xff] %v2109
    %2118 = vst [vmem:[#allocation2 + $0x58] sm:$0xff] %v2110
    %2119 = vst [vmem:[#allocation2 + $0x60] sm:$0xff] %v2111
    %2120 = vst [vmem:[#allocation2 + $0x68] sm:$0xff] %v2112
    %v2121 = vld [vmem:[#allocation2] sm:$0x80]
    %v2122 = vld [vmem:[#allocation2 + $0x8] sm:$0x80]
    %v2123 = vld [vmem:[#allocation2 + $0x10] sm:$0xff]
    %v2124 = vld [vmem:[#allocation2 + $0x18] sm:$0xff]
    %v2125 = vld [vmem:[#allocation2 + $0x20] sm:$0x7f]
    %v2126 = vld [vmem:[#allocation2 + $0x28] sm:$0x7f]
    %v2127 = vld [vmem:[#allocation2 + $0x40] sm:$0x80]
    %v2128 = vld [vmem:[#allocation2 + $0x48] sm:$0x80]
    %v2129 = vld [vmem:[#allocation2 + $0x50] sm:$0xff]
    %v2130 = vld [vmem:[#allocation2 + $0x58] sm:$0xff]
    %v2131 = vld [vmem:[#allocation2 + $0x60] sm:$0x7f]
    %v2132 = vld [vmem:[#allocation2 + $0x68] sm:$0x7f]
    %v2145 = vrot.slane %v2121, 7
    %v2146 = vrot.slane %v2123, 7
    %v2147 = vsel %vm105, %v2145, %v2146
    %v2148 = vrot.slane %v2122, 7
    %v2149 = vrot.slane %v2124, 7
    %v2150 = vsel %vm105, %v2148, %v2149
    %v2151 = vrot.slane %v2125, 7
    %v2152 = vsel %vm105, %v2146, %v2151
    %v2153 = vrot.slane %v2126, 7
    %v2154 = vsel %vm105, %v2149, %v2153
    %v2155 = vrot.slane %v2127, 7
    %v2156 = vrot.slane %v2129, 7
    %v2157 = vsel %vm105, %v2155, %v2156
    %v2158 = vrot.slane %v2128, 7
    %v2159 = vrot.slane %v2130, 7
    %v2160 = vsel %vm105, %v2158, %v2159
    %v2161 = vrot.slane %v2131, 7
    %v2162 = vsel %vm105, %v2156, %v2161
    %v2163 = vrot.slane %v2132, 7
    %v2164 = vsel %vm105, %v2159, %v2163
    %s2173 = scalar_lea.vmem [#allocation6], 4608
    %v2174 = vld [vmem:[%s2173] sm:$0xff]
    %v2175 = vld [vmem:[%s2173 + $0x8] sm:$0xff]
    %v2176 = vld [vmem:[%s2173 + $0x10] sm:$0xff]
    %v2177 = vld [vmem:[%s2173 + $0x18] sm:$0xff]
    %v2178 = vld [vmem:[%s2173 + $0x20] sm:$0xff]
    %v2179 = vld [vmem:[%s2173 + $0x28] sm:$0xff]
    %v2180 = vld [vmem:[%s2173 + $0x30] sm:$0xff]
    %v2181 = vld [vmem:[%s2173 + $0x38] sm:$0xff]
    %v2182 = vld [vmem:[%s2173 + $0x40] sm:$0xff]
    %v2183 = vld [vmem:[%s2173 + $0x48] sm:$0xff]
    %v2184 = vld [vmem:[%s2173 + $0x50] sm:$0xff]
    %v2185 = vld [vmem:[%s2173 + $0x58] sm:$0xff]
    %v2186 = vld [vmem:[%s2173 + $0x60] sm:$0xff]
    %v2187 = vld [vmem:[%s2173 + $0x68] sm:$0xff]
    %v2188 = vld [vmem:[%s2173 + $0x70] sm:$0xff]
    %v2189 = vld [vmem:[%s2173 + $0x78] sm:$0xff]
    %v2190 = vld [vmem:[%s2173 + $0x80] sm:$0xff]
    %v2191 = vld [vmem:[%s2173 + $0x88] sm:$0xff]
    %v2192 = vld [vmem:[%s2173 + $0x90] sm:$0xff]
    %v2193 = vld [vmem:[%s2173 + $0x98] sm:$0xff]
    %v2194 = vld [vmem:[%s2173 + $0xa0] sm:$0xff]
    %v2195 = vld [vmem:[%s2173 + $0xa8] sm:$0xff]
    %v2196 = vld [vmem:[%s2173 + $0xb0] sm:$0xff]
    %v2197 = vld [vmem:[%s2173 + $0xb8] sm:$0xff]
    %v2198 = vld [vmem:[%s2173 + $0xc0] sm:$0xff]
    %v2199 = vld [vmem:[%s2173 + $0xc8] sm:$0xff]
    %v2200 = vld [vmem:[%s2173 + $0xd0] sm:$0xff]
    %v2201 = vld [vmem:[%s2173 + $0xd8] sm:$0xff]
    %v2202 = vld [vmem:[%s2173 + $0xe0] sm:$0xff]
    %v2203 = vld [vmem:[%s2173 + $0xe8] sm:$0xff]
    %v2204 = vld [vmem:[%s2173 + $0xf0] sm:$0xff]
    %v2205 = vld [vmem:[%s2173 + $0xf8] sm:$0xff]
    %v2206 = vld [vmem:[%s2173 + $0x100] sm:$0xff]
    %v2207 = vld [vmem:[%s2173 + $0x108] sm:$0xff]
    %v2208 = vld [vmem:[%s2173 + $0x110] sm:$0xff]
    %v2209 = vld [vmem:[%s2173 + $0x118] sm:$0xff]
    %v2210 = vld [vmem:[%s2173 + $0x120] sm:$0xff]
    %v2211 = vld [vmem:[%s2173 + $0x128] sm:$0xff]
    %v2212 = vld [vmem:[%s2173 + $0x130] sm:$0xff]
    %v2213 = vld [vmem:[%s2173 + $0x138] sm:$0xff]
    %v2214 = vld [vmem:[%s2173 + $0x140] sm:$0xff]
    %v2215 = vld [vmem:[%s2173 + $0x148] sm:$0xff]
    %v2216 = vld [vmem:[%s2173 + $0x150] sm:$0xff]
    %v2217 = vld [vmem:[%s2173 + $0x158] sm:$0xff]
    %v2218 = vld [vmem:[%s2173 + $0x160] sm:$0xff]
    %v2219 = vld [vmem:[%s2173 + $0x168] sm:$0xff]
    %v2220 = vld [vmem:[%s2173 + $0x170] sm:$0xff]
    %v2221 = vld [vmem:[%s2173 + $0x178] sm:$0xff]
    %v2222 = vld [vmem:[%s2173 + $0x180] sm:$0xff]
    %v2223 = vld [vmem:[%s2173 + $0x188] sm:$0xff]
    %v2224 = vld [vmem:[%s2173 + $0x190] sm:$0xff]
    %v2225 = vld [vmem:[%s2173 + $0x198] sm:$0xff]
    %v2226 = vld [vmem:[%s2173 + $0x1a0] sm:$0xff]
    %v2227 = vld [vmem:[%s2173 + $0x1a8] sm:$0xff]
    %v2228 = vld [vmem:[%s2173 + $0x1b0] sm:$0xff]
    %v2229 = vld [vmem:[%s2173 + $0x1b8] sm:$0xff]
    %v2230 = vld [vmem:[%s2173 + $0x1c0] sm:$0xff]
    %v2231 = vld [vmem:[%s2173 + $0x1c8] sm:$0xff]
    %v2232 = vld [vmem:[%s2173 + $0x1d0] sm:$0xff]
    %v2233 = vld [vmem:[%s2173 + $0x1d8] sm:$0xff]
    %v2234 = vld [vmem:[%s2173 + $0x1e0] sm:$0xff]
    %v2235 = vld [vmem:[%s2173 + $0x1e8] sm:$0xff]
    %v2236 = vld [vmem:[%s2173 + $0x1f0] sm:$0xff]
    %v2237 = vld [vmem:[%s2173 + $0x1f8] sm:$0xff]
    %v2238 = vld [vmem:[#allocation2 + $0x20] sm:$0xff]
    %v2239 = vld [vmem:[#allocation2 + $0x28] sm:$0xff]
    %v2240 = vld [vmem:[#allocation2 + $0x60] sm:$0xff]
    %v2241 = vld [vmem:[#allocation2 + $0x68] sm:$0xff]
    %s2242 = scalar_lea.vmem [#allocation6], 5120
    %v2243 = vld [vmem:[%s2242] sm:$0xff]
    %v2244 = vld [vmem:[%s2242 + $0x8] sm:$0xff]
    %v2245 = vld [vmem:[%s2242 + $0x10] sm:$0xff]
    %v2246 = vld [vmem:[%s2242 + $0x18] sm:$0xff]
    %v2247 = vld [vmem:[%s2242 + $0x20] sm:$0xff]
    %v2248 = vld [vmem:[%s2242 + $0x28] sm:$0xff]
    %v2249 = vld [vmem:[%s2242 + $0x30] sm:$0xff]
    %v2250 = vld [vmem:[%s2242 + $0x38] sm:$0xff]
    %v2251 = vld [vmem:[%s2242 + $0x40] sm:$0xff]
    %v2252 = vld [vmem:[%s2242 + $0x48] sm:$0xff]
    %v2253 = vld [vmem:[%s2242 + $0x50] sm:$0xff]
    %v2254 = vld [vmem:[%s2242 + $0x58] sm:$0xff]
    %v2255 = vld [vmem:[%s2242 + $0x60] sm:$0xff]
    %v2256 = vld [vmem:[%s2242 + $0x68] sm:$0xff]
    %v2257 = vld [vmem:[%s2242 + $0x70] sm:$0xff]
    %v2258 = vld [vmem:[%s2242 + $0x78] sm:$0xff]
    %v2259 = vld [vmem:[%s2242 + $0x80] sm:$0xff]
    %v2260 = vld [vmem:[%s2242 + $0x88] sm:$0xff]
    %v2261 = vld [vmem:[%s2242 + $0x90] sm:$0xff]
    %v2262 = vld [vmem:[%s2242 + $0x98] sm:$0xff]
    %v2263 = vld [vmem:[%s2242 + $0xa0] sm:$0xff]
    %v2264 = vld [vmem:[%s2242 + $0xa8] sm:$0xff]
    %v2265 = vld [vmem:[%s2242 + $0xb0] sm:$0xff]
    %v2266 = vld [vmem:[%s2242 + $0xb8] sm:$0xff]
    %v2267 = vld [vmem:[%s2242 + $0xc0] sm:$0xff]
    %v2268 = vld [vmem:[%s2242 + $0xc8] sm:$0xff]
    %v2269 = vld [vmem:[%s2242 + $0xd0] sm:$0xff]
    %v2270 = vld [vmem:[%s2242 + $0xd8] sm:$0xff]
    %v2271 = vld [vmem:[%s2242 + $0xe0] sm:$0xff]
    %v2272 = vld [vmem:[%s2242 + $0xe8] sm:$0xff]
    %v2273 = vld [vmem:[%s2242 + $0xf0] sm:$0xff]
    %v2274 = vld [vmem:[%s2242 + $0xf8] sm:$0xff]
    %v2275 = vld [vmem:[%s2242 + $0x100] sm:$0xff]
    %v2276 = vld [vmem:[%s2242 + $0x108] sm:$0xff]
    %v2277 = vld [vmem:[%s2242 + $0x110] sm:$0xff]
    %v2278 = vld [vmem:[%s2242 + $0x118] sm:$0xff]
    %v2279 = vld [vmem:[%s2242 + $0x120] sm:$0xff]
    %v2280 = vld [vmem:[%s2242 + $0x128] sm:$0xff]
    %v2281 = vld [vmem:[%s2242 + $0x130] sm:$0xff]
    %v2282 = vld [vmem:[%s2242 + $0x138] sm:$0xff]
    %v2283 = vld [vmem:[%s2242 + $0x140] sm:$0xff]
    %v2284 = vld [vmem:[%s2242 + $0x148] sm:$0xff]
    %v2285 = vld [vmem:[%s2242 + $0x150] sm:$0xff]
    %v2286 = vld [vmem:[%s2242 + $0x158] sm:$0xff]
    %v2287 = vld [vmem:[%s2242 + $0x160] sm:$0xff]
    %v2288 = vld [vmem:[%s2242 + $0x168] sm:$0xff]
    %v2289 = vld [vmem:[%s2242 + $0x170] sm:$0xff]
    %v2290 = vld [vmem:[%s2242 + $0x178] sm:$0xff]
    %v2291 = vld [vmem:[%s2242 + $0x180] sm:$0xff]
    %v2292 = vld [vmem:[%s2242 + $0x188] sm:$0xff]
    %v2293 = vld [vmem:[%s2242 + $0x190] sm:$0xff]
    %v2294 = vld [vmem:[%s2242 + $0x198] sm:$0xff]
    %v2295 = vld [vmem:[%s2242 + $0x1a0] sm:$0xff]
    %v2296 = vld [vmem:[%s2242 + $0x1a8] sm:$0xff]
    %v2297 = vld [vmem:[%s2242 + $0x1b0] sm:$0xff]
    %v2298 = vld [vmem:[%s2242 + $0x1b8] sm:$0xff]
    %v2299 = vld [vmem:[%s2242 + $0x1c0] sm:$0xff]
    %v2300 = vld [vmem:[%s2242 + $0x1c8] sm:$0xff]
    %v2301 = vld [vmem:[%s2242 + $0x1d0] sm:$0xff]
    %v2302 = vld [vmem:[%s2242 + $0x1d8] sm:$0xff]
    %v2303 = vld [vmem:[%s2242 + $0x1e0] sm:$0xff]
    %v2304 = vld [vmem:[%s2242 + $0x1e8] sm:$0xff]
    %v2305 = vld [vmem:[%s2242 + $0x1f0] sm:$0xff]
    %v2306 = vld [vmem:[%s2242 + $0x1f8] sm:$0xff]
    %2307 = vmatprep.subr.mxu0 %v2244
    %2308 = vmatpush1.msra.mxu0 %v2243
    %2309 = vmatprep.subr.mxu0 %v2246
    %2310 = vmatpush1.msra.mxu0 %v2245
    %2311 = vmatprep.subr.mxu0 %v2248
    %2312 = vmatpush1.msra.mxu0 %v2247
    %2313 = vmatprep.subr.mxu0 %v2250
    %2314 = vmatpush1.msra.mxu0 %v2249
    %2315 = vmatprep.subr.mxu0 %v2252
    %2316 = vmatpush1.msra.mxu0 %v2251
    %2317 = vmatprep.subr.mxu0 %v2254
    %2318 = vmatpush1.msra.mxu0 %v2253
    %2319 = vmatprep.subr.mxu0 %v2256
    %2320 = vmatpush1.msra.mxu0 %v2255
    %2321 = vmatprep.subr.mxu0 %v2258
    %2322 = vmatpush1.msra.mxu0 %v2257
    %2323 = vmatprep.subr.mxu0 %v2260
    %2324 = vmatpush1.msra.mxu0 %v2259
    %2325 = vmatprep.subr.mxu0 %v2262
    %2326 = vmatpush1.msra.mxu0 %v2261
    %2327 = vmatprep.subr.mxu0 %v2264
    %2328 = vmatpush1.msra.mxu0 %v2263
    %2329 = vmatprep.subr.mxu0 %v2266
    %2330 = vmatpush1.msra.mxu0 %v2265
    %2331 = vmatprep.subr.mxu0 %v2268
    %2332 = vmatpush1.msra.mxu0 %v2267
    %2333 = vmatprep.subr.mxu0 %v2270
    %2334 = vmatpush1.msra.mxu0 %v2269
    %2335 = vmatprep.subr.mxu0 %v2272
    %2336 = vmatpush1.msra.mxu0 %v2271
    %2337 = vmatprep.subr.mxu0 %v2274
    %2338 = vmatpush1.msra.mxu0 %v2273
    %2339 = vmatprep.subr.mxu0 %v2276
    %2340 = vmatpush1.msra.mxu0 %v2275
    %2341 = vmatprep.subr.mxu0 %v2278
    %2342 = vmatpush1.msra.mxu0 %v2277
    %2343 = vmatprep.subr.mxu0 %v2280
    %2344 = vmatpush1.msra.mxu0 %v2279
    %2345 = vmatprep.subr.mxu0 %v2282
    %2346 = vmatpush1.msra.mxu0 %v2281
    %2347 = vmatprep.subr.mxu0 %v2284
    %2348 = vmatpush1.msra.mxu0 %v2283
    %2349 = vmatprep.subr.mxu0 %v2286
    %2350 = vmatpush1.msra.mxu0 %v2285
    %2351 = vmatprep.subr.mxu0 %v2288
    %2352 = vmatpush1.msra.mxu0 %v2287
    %2353 = vmatprep.subr.mxu0 %v2290
    %2354 = vmatpush1.msra.mxu0 %v2289
    %2355 = vmatprep.subr.mxu0 %v2292
    %2356 = vmatpush1.msra.mxu0 %v2291
    %2357 = vmatprep.subr.mxu0 %v2294
    %2358 = vmatpush1.msra.mxu0 %v2293
    %2359 = vmatprep.subr.mxu0 %v2296
    %2360 = vmatpush1.msra.mxu0 %v2295
    %2361 = vmatprep.subr.mxu0 %v2298
    %2362 = vmatpush1.msra.mxu0 %v2297
    %2363 = vmatprep.subr.mxu0 %v2300
    %2364 = vmatpush1.msra.mxu0 %v2299
    %2365 = vmatprep.subr.mxu0 %v2302
    %2366 = vmatpush1.msra.mxu0 %v2301
    %2367 = vmatprep.subr.mxu0 %v2304
    %2368 = vmatpush1.msra.mxu0 %v2303
    %2369 = vmatprep.subr.mxu0 %v2306
    %2370 = vmatpush1.msra.mxu0 %v2305
    %2371 = vmatprep.mubr.f32.mxu0 %v2124
    %2372 = vmatmul.mubr.f32.gmra.mrb[0].mxu0 %v2123
    %v2373 = vpop.f32.mrb[0].mxu0
    %v2374 = vadd.f32 0.0, %v2373
    %v2375 = vpop.f32.mrb[0].mxu0
    %v2376 = vadd.f32 0.0, %v2375
    %2377 = vmatprep.mubr.f32.mxu0 %v2239
    %2378 = vmatmul.mubr.f32.gmra.mrb[0].mxu0 %v2238
    %v2379 = vpop.f32.mrb[0].mxu0
    %v2380 = vadd.f32 0.0, %v2379
    %v2381 = vpop.f32.mrb[0].mxu0
    %v2382 = vadd.f32 0.0, %v2381
    %2383 = vmatprep.mubr.f32.mxu0 %v2130
    %2384 = vmatmul.mubr.f32.gmra.mrb[0].mxu0 %v2129
    %v2385 = vpop.f32.mrb[0].mxu0
    %v2386 = vadd.f32 0.0, %v2385
    %v2387 = vpop.f32.mrb[0].mxu0
    %v2388 = vadd.f32 0.0, %v2387
    %2389 = vmatprep.mubr.f32.mxu0 %v2241
    %2390 = vmatmul.mubr.f32.gmra.mrb[0].mxu0 %v2240
    %v2391 = vpop.f32.mrb[0].mxu0
    %v2392 = vadd.f32 0.0, %v2391
    %v2393 = vpop.f32.mrb[0].mxu0
    %v2394 = vadd.f32 0.0, %v2393
    %2395 = vdwg.mxu0
    %2396 = vmatprep.subr.mxu0 %v2175
    %2397 = vmatpush1.msra.mxu0 %v2174
    %2398 = vmatprep.subr.mxu0 %v2177
    %2399 = vmatpush1.msra.mxu0 %v2176
    %2400 = vmatprep.subr.mxu0 %v2179
    %2401 = vmatpush1.msra.mxu0 %v2178
    %2402 = vmatprep.subr.mxu0 %v2181
    %2403 = vmatpush1.msra.mxu0 %v2180
    %2404 = vmatprep.subr.mxu0 %v2183
    %2405 = vmatpush1.msra.mxu0 %v2182
    %2406 = vmatprep.subr.mxu0 %v2185
    %2407 = vmatpush1.msra.mxu0 %v2184
    %2408 = vmatprep.subr.mxu0 %v2187
    %2409 = vmatpush1.msra.mxu0 %v2186
    %2410 = vmatprep.subr.mxu0 %v2189
    %2411 = vmatpush1.msra.mxu0 %v2188
    %2412 = vmatprep.subr.mxu0 %v2191
    %2413 = vmatpush1.msra.mxu0 %v2190
    %2414 = vmatprep.subr.mxu0 %v2193
    %2415 = vmatpush1.msra.mxu0 %v2192
    %2416 = vmatprep.subr.mxu0 %v2195
    %2417 = vmatpush1.msra.mxu0 %v2194
    %2418 = vmatprep.subr.mxu0 %v2197
    %2419 = vmatpush1.msra.mxu0 %v2196
    %2420 = vmatprep.subr.mxu0 %v2199
    %2421 = vmatpush1.msra.mxu0 %v2198
    %2422 = vmatprep.subr.mxu0 %v2201
    %2423 = vmatpush1.msra.mxu0 %v2200
    %2424 = vmatprep.subr.mxu0 %v2203
    %2425 = vmatpush1.msra.mxu0 %v2202
    %2426 = vmatprep.subr.mxu0 %v2205
    %2427 = vmatpush1.msra.mxu0 %v2204
    %2428 = vmatprep.subr.mxu0 %v2207
    %2429 = vmatpush1.msra.mxu0 %v2206
    %2430 = vmatprep.subr.mxu0 %v2209
    %2431 = vmatpush1.msra.mxu0 %v2208
    %2432 = vmatprep.subr.mxu0 %v2211
    %2433 = vmatpush1.msra.mxu0 %v2210
    %2434 = vmatprep.subr.mxu0 %v2213
    %2435 = vmatpush1.msra.mxu0 %v2212
    %2436 = vmatprep.subr.mxu0 %v2215
    %2437 = vmatpush1.msra.mxu0 %v2214
    %2438 = vmatprep.subr.mxu0 %v2217
    %2439 = vmatpush1.msra.mxu0 %v2216
    %2440 = vmatprep.subr.mxu0 %v2219
    %2441 = vmatpush1.msra.mxu0 %v2218
    %2442 = vmatprep.subr.mxu0 %v2221
    %2443 = vmatpush1.msra.mxu0 %v2220
    %2444 = vmatprep.subr.mxu0 %v2223
    %2445 = vmatpush1.msra.mxu0 %v2222
    %2446 = vmatprep.subr.mxu0 %v2225
    %2447 = vmatpush1.msra.mxu0 %v2224
    %2448 = vmatprep.subr.mxu0 %v2227
    %2449 = vmatpush1.msra.mxu0 %v2226
    %2450 = vmatprep.subr.mxu0 %v2229
    %2451 = vmatpush1.msra.mxu0 %v2228
    %2452 = vmatprep.subr.mxu0 %v2231
    %2453 = vmatpush1.msra.mxu0 %v2230
    %2454 = vmatprep.subr.mxu0 %v2233
    %2455 = vmatpush1.msra.mxu0 %v2232
    %2456 = vmatprep.subr.mxu0 %v2235
    %2457 = vmatpush1.msra.mxu0 %v2234
    %2458 = vmatprep.subr.mxu0 %v2237
    %2459 = vmatpush1.msra.mxu0 %v2236
    %2460 = vmatprep.mubr.f32.mxu0 %v2150
    %2461 = vmatmul.mubr.f32.gmra.mrb[0].mxu0 %v2147
    %v2462 = vpop.f32.mrb[0].mxu0
    %v2463 = vadd.f32 %v2374, %v2462
    %v2464 = vpop.f32.mrb[0].mxu0
    %v2465 = vadd.f32 %v2376, %v2464
    %2466 = vmatprep.mubr.f32.mxu0 %v2154
    %2467 = vmatmul.mubr.f32.gmra.mrb[0].mxu0 %v2152
    %v2468 = vpop.f32.mrb[0].mxu0
    %v2469 = vadd.f32 %v2380, %v2468
    %v2470 = vpop.f32.mrb[0].mxu0
    %v2471 = vadd.f32 %v2382, %v2470
    %2472 = vmatprep.mubr.f32.mxu0 %v2160
    %2473 = vmatmul.mubr.f32.gmra.mrb[0].mxu0 %v2157
    %v2474 = vpop.f32.mrb[0].mxu0
    %v2475 = vadd.f32 %v2386, %v2474
    %v2476 = vpop.f32.mrb[0].mxu0
    %v2477 = vadd.f32 %v2388, %v2476
    %2478 = vmatprep.mubr.f32.mxu0 %v2164
    %2479 = vmatmul.mubr.f32.gmra.mrb[0].mxu0 %v2162
    %v2480 = vpop.f32.mrb[0].mxu0
    %v2481 = vadd.f32 %v2392, %v2480
    %v2482 = vpop.f32.mrb[0].mxu0
    %v2483 = vadd.f32 %v2394, %v2482
    %2484 = vdwg.mxu0
    %v2485 = vld [vmem:[#allocation2 + $0x10] sm:$0xfe]
    %v2486 = vld [vmem:[#allocation2 + $0x18] sm:$0xfe]
    %v2487 = vld [vmem:[#allocation2 + $0x20] sm:$0xff]
    %v2488 = vld [vmem:[#allocation2 + $0x28] sm:$0xff]
    %v2489 = vld [vmem:[#allocation2 + $0x30] sm:$0x1]
    %v2490 = vld [vmem:[#allocation2 + $0x38] sm:$0x1]
    %v2491 = vld [vmem:[#allocation2 + $0x50] sm:$0xfe]
    %v2492 = vld [vmem:[#allocation2 + $0x58] sm:$0xfe]
    %v2493 = vld [vmem:[#allocation2 + $0x60] sm:$0xff]
    %v2494 = vld [vmem:[#allocation2 + $0x68] sm:$0xff]
    %v2495 = vld [vmem:[#allocation2 + $0x70] sm:$0x1]
    %v2496 = vld [vmem:[#allocation2 + $0x78] sm:$0x1]
    %v2509 = vrot.slane %v2485, 1
    %v2510 = vrot.slane %v2487, 1
    %v2511 = vsel %vm469, %v2509, %v2510
    %v2512 = vrot.slane %v2486, 1
    %v2513 = vrot.slane %v2488, 1
    %v2514 = vsel %vm469, %v2512, %v2513
    %v2515 = vrot.slane %v2489, 1
    %v2516 = vsel %vm469, %v2510, %v2515
    %v2517 = vrot.slane %v2490, 1
    %v2518 = vsel %vm469, %v2513, %v2517
    %v2519 = vrot.slane %v2491, 1
    %v2520 = vrot.slane %v2493, 1
    %v2521 = vsel %vm469, %v2519, %v2520
    %v2522 = vrot.slane %v2492, 1
    %v2523 = vrot.slane %v2494, 1
    %v2524 = vsel %vm469, %v2522, %v2523
    %v2525 = vrot.slane %v2495, 1
    %v2526 = vsel %vm469, %v2520, %v2525
    %v2527 = vrot.slane %v2496, 1
    %v2528 = vsel %vm469, %v2523, %v2527
    %s2537 = scalar_lea.vmem [#allocation6], 5632
    %v2538 = vld [vmem:[%s2537] sm:$0xff]
    %v2539 = vld [vmem:[%s2537 + $0x8] sm:$0xff]
    %v2540 = vld [vmem:[%s2537 + $0x10] sm:$0xff]
    %v2541 = vld [vmem:[%s2537 + $0x18] sm:$0xff]
    %v2542 = vld [vmem:[%s2537 + $0x20] sm:$0xff]
    %v2543 = vld [vmem:[%s2537 + $0x28] sm:$0xff]
    %v2544 = vld [vmem:[%s2537 + $0x30] sm:$0xff]
    %v2545 = vld [vmem:[%s2537 + $0x38] sm:$0xff]
    %v2546 = vld [vmem:[%s2537 + $0x40] sm:$0xff]
    %v2547 = vld [vmem:[%s2537 + $0x48] sm:$0xff]
    %v2548 = vld [vmem:[%s2537 + $0x50] sm:$0xff]
    %v2549 = vld [vmem:[%s2537 + $0x58] sm:$0xff]
    %v2550 = vld [vmem:[%s2537 + $0x60] sm:$0xff]
    %v2551 = vld [vmem:[%s2537 + $0x68] sm:$0xff]
    %v2552 = vld [vmem:[%s2537 + $0x70] sm:$0xff]
    %v2553 = vld [vmem:[%s2537 + $0x78] sm:$0xff]
    %v2554 = vld [vmem:[%s2537 + $0x80] sm:$0xff]
    %v2555 = vld [vmem:[%s2537 + $0x88] sm:$0xff]
    %v2556 = vld [vmem:[%s2537 + $0x90] sm:$0xff]
    %v2557 = vld [vmem:[%s2537 + $0x98] sm:$0xff]
    %v2558 = vld [vmem:[%s2537 + $0xa0] sm:$0xff]
    %v2559 = vld [vmem:[%s2537 + $0xa8] sm:$0xff]
    %v2560 = vld [vmem:[%s2537 + $0xb0] sm:$0xff]
    %v2561 = vld [vmem:[%s2537 + $0xb8] sm:$0xff]
    %v2562 = vld [vmem:[%s2537 + $0xc0] sm:$0xff]
    %v2563 = vld [vmem:[%s2537 + $0xc8] sm:$0xff]
    %v2564 = vld [vmem:[%s2537 + $0xd0] sm:$0xff]
    %v2565 = vld [vmem:[%s2537 + $0xd8] sm:$0xff]
    %v2566 = vld [vmem:[%s2537 + $0xe0] sm:$0xff]
    %v2567 = vld [vmem:[%s2537 + $0xe8] sm:$0xff]
    %v2568 = vld [vmem:[%s2537 + $0xf0] sm:$0xff]
    %v2569 = vld [vmem:[%s2537 + $0xf8] sm:$0xff]
    %v2570 = vld [vmem:[%s2537 + $0x100] sm:$0xff]
    %v2571 = vld [vmem:[%s2537 + $0x108] sm:$0xff]
    %v2572 = vld [vmem:[%s2537 + $0x110] sm:$0xff]
    %v2573 = vld [vmem:[%s2537 + $0x118] sm:$0xff]
    %v2574 = vld [vmem:[%s2537 + $0x120] sm:$0xff]
    %v2575 = vld [vmem:[%s2537 + $0x128] sm:$0xff]
    %v2576 = vld [vmem:[%s2537 + $0x130] sm:$0xff]
    %v2577 = vld [vmem:[%s2537 + $0x138] sm:$0xff]
    %v2578 = vld [vmem:[%s2537 + $0x140] sm:$0xff]
    %v2579 = vld [vmem:[%s2537 + $0x148] sm:$0xff]
    %v2580 = vld [vmem:[%s2537 + $0x150] sm:$0xff]
    %v2581 = vld [vmem:[%s2537 + $0x158] sm:$0xff]
    %v2582 = vld [vmem:[%s2537 + $0x160] sm:$0xff]
    %v2583 = vld [vmem:[%s2537 + $0x168] sm:$0xff]
    %v2584 = vld [vmem:[%s2537 + $0x170] sm:$0xff]
    %v2585 = vld [vmem:[%s2537 + $0x178] sm:$0xff]
    %v2586 = vld [vmem:[%s2537 + $0x180] sm:$0xff]
    %v2587 = vld [vmem:[%s2537 + $0x188] sm:$0xff]
    %v2588 = vld [vmem:[%s2537 + $0x190] sm:$0xff]
    %v2589 = vld [vmem:[%s2537 + $0x198] sm:$0xff]
    %v2590 = vld [vmem:[%s2537 + $0x1a0] sm:$0xff]
    %v2591 = vld [vmem:[%s2537 + $0x1a8] sm:$0xff]
    %v2592 = vld [vmem:[%s2537 + $0x1b0] sm:$0xff]
    %v2593 = vld [vmem:[%s2537 + $0x1b8] sm:$0xff]
    %v2594 = vld [vmem:[%s2537 + $0x1c0] sm:$0xff]
    %v2595 = vld [vmem:[%s2537 + $0x1c8] sm:$0xff]
    %v2596 = vld [vmem:[%s2537 + $0x1d0] sm:$0xff]
    %v2597 = vld [vmem:[%s2537 + $0x1d8] sm:$0xff]
    %v2598 = vld [vmem:[%s2537 + $0x1e0] sm:$0xff]
    %v2599 = vld [vmem:[%s2537 + $0x1e8] sm:$0xff]
    %v2600 = vld [vmem:[%s2537 + $0x1f0] sm:$0xff]
    %v2601 = vld [vmem:[%s2537 + $0x1f8] sm:$0xff]
    %2602 = vmatprep.subr.mxu0 %v2539
    %2603 = vmatpush1.msra.mxu0 %v2538
    %2604 = vmatprep.subr.mxu0 %v2541
    %2605 = vmatpush1.msra.mxu0 %v2540
    %2606 = vmatprep.subr.mxu0 %v2543
    %2607 = vmatpush1.msra.mxu0 %v2542
    %2608 = vmatprep.subr.mxu0 %v2545
    %2609 = vmatpush1.msra.mxu0 %v2544
    %2610 = vmatprep.subr.mxu0 %v2547
    %2611 = vmatpush1.msra.mxu0 %v2546
    %2612 = vmatprep.subr.mxu0 %v2549
    %2613 = vmatpush1.msra.mxu0 %v2548
    %2614 = vmatprep.subr.mxu0 %v2551
    %2615 = vmatpush1.msra.mxu0 %v2550
    %2616 = vmatprep.subr.mxu0 %v2553
    %2617 = vmatpush1.msra.mxu0 %v2552
    %2618 = vmatprep.subr.mxu0 %v2555
    %2619 = vmatpush1.msra.mxu0 %v2554
    %2620 = vmatprep.subr.mxu0 %v2557
    %2621 = vmatpush1.msra.mxu0 %v2556
    %2622 = vmatprep.subr.mxu0 %v2559
    %2623 = vmatpush1.msra.mxu0 %v2558
    %2624 = vmatprep.subr.mxu0 %v2561
    %2625 = vmatpush1.msra.mxu0 %v2560
    %2626 = vmatprep.subr.mxu0 %v2563
    %2627 = vmatpush1.msra.mxu0 %v2562
    %2628 = vmatprep.subr.mxu0 %v2565
    %2629 = vmatpush1.msra.mxu0 %v2564
    %2630 = vmatprep.subr.mxu0 %v2567
    %2631 = vmatpush1.msra.mxu0 %v2566
    %2632 = vmatprep.subr.mxu0 %v2569
    %2633 = vmatpush1.msra.mxu0 %v2568
    %2634 = vmatprep.subr.mxu0 %v2571
    %2635 = vmatpush1.msra.mxu0 %v2570
    %2636 = vmatprep.subr.mxu0 %v2573
    %2637 = vmatpush1.msra.mxu0 %v2572
    %2638 = vmatprep.subr.mxu0 %v2575
    %2639 = vmatpush1.msra.mxu0 %v2574
    %2640 = vmatprep.subr.mxu0 %v2577
    %2641 = vmatpush1.msra.mxu0 %v2576
    %2642 = vmatprep.subr.mxu0 %v2579
    %2643 = vmatpush1.msra.mxu0 %v2578
    %2644 = vmatprep.subr.mxu0 %v2581
    %2645 = vmatpush1.msra.mxu0 %v2580
    %2646 = vmatprep.subr.mxu0 %v2583
    %2647 = vmatpush1.msra.mxu0 %v2582
    %2648 = vmatprep.subr.mxu0 %v2585
    %2649 = vmatpush1.msra.mxu0 %v2584
    %2650 = vmatprep.subr.mxu0 %v2587
    %2651 = vmatpush1.msra.mxu0 %v2586
    %2652 = vmatprep.subr.mxu0 %v2589
    %2653 = vmatpush1.msra.mxu0 %v2588
    %2654 = vmatprep.subr.mxu0 %v2591
    %2655 = vmatpush1.msra.mxu0 %v2590
    %2656 = vmatprep.subr.mxu0 %v2593
    %2657 = vmatpush1.msra.mxu0 %v2592
    %2658 = vmatprep.subr.mxu0 %v2595
    %2659 = vmatpush1.msra.mxu0 %v2594
    %2660 = vmatprep.subr.mxu0 %v2597
    %2661 = vmatpush1.msra.mxu0 %v2596
    %2662 = vmatprep.subr.mxu0 %v2599
    %2663 = vmatpush1.msra.mxu0 %v2598
    %2664 = vmatprep.subr.mxu0 %v2601
    %2665 = vmatpush1.msra.mxu0 %v2600
    %2666 = vmatprep.mubr.f32.mxu0 %v2514
    %2667 = vmatmul.mubr.f32.gmra.mrb[0].mxu0 %v2511
    %v2668 = vpop.f32.mrb[0].mxu0
    %v2669 = vadd.f32 0.0, %v2668
    %v2670 = vpop.f32.mrb[0].mxu0
    %v2671 = vadd.f32 0.0, %v2670
    %2672 = vmatprep.mubr.f32.mxu0 %v2518
    %2673 = vmatmul.mubr.f32.gmra.mrb[0].mxu0 %v2516
    %v2674 = vpop.f32.mrb[0].mxu0
    %v2675 = vadd.f32 0.0, %v2674
    %v2676 = vpop.f32.mrb[0].mxu0
    %v2677 = vadd.f32 0.0, %v2676
    %2678 = vmatprep.mubr.f32.mxu0 %v2524
    %2679 = vmatmul.mubr.f32.gmra.mrb[0].mxu0 %v2521
    %v2680 = vpop.f32.mrb[0].mxu0
    %v2681 = vadd.f32 0.0, %v2680
    %v2682 = vpop.f32.mrb[0].mxu0
    %v2683 = vadd.f32 0.0, %v2682
    %2684 = vmatprep.mubr.f32.mxu0 %v2528
    %2685 = vmatmul.mubr.f32.gmra.mrb[0].mxu0 %v2526
    %v2686 = vpop.f32.mrb[0].mxu0
    %v2687 = vadd.f32 0.0, %v2686
    %v2688 = vpop.f32.mrb[0].mxu0
    %v2689 = vadd.f32 0.0, %v2688
    %2690 = vdwg.mxu0
    %v2691 = vadd.f32 %v2463, %v2669
    %v2692 = vadd.f32 %v2465, %v2671
    %v2693 = vadd.f32 %v2469, %v2675
    %v2694 = vadd.f32 %v2471, %v2677
    %v2695 = vadd.f32 %v2475, %v2681
    %v2696 = vadd.f32 %v2477, %v2683
    %v2697 = vadd.f32 %v2481, %v2687
    %v2698 = vadd.f32 %v2483, %v2689
    %v2699 = vmax.f32 %v2691, 0.0
    %v2700 = vmax.f32 %v2692, 0.0
    %v2701 = vmax.f32 %v2693, 0.0
    %v2702 = vmax.f32 %v2694, 0.0
    %v2703 = vmax.f32 %v2695, 0.0
    %v2704 = vmax.f32 %v2696, 0.0
    %v2705 = vmax.f32 %v2697, 0.0
    %v2706 = vmax.f32 %v2698, 0.0
    %v2707 = vadd.f32 %v2699, %v2701
    %v2708 = vadd.f32 %v2707, %v2703
    %v2709 = vadd.f32 %v2708, %v2705
    %v2710 = vrot.slane %v2709, 4
    %v2711 = vadd.f32 %v2709, %v2710
    %v2712 = vrot.slane %v2711, 2
    %v2713 = vadd.f32 %v2711, %v2712
    %v2714 = vrot.slane %v2713, 1
    %v2715 = vadd.f32 %v2713, %v2714
    %v2716 = vadd.f32 %v2700, %v2702
    %v2717 = vadd.f32 %v2716, %v2704
    %v2718 = vadd.f32 %v2717, %v2706
    %v2719 = vrot.slane %v2718, 4
    %v2720 = vadd.f32 %v2718, %v2719
    %v2721 = vrot.slane %v2720, 2
    %v2722 = vadd.f32 %v2720, %v2721
    %v2723 = vrot.slane %v2722, 1
    %v2724 = vadd.f32 %v2722, %v2723
    %2725 = vrot.lane.b32.xlu0 %v2715, 16
    %v2726 = vpop.permute.xlu0 %2725
    %2727 = vrot.lane.b32.xlu0 %v2724, 16
    %v2728 = vpop.permute.xlu0 %2727
    %v2729 = vsel %vm1286, %v2726, %v2728
    %v2730 = vsel %vm1286, %v2728, %v2726
    %v2731 = vadd.f32 %v2715, %v2730
    %v2732 = vadd.f32 %v2724, %v2729
    %2733 = vrot.lane.b32.xlu0 %v2731, 32
    %v2734 = vpop.permute.xlu0 %2733
    %2735 = vrot.lane.b32.xlu0 %v2732, 32
    %v2736 = vpop.permute.xlu0 %2735
    %v2737 = vsel %vm1295, %v2734, %v2736
    %v2738 = vsel %vm1295, %v2736, %v2734
    %v2739 = vadd.f32 %v2731, %v2738
    %v2740 = vadd.f32 %v2732, %v2737
    %2741 = vrot.lane.b32.xlu0 %v2739, 64
    %v2742 = vpop.permute.xlu0 %2741
    %2743 = vrot.lane.b32.xlu0 %v2740, 64
    %v2744 = vpop.permute.xlu0 %2743
    %v2745 = vsel %vm1304, %v2742, %v2744
    %v2746 = vsel %vm1304, %v2744, %v2742
    %v2747 = vadd.f32 %v2739, %v2746
    %v2748 = vadd.f32 %v2740, %v2745
    %v2749 = vadd.f32 %v2747, %v2748
    %v2750 = vmul.f32 %v2749, 0.001953125
    %v2751 = vlaneseq
    %v2752 = vshrl.u32 %v2751, 7
    %v2753 = vsub.s32 0, %v2752
    %v2754 = vrot.slane %v2750, %v2753
    %v2755 = vsub.f32 %v2699, %v2754
    %v2756 = vsub.f32 %v2700, %v2754
    %v2757 = vsub.f32 %v2701, %v2754
    %v2758 = vsub.f32 %v2702, %v2754
    %v2759 = vsub.f32 %v2703, %v2754
    %v2760 = vsub.f32 %v2704, %v2754
    %v2761 = vsub.f32 %v2705, %v2754
    %v2762 = vsub.f32 %v2706, %v2754
    %v2763 = vmul.f32 %v2755, %v2755
    %v2764 = vmul.f32 %v2756, %v2756
    %v2765 = vmul.f32 %v2757, %v2757
    %v2766 = vmul.f32 %v2758, %v2758
    %v2767 = vmul.f32 %v2759, %v2759
    %v2768 = vmul.f32 %v2760, %v2760
    %v2769 = vmul.f32 %v2761, %v2761
    %v2770 = vmul.f32 %v2762, %v2762
    %v2771 = vadd.f32 %v2763, %v2765
    %v2772 = vadd.f32 %v2771, %v2767
    %v2773 = vadd.f32 %v2772, %v2769
    %v2774 = vrot.slane %v2773, 4
    %v2775 = vadd.f32 %v2773, %v2774
    %v2776 = vrot.slane %v2775, 2
    %v2777 = vadd.f32 %v2775, %v2776
    %v2778 = vrot.slane %v2777, 1
    %v2779 = vadd.f32 %v2777, %v2778
    %v2780 = vadd.f32 %v2764, %v2766
    %v2781 = vadd.f32 %v2780, %v2768
    %v2782 = vadd.f32 %v2781, %v2770
    %v2783 = vrot.slane %v2782, 4
    %v2784 = vadd.f32 %v2782, %v2783
    %v2785 = vrot.slane %v2784, 2
    %v2786 = vadd.f32 %v2784, %v2785
    %v2787 = vrot.slane %v2786, 1
    %v2788 = vadd.f32 %v2786, %v2787
    %2789 = vrot.lane.b32.xlu0 %v2779, 16
    %v2790 = vpop.permute.xlu0 %2789
    %2791 = vrot.lane.b32.xlu0 %v2788, 16
    %v2792 = vpop.permute.xlu0 %2791
    %v2793 = vsel %vm1286, %v2790, %v2792
    %v2794 = vsel %vm1286, %v2792, %v2790
    %v2795 = vadd.f32 %v2779, %v2794
    %v2796 = vadd.f32 %v2788, %v2793
    %2797 = vrot.lane.b32.xlu0 %v2795, 32
    %v2798 = vpop.permute.xlu0 %2797
    %2799 = vrot.lane.b32.xlu0 %v2796, 32
    %v2800 = vpop.permute.xlu0 %2799
    %v2801 = vsel %vm1295, %v2798, %v2800
    %v2802 = vsel %vm1295, %v2800, %v2798
    %v2803 = vadd.f32 %v2795, %v2802
    %v2804 = vadd.f32 %v2796, %v2801
    %2805 = vrot.lane.b32.xlu0 %v2803, 64
    %v2806 = vpop.permute.xlu0 %2805
    %2807 = vrot.lane.b32.xlu0 %v2804, 64
    %v2808 = vpop.permute.xlu0 %2807
    %v2809 = vsel %vm1304, %v2806, %v2808
    %v2810 = vsel %vm1304, %v2808, %v2806
    %v2811 = vadd.f32 %v2803, %v2810
    %v2812 = vadd.f32 %v2804, %v2809
    %v2813 = vadd.f32 %v2811, %v2812
    %v2814 = vmul.f32 %v2813, 0.001953125
    %v2815 = vadd.f32 %v2814, 1e-05
    %v2816 = vrsqrt.pop %v2815
    %v2817 = vlaneseq
    %v2818 = vshrl.u32 %v2817, 7
    %v2819 = vsub.s32 0, %v2818
    %v2820 = vrot.slane %v2816, %v2819
    %v2821 = vmul.f32 %v2755, %v2820
    %v2822 = vmul.f32 %v2756, %v2820
    %v2823 = vmul.f32 %v2757, %v2820
    %v2824 = vmul.f32 %v2758, %v2820
    %v2825 = vmul.f32 %v2759, %v2820
    %v2826 = vmul.f32 %v2760, %v2820
    %v2827 = vmul.f32 %v2761, %v2820
    %v2828 = vmul.f32 %v2762, %v2820
    %2829 = vst [vmem:[#allocation2 + $0x10] sm:$0xff] %v2821
    %2830 = vst [vmem:[#allocation2 + $0x18] sm:$0xff] %v2822
    %2831 = vst [vmem:[#allocation2 + $0x20] sm:$0xff] %v2823
    %2832 = vst [vmem:[#allocation2 + $0x28] sm:$0xff] %v2824
    %2833 = vst [vmem:[#allocation2 + $0x50] sm:$0xff] %v2825
    %2834 = vst [vmem:[#allocation2 + $0x58] sm:$0xff] %v2826
    %2835 = vst [vmem:[#allocation2 + $0x60] sm:$0xff] %v2827
    %2836 = vst [vmem:[#allocation2 + $0x68] sm:$0xff] %v2828
    %v2837 = vld [vmem:[#allocation2] sm:$0x80]
    %v2838 = vld [vmem:[#allocation2 + $0x8] sm:$0x80]
    %v2839 = vld [vmem:[#allocation2 + $0x10] sm:$0xff]
    %v2840 = vld [vmem:[#allocation2 + $0x18] sm:$0xff]
    %v2841 = vld [vmem:[#allocation2 + $0x20] sm:$0x7f]
    %v2842 = vld [vmem:[#allocation2 + $0x28] sm:$0x7f]
    %v2843 = vld [vmem:[#allocation2 + $0x40] sm:$0x80]
    %v2844 = vld [vmem:[#allocation2 + $0x48] sm:$0x80]
    %v2845 = vld [vmem:[#allocation2 + $0x50] sm:$0xff]
    %v2846 = vld [vmem:[#allocation2 + $0x58] sm:$0xff]
    %v2847 = vld [vmem:[#allocation2 + $0x60] sm:$0x7f]
    %v2848 = vld [vmem:[#allocation2 + $0x68] sm:$0x7f]
    %v2861 = vrot.slane %v2837, 7
    %v2862 = vrot.slane %v2839, 7
    %v2863 = vsel %vm105, %v2861, %v2862
    %v2864 = vrot.slane %v2838, 7
    %v2865 = vrot.slane %v2840, 7
    %v2866 = vsel %vm105, %v2864, %v2865
    %v2867 = vrot.slane %v2841, 7
    %v2868 = vsel %vm105, %v2862, %v2867
    %v2869 = vrot.slane %v2842, 7
    %v2870 = vsel %vm105, %v2865, %v2869
    %v2871 = vrot.slane %v2843, 7
    %v2872 = vrot.slane %v2845, 7
    %v2873 = vsel %vm105, %v2871, %v2872
    %v2874 = vrot.slane %v2844, 7
    %v2875 = vrot.slane %v2846, 7
    %v2876 = vsel %vm105, %v2874, %v2875
    %v2877 = vrot.slane %v2847, 7
    %v2878 = vsel %vm105, %v2872, %v2877
    %v2879 = vrot.slane %v2848, 7
    %v2880 = vsel %vm105, %v2875, %v2879
    %s2889 = scalar_lea.vmem [#allocation6], 6144
    %v2890 = vld [vmem:[%s2889] sm:$0xff]
    %v2891 = vld [vmem:[%s2889 + $0x8] sm:$0xff]
    %v2892 = vld [vmem:[%s2889 + $0x10] sm:$0xff]
    %v2893 = vld [vmem:[%s2889 + $0x18] sm:$0xff]
    %v2894 = vld [vmem:[%s2889 + $0x20] sm:$0xff]
    %v2895 = vld [vmem:[%s2889 + $0x28] sm:$0xff]
    %v2896 = vld [vmem:[%s2889 + $0x30] sm:$0xff]
    %v2897 = vld [vmem:[%s2889 + $0x38] sm:$0xff]
    %v2898 = vld [vmem:[%s2889 + $0x40] sm:$0xff]
    %v2899 = vld [vmem:[%s2889 + $0x48] sm:$0xff]
    %v2900 = vld [vmem:[%s2889 + $0x50] sm:$0xff]
    %v2901 = vld [vmem:[%s2889 + $0x58] sm:$0xff]
    %v2902 = vld [vmem:[%s2889 + $0x60] sm:$0xff]
    %v2903 = vld [vmem:[%s2889 + $0x68] sm:$0xff]
    %v2904 = vld [vmem:[%s2889 + $0x70] sm:$0xff]
    %v2905 = vld [vmem:[%s2889 + $0x78] sm:$0xff]
    %v2906 = vld [vmem:[%s2889 + $0x80] sm:$0xff]
    %v2907 = vld [vmem:[%s2889 + $0x88] sm:$0xff]
    %v2908 = vld [vmem:[%s2889 + $0x90] sm:$0xff]
    %v2909 = vld [vmem:[%s2889 + $0x98] sm:$0xff]
    %v2910 = vld [vmem:[%s2889 + $0xa0] sm:$0xff]
    %v2911 = vld [vmem:[%s2889 + $0xa8] sm:$0xff]
    %v2912 = vld [vmem:[%s2889 + $0xb0] sm:$0xff]
    %v2913 = vld [vmem:[%s2889 + $0xb8] sm:$0xff]
    %v2914 = vld [vmem:[%s2889 + $0xc0] sm:$0xff]
    %v2915 = vld [vmem:[%s2889 + $0xc8] sm:$0xff]
    %v2916 = vld [vmem:[%s2889 + $0xd0] sm:$0xff]
    %v2917 = vld [vmem:[%s2889 + $0xd8] sm:$0xff]
    %v2918 = vld [vmem:[%s2889 + $0xe0] sm:$0xff]
    %v2919 = vld [vmem:[%s2889 + $0xe8] sm:$0xff]
    %v2920 = vld [vmem:[%s2889 + $0xf0] sm:$0xff]
    %v2921 = vld [vmem:[%s2889 + $0xf8] sm:$0xff]
    %v2922 = vld [vmem:[%s2889 + $0x100] sm:$0xff]
    %v2923 = vld [vmem:[%s2889 + $0x108] sm:$0xff]
    %v2924 = vld [vmem:[%s2889 + $0x110] sm:$0xff]
    %v2925 = vld [vmem:[%s2889 + $0x118] sm:$0xff]
    %v2926 = vld [vmem:[%s2889 + $0x120] sm:$0xff]
    %v2927 = vld [vmem:[%s2889 + $0x128] sm:$0xff]
    %v2928 = vld [vmem:[%s2889 + $0x130] sm:$0xff]
    %v2929 = vld [vmem:[%s2889 + $0x138] sm:$0xff]
    %v2930 = vld [vmem:[%s2889 + $0x140] sm:$0xff]
    %v2931 = vld [vmem:[%s2889 + $0x148] sm:$0xff]
    %v2932 = vld [vmem:[%s2889 + $0x150] sm:$0xff]
    %v2933 = vld [vmem:[%s2889 + $0x158] sm:$0xff]
    %v2934 = vld [vmem:[%s2889 + $0x160] sm:$0xff]
    %v2935 = vld [vmem:[%s2889 + $0x168] sm:$0xff]
    %v2936 = vld [vmem:[%s2889 + $0x170] sm:$0xff]
    %v2937 = vld [vmem:[%s2889 + $0x178] sm:$0xff]
    %v2938 = vld [vmem:[%s2889 + $0x180] sm:$0xff]
    %v2939 = vld [vmem:[%s2889 + $0x188] sm:$0xff]
    %v2940 = vld [vmem:[%s2889 + $0x190] sm:$0xff]
    %v2941 = vld [vmem:[%s2889 + $0x198] sm:$0xff]
    %v2942 = vld [vmem:[%s2889 + $0x1a0] sm:$0xff]
    %v2943 = vld [vmem:[%s2889 + $0x1a8] sm:$0xff]
    %v2944 = vld [vmem:[%s2889 + $0x1b0] sm:$0xff]
    %v2945 = vld [vmem:[%s2889 + $0x1b8] sm:$0xff]
    %v2946 = vld [vmem:[%s2889 + $0x1c0] sm:$0xff]
    %v2947 = vld [vmem:[%s2889 + $0x1c8] sm:$0xff]
    %v2948 = vld [vmem:[%s2889 + $0x1d0] sm:$0xff]
    %v2949 = vld [vmem:[%s2889 + $0x1d8] sm:$0xff]
    %v2950 = vld [vmem:[%s2889 + $0x1e0] sm:$0xff]
    %v2951 = vld [vmem:[%s2889 + $0x1e8] sm:$0xff]
    %v2952 = vld [vmem:[%s2889 + $0x1f0] sm:$0xff]
    %v2953 = vld [vmem:[%s2889 + $0x1f8] sm:$0xff]
    %v2954 = vld [vmem:[#allocation2 + $0x20] sm:$0xff]
    %v2955 = vld [vmem:[#allocation2 + $0x28] sm:$0xff]
    %v2956 = vld [vmem:[#allocation2 + $0x60] sm:$0xff]
    %v2957 = vld [vmem:[#allocation2 + $0x68] sm:$0xff]
    %s2958 = scalar_lea.vmem [#allocation6], 6656
    %v2959 = vld [vmem:[%s2958] sm:$0xff]
    %v2960 = vld [vmem:[%s2958 + $0x8] sm:$0xff]
    %v2961 = vld [vmem:[%s2958 + $0x10] sm:$0xff]
    %v2962 = vld [vmem:[%s2958 + $0x18] sm:$0xff]
    %v2963 = vld [vmem:[%s2958 + $0x20] sm:$0xff]
    %v2964 = vld [vmem:[%s2958 + $0x28] sm:$0xff]
    %v2965 = vld [vmem:[%s2958 + $0x30] sm:$0xff]
    %v2966 = vld [vmem:[%s2958 + $0x38] sm:$0xff]
    %v2967 = vld [vmem:[%s2958 + $0x40] sm:$0xff]
    %v2968 = vld [vmem:[%s2958 + $0x48] sm:$0xff]
    %v2969 = vld [vmem:[%s2958 + $0x50] sm:$0xff]
    %v2970 = vld [vmem:[%s2958 + $0x58] sm:$0xff]
    %v2971 = vld [vmem:[%s2958 + $0x60] sm:$0xff]
    %v2972 = vld [vmem:[%s2958 + $0x68] sm:$0xff]
    %v2973 = vld [vmem:[%s2958 + $0x70] sm:$0xff]
    %v2974 = vld [vmem:[%s2958 + $0x78] sm:$0xff]
    %v2975 = vld [vmem:[%s2958 + $0x80] sm:$0xff]
    %v2976 = vld [vmem:[%s2958 + $0x88] sm:$0xff]
    %v2977 = vld [vmem:[%s2958 + $0x90] sm:$0xff]
    %v2978 = vld [vmem:[%s2958 + $0x98] sm:$0xff]
    %v2979 = vld [vmem:[%s2958 + $0xa0] sm:$0xff]
    %v2980 = vld [vmem:[%s2958 + $0xa8] sm:$0xff]
    %v2981 = vld [vmem:[%s2958 + $0xb0] sm:$0xff]
    %v2982 = vld [vmem:[%s2958 + $0xb8] sm:$0xff]
    %v2983 = vld [vmem:[%s2958 + $0xc0] sm:$0xff]
    %v2984 = vld [vmem:[%s2958 + $0xc8] sm:$0xff]
    %v2985 = vld [vmem:[%s2958 + $0xd0] sm:$0xff]
    %v2986 = vld [vmem:[%s2958 + $0xd8] sm:$0xff]
    %v2987 = vld [vmem:[%s2958 + $0xe0] sm:$0xff]
    %v2988 = vld [vmem:[%s2958 + $0xe8] sm:$0xff]
    %v2989 = vld [vmem:[%s2958 + $0xf0] sm:$0xff]
    %v2990 = vld [vmem:[%s2958 + $0xf8] sm:$0xff]
    %v2991 = vld [vmem:[%s2958 + $0x100] sm:$0xff]
    %v2992 = vld [vmem:[%s2958 + $0x108] sm:$0xff]
    %v2993 = vld [vmem:[%s2958 + $0x110] sm:$0xff]
    %v2994 = vld [vmem:[%s2958 + $0x118] sm:$0xff]
    %v2995 = vld [vmem:[%s2958 + $0x120] sm:$0xff]
    %v2996 = vld [vmem:[%s2958 + $0x128] sm:$0xff]
    %v2997 = vld [vmem:[%s2958 + $0x130] sm:$0xff]
    %v2998 = vld [vmem:[%s2958 + $0x138] sm:$0xff]
    %v2999 = vld [vmem:[%s2958 + $0x140] sm:$0xff]
    %v3000 = vld [vmem:[%s2958 + $0x148] sm:$0xff]
    %v3001 = vld [vmem:[%s2958 + $0x150] sm:$0xff]
    %v3002 = vld [vmem:[%s2958 + $0x158] sm:$0xff]
    %v3003 = vld [vmem:[%s2958 + $0x160] sm:$0xff]
    %v3004 = vld [vmem:[%s2958 + $0x168] sm:$0xff]
    %v3005 = vld [vmem:[%s2958 + $0x170] sm:$0xff]
    %v3006 = vld [vmem:[%s2958 + $0x178] sm:$0xff]
    %v3007 = vld [vmem:[%s2958 + $0x180] sm:$0xff]
    %v3008 = vld [vmem:[%s2958 + $0x188] sm:$0xff]
    %v3009 = vld [vmem:[%s2958 + $0x190] sm:$0xff]
    %v3010 = vld [vmem:[%s2958 + $0x198] sm:$0xff]
    %v3011 = vld [vmem:[%s2958 + $0x1a0] sm:$0xff]
    %v3012 = vld [vmem:[%s2958 + $0x1a8] sm:$0xff]
    %v3013 = vld [vmem:[%s2958 + $0x1b0] sm:$0xff]
    %v3014 = vld [vmem:[%s2958 + $0x1b8] sm:$0xff]
    %v3015 = vld [vmem:[%s2958 + $0x1c0] sm:$0xff]
    %v3016 = vld [vmem:[%s2958 + $0x1c8] sm:$0xff]
    %v3017 = vld [vmem:[%s2958 + $0x1d0] sm:$0xff]
    %v3018 = vld [vmem:[%s2958 + $0x1d8] sm:$0xff]
    %v3019 = vld [vmem:[%s2958 + $0x1e0] sm:$0xff]
    %v3020 = vld [vmem:[%s2958 + $0x1e8] sm:$0xff]
    %v3021 = vld [vmem:[%s2958 + $0x1f0] sm:$0xff]
    %v3022 = vld [vmem:[%s2958 + $0x1f8] sm:$0xff]
    %3023 = vmatprep.subr.mxu0 %v2960
    %3024 = vmatpush1.msra.mxu0 %v2959
    %3025 = vmatprep.subr.mxu0 %v2962
    %3026 = vmatpush1.msra.mxu0 %v2961
    %3027 = vmatprep.subr.mxu0 %v2964
    %3028 = vmatpush1.msra.mxu0 %v2963
    %3029 = vmatprep.subr.mxu0 %v2966
    %3030 = vmatpush1.msra.mxu0 %v2965
    %3031 = vmatprep.subr.mxu0 %v2968
    %3032 = vmatpush1.msra.mxu0 %v2967
    %3033 = vmatprep.subr.mxu0 %v2970
    %3034 = vmatpush1.msra.mxu0 %v2969
    %3035 = vmatprep.subr.mxu0 %v2972
    %3036 = vmatpush1.msra.mxu0 %v2971
    %3037 = vmatprep.subr.mxu0 %v2974
    %3038 = vmatpush1.msra.mxu0 %v2973
    %3039 = vmatprep.subr.mxu0 %v2976
    %3040 = vmatpush1.msra.mxu0 %v2975
    %3041 = vmatprep.subr.mxu0 %v2978
    %3042 = vmatpush1.msra.mxu0 %v2977
    %3043 = vmatprep.subr.mxu0 %v2980
    %3044 = vmatpush1.msra.mxu0 %v2979
    %3045 = vmatprep.subr.mxu0 %v2982
    %3046 = vmatpush1.msra.mxu0 %v2981
    %3047 = vmatprep.subr.mxu0 %v2984
    %3048 = vmatpush1.msra.mxu0 %v2983
    %3049 = vmatprep.subr.mxu0 %v2986
    %3050 = vmatpush1.msra.mxu0 %v2985
    %3051 = vmatprep.subr.mxu0 %v2988
    %3052 = vmatpush1.msra.mxu0 %v2987
    %3053 = vmatprep.subr.mxu0 %v2990
    %3054 = vmatpush1.msra.mxu0 %v2989
    %3055 = vmatprep.subr.mxu0 %v2992
    %3056 = vmatpush1.msra.mxu0 %v2991
    %3057 = vmatprep.subr.mxu0 %v2994
    %3058 = vmatpush1.msra.mxu0 %v2993
    %3059 = vmatprep.subr.mxu0 %v2996
    %3060 = vmatpush1.msra.mxu0 %v2995
    %3061 = vmatprep.subr.mxu0 %v2998
    %3062 = vmatpush1.msra.mxu0 %v2997
    %3063 = vmatprep.subr.mxu0 %v3000
    %3064 = vmatpush1.msra.mxu0 %v2999
    %3065 = vmatprep.subr.mxu0 %v3002
    %3066 = vmatpush1.msra.mxu0 %v3001
    %3067 = vmatprep.subr.mxu0 %v3004
    %3068 = vmatpush1.msra.mxu0 %v3003
    %3069 = vmatprep.subr.mxu0 %v3006
    %3070 = vmatpush1.msra.mxu0 %v3005
    %3071 = vmatprep.subr.mxu0 %v3008
    %3072 = vmatpush1.msra.mxu0 %v3007
    %3073 = vmatprep.subr.mxu0 %v3010
    %3074 = vmatpush1.msra.mxu0 %v3009
    %3075 = vmatprep.subr.mxu0 %v3012
    %3076 = vmatpush1.msra.mxu0 %v3011
    %3077 = vmatprep.subr.mxu0 %v3014
    %3078 = vmatpush1.msra.mxu0 %v3013
    %3079 = vmatprep.subr.mxu0 %v3016
    %3080 = vmatpush1.msra.mxu0 %v3015
    %3081 = vmatprep.subr.mxu0 %v3018
    %3082 = vmatpush1.msra.mxu0 %v3017
    %3083 = vmatprep.subr.mxu0 %v3020
    %3084 = vmatpush1.msra.mxu0 %v3019
    %3085 = vmatprep.subr.mxu0 %v3022
    %3086 = vmatpush1.msra.mxu0 %v3021
    %3087 = vmatprep.mubr.f32.mxu0 %v2840
    %3088 = vmatmul.mubr.f32.gmra.mrb[0].mxu0 %v2839
    %v3089 = vpop.f32.mrb[0].mxu0
    %v3090 = vadd.f32 0.0, %v3089
    %v3091 = vpop.f32.mrb[0].mxu0
    %v3092 = vadd.f32 0.0, %v3091
    %3093 = vmatprep.mubr.f32.mxu0 %v2955
    %3094 = vmatmul.mubr.f32.gmra.mrb[0].mxu0 %v2954
    %v3095 = vpop.f32.mrb[0].mxu0
    %v3096 = vadd.f32 0.0, %v3095
    %v3097 = vpop.f32.mrb[0].mxu0
    %v3098 = vadd.f32 0.0, %v3097
    %3099 = vmatprep.mubr.f32.mxu0 %v2846
    %3100 = vmatmul.mubr.f32.gmra.mrb[0].mxu0 %v2845
    %v3101 = vpop.f32.mrb[0].mxu0
    %v3102 = vadd.f32 0.0, %v3101
    %v3103 = vpop.f32.mrb[0].mxu0
    %v3104 = vadd.f32 0.0, %v3103
    %3105 = vmatprep.mubr.f32.mxu0 %v2957
    %3106 = vmatmul.mubr.f32.gmra.mrb[0].mxu0 %v2956
    %v3107 = vpop.f32.mrb[0].mxu0
    %v3108 = vadd.f32 0.0, %v3107
    %v3109 = vpop.f32.mrb[0].mxu0
    %v3110 = vadd.f32 0.0, %v3109
    %3111 = vdwg.mxu0
    %3112 = vmatprep.subr.mxu0 %v2891
    %3113 = vmatpush1.msra.mxu0 %v2890
    %3114 = vmatprep.subr.mxu0 %v2893
    %3115 = vmatpush1.msra.mxu0 %v2892
    %3116 = vmatprep.subr.mxu0 %v2895
    %3117 = vmatpush1.msra.mxu0 %v2894
    %3118 = vmatprep.subr.mxu0 %v2897
    %3119 = vmatpush1.msra.mxu0 %v2896
    %3120 = vmatprep.subr.mxu0 %v2899
    %3121 = vmatpush1.msra.mxu0 %v2898
    %3122 = vmatprep.subr.mxu0 %v2901
    %3123 = vmatpush1.msra.mxu0 %v2900
    %3124 = vmatprep.subr.mxu0 %v2903
    %3125 = vmatpush1.msra.mxu0 %v2902
    %3126 = vmatprep.subr.mxu0 %v2905
    %3127 = vmatpush1.msra.mxu0 %v2904
    %3128 = vmatprep.subr.mxu0 %v2907
    %3129 = vmatpush1.msra.mxu0 %v2906
    %3130 = vmatprep.subr.mxu0 %v2909
    %3131 = vmatpush1.msra.mxu0 %v2908
    %3132 = vmatprep.subr.mxu0 %v2911
    %3133 = vmatpush1.msra.mxu0 %v2910
    %3134 = vmatprep.subr.mxu0 %v2913
    %3135 = vmatpush1.msra.mxu0 %v2912
    %3136 = vmatprep.subr.mxu0 %v2915
    %3137 = vmatpush1.msra.mxu0 %v2914
    %3138 = vmatprep.subr.mxu0 %v2917
    %3139 = vmatpush1.msra.mxu0 %v2916
    %3140 = vmatprep.subr.mxu0 %v2919
    %3141 = vmatpush1.msra.mxu0 %v2918
    %3142 = vmatprep.subr.mxu0 %v2921
    %3143 = vmatpush1.msra.mxu0 %v2920
    %3144 = vmatprep.subr.mxu0 %v2923
    %3145 = vmatpush1.msra.mxu0 %v2922
    %3146 = vmatprep.subr.mxu0 %v2925
    %3147 = vmatpush1.msra.mxu0 %v2924
    %3148 = vmatprep.subr.mxu0 %v2927
    %3149 = vmatpush1.msra.mxu0 %v2926
    %3150 = vmatprep.subr.mxu0 %v2929
    %3151 = vmatpush1.msra.mxu0 %v2928
    %3152 = vmatprep.subr.mxu0 %v2931
    %3153 = vmatpush1.msra.mxu0 %v2930
    %3154 = vmatprep.subr.mxu0 %v2933
    %3155 = vmatpush1.msra.mxu0 %v2932
    %3156 = vmatprep.subr.mxu0 %v2935
    %3157 = vmatpush1.msra.mxu0 %v2934
    %3158 = vmatprep.subr.mxu0 %v2937
    %3159 = vmatpush1.msra.mxu0 %v2936
    %3160 = vmatprep.subr.mxu0 %v2939
    %3161 = vmatpush1.msra.mxu0 %v2938
    %3162 = vmatprep.subr.mxu0 %v2941
    %3163 = vmatpush1.msra.mxu0 %v2940
    %3164 = vmatprep.subr.mxu0 %v2943
    %3165 = vmatpush1.msra.mxu0 %v2942
    %3166 = vmatprep.subr.mxu0 %v2945
    %3167 = vmatpush1.msra.mxu0 %v2944
    %3168 = vmatprep.subr.mxu0 %v2947
    %3169 = vmatpush1.msra.mxu0 %v2946
    %3170 = vmatprep.subr.mxu0 %v2949
    %3171 = vmatpush1.msra.mxu0 %v2948
    %3172 = vmatprep.subr.mxu0 %v2951
    %3173 = vmatpush1.msra.mxu0 %v2950
    %3174 = vmatprep.subr.mxu0 %v2953
    %3175 = vmatpush1.msra.mxu0 %v2952
    %3176 = vmatprep.mubr.f32.mxu0 %v2866
    %3177 = vmatmul.mubr.f32.gmra.mrb[0].mxu0 %v2863
    %v3178 = vpop.f32.mrb[0].mxu0
    %v3179 = vadd.f32 %v3090, %v3178
    %v3180 = vpop.f32.mrb[0].mxu0
    %v3181 = vadd.f32 %v3092, %v3180
    %3182 = vmatprep.mubr.f32.mxu0 %v2870
    %3183 = vmatmul.mubr.f32.gmra.mrb[0].mxu0 %v2868
    %v3184 = vpop.f32.mrb[0].mxu0
    %v3185 = vadd.f32 %v3096, %v3184
    %v3186 = vpop.f32.mrb[0].mxu0
    %v3187 = vadd.f32 %v3098, %v3186
    %3188 = vmatprep.mubr.f32.mxu0 %v2876
    %3189 = vmatmul.mubr.f32.gmra.mrb[0].mxu0 %v2873
    %v3190 = vpop.f32.mrb[0].mxu0
    %v3191 = vadd.f32 %v3102, %v3190
    %v3192 = vpop.f32.mrb[0].mxu0
    %v3193 = vadd.f32 %v3104, %v3192
    %3194 = vmatprep.mubr.f32.mxu0 %v2880
    %3195 = vmatmul.mubr.f32.gmra.mrb[0].mxu0 %v2878
    %v3196 = vpop.f32.mrb[0].mxu0
    %v3197 = vadd.f32 %v3108, %v3196
    %v3198 = vpop.f32.mrb[0].mxu0
    %v3199 = vadd.f32 %v3110, %v3198
    %3200 = vdwg.mxu0
    %v3201 = vld [vmem:[#allocation2 + $0x10] sm:$0xfe]
    %v3202 = vld [vmem:[#allocation2 + $0x18] sm:$0xfe]
    %v3203 = vld [vmem:[#allocation2 + $0x20] sm:$0xff]
    %v3204 = vld [vmem:[#allocation2 + $0x28] sm:$0xff]
    %v3205 = vld [vmem:[#allocation2 + $0x30] sm:$0x1]
    %v3206 = vld [vmem:[#allocation2 + $0x38] sm:$0x1]
    %v3207 = vld [vmem:[#allocation2 + $0x50] sm:$0xfe]
    %v3208 = vld [vmem:[#allocation2 + $0x58] sm:$0xfe]
    %v3209 = vld [vmem:[#allocation2 + $0x60] sm:$0xff]
    %v3210 = vld [vmem:[#allocation2 + $0x68] sm:$0xff]
    %v3211 = vld [vmem:[#allocation2 + $0x70] sm:$0x1]
    %v3212 = vld [vmem:[#allocation2 + $0x78] sm:$0x1]
    %v3225 = vrot.slane %v3201, 1
    %v3226 = vrot.slane %v3203, 1
    %v3227 = vsel %vm469, %v3225, %v3226
    %v3228 = vrot.slane %v3202, 1
    %v3229 = vrot.slane %v3204, 1
    %v3230 = vsel %vm469, %v3228, %v3229
    %v3231 = vrot.slane %v3205, 1
    %v3232 = vsel %vm469, %v3226, %v3231
    %v3233 = vrot.slane %v3206, 1
    %v3234 = vsel %vm469, %v3229, %v3233
    %v3235 = vrot.slane %v3207, 1
    %v3236 = vrot.slane %v3209, 1
    %v3237 = vsel %vm469, %v3235, %v3236
    %v3238 = vrot.slane %v3208, 1
    %v3239 = vrot.slane %v3210, 1
    %v3240 = vsel %vm469, %v3238, %v3239
    %v3241 = vrot.slane %v3211, 1
    %v3242 = vsel %vm469, %v3236, %v3241
    %v3243 = vrot.slane %v3212, 1
    %v3244 = vsel %vm469, %v3239, %v3243
    %s3253 = scalar_lea.vmem [#allocation6], 7168
    %v3254 = vld [vmem:[%s3253] sm:$0xff]
    %v3255 = vld [vmem:[%s3253 + $0x8] sm:$0xff]
    %v3256 = vld [vmem:[%s3253 + $0x10] sm:$0xff]
    %v3257 = vld [vmem:[%s3253 + $0x18] sm:$0xff]
    %v3258 = vld [vmem:[%s3253 + $0x20] sm:$0xff]
    %v3259 = vld [vmem:[%s3253 + $0x28] sm:$0xff]
    %v3260 = vld [vmem:[%s3253 + $0x30] sm:$0xff]
    %v3261 = vld [vmem:[%s3253 + $0x38] sm:$0xff]
    %v3262 = vld [vmem:[%s3253 + $0x40] sm:$0xff]
    %v3263 = vld [vmem:[%s3253 + $0x48] sm:$0xff]
    %v3264 = vld [vmem:[%s3253 + $0x50] sm:$0xff]
    %v3265 = vld [vmem:[%s3253 + $0x58] sm:$0xff]
    %v3266 = vld [vmem:[%s3253 + $0x60] sm:$0xff]
    %v3267 = vld [vmem:[%s3253 + $0x68] sm:$0xff]
    %v3268 = vld [vmem:[%s3253 + $0x70] sm:$0xff]
    %v3269 = vld [vmem:[%s3253 + $0x78] sm:$0xff]
    %v3270 = vld [vmem:[%s3253 + $0x80] sm:$0xff]
    %v3271 = vld [vmem:[%s3253 + $0x88] sm:$0xff]
    %v3272 = vld [vmem:[%s3253 + $0x90] sm:$0xff]
    %v3273 = vld [vmem:[%s3253 + $0x98] sm:$0xff]
    %v3274 = vld [vmem:[%s3253 + $0xa0] sm:$0xff]
    %v3275 = vld [vmem:[%s3253 + $0xa8] sm:$0xff]
    %v3276 = vld [vmem:[%s3253 + $0xb0] sm:$0xff]
    %v3277 = vld [vmem:[%s3253 + $0xb8] sm:$0xff]
    %v3278 = vld [vmem:[%s3253 + $0xc0] sm:$0xff]
    %v3279 = vld [vmem:[%s3253 + $0xc8] sm:$0xff]
    %v3280 = vld [vmem:[%s3253 + $0xd0] sm:$0xff]
    %v3281 = vld [vmem:[%s3253 + $0xd8] sm:$0xff]
    %v3282 = vld [vmem:[%s3253 + $0xe0] sm:$0xff]
    %v3283 = vld [vmem:[%s3253 + $0xe8] sm:$0xff]
    %v3284 = vld [vmem:[%s3253 + $0xf0] sm:$0xff]
    %v3285 = vld [vmem:[%s3253 + $0xf8] sm:$0xff]
    %v3286 = vld [vmem:[%s3253 + $0x100] sm:$0xff]
    %v3287 = vld [vmem:[%s3253 + $0x108] sm:$0xff]
    %v3288 = vld [vmem:[%s3253 + $0x110] sm:$0xff]
    %v3289 = vld [vmem:[%s3253 + $0x118] sm:$0xff]
    %v3290 = vld [vmem:[%s3253 + $0x120] sm:$0xff]
    %v3291 = vld [vmem:[%s3253 + $0x128] sm:$0xff]
    %v3292 = vld [vmem:[%s3253 + $0x130] sm:$0xff]
    %v3293 = vld [vmem:[%s3253 + $0x138] sm:$0xff]
    %v3294 = vld [vmem:[%s3253 + $0x140] sm:$0xff]
    %v3295 = vld [vmem:[%s3253 + $0x148] sm:$0xff]
    %v3296 = vld [vmem:[%s3253 + $0x150] sm:$0xff]
    %v3297 = vld [vmem:[%s3253 + $0x158] sm:$0xff]
    %v3298 = vld [vmem:[%s3253 + $0x160] sm:$0xff]
    %v3299 = vld [vmem:[%s3253 + $0x168] sm:$0xff]
    %v3300 = vld [vmem:[%s3253 + $0x170] sm:$0xff]
    %v3301 = vld [vmem:[%s3253 + $0x178] sm:$0xff]
    %v3302 = vld [vmem:[%s3253 + $0x180] sm:$0xff]
    %v3303 = vld [vmem:[%s3253 + $0x188] sm:$0xff]
    %v3304 = vld [vmem:[%s3253 + $0x190] sm:$0xff]
    %v3305 = vld [vmem:[%s3253 + $0x198] sm:$0xff]
    %v3306 = vld [vmem:[%s3253 + $0x1a0] sm:$0xff]
    %v3307 = vld [vmem:[%s3253 + $0x1a8] sm:$0xff]
    %v3308 = vld [vmem:[%s3253 + $0x1b0] sm:$0xff]
    %v3309 = vld [vmem:[%s3253 + $0x1b8] sm:$0xff]
    %v3310 = vld [vmem:[%s3253 + $0x1c0] sm:$0xff]
    %v3311 = vld [vmem:[%s3253 + $0x1c8] sm:$0xff]
    %v3312 = vld [vmem:[%s3253 + $0x1d0] sm:$0xff]
    %v3313 = vld [vmem:[%s3253 + $0x1d8] sm:$0xff]
    %v3314 = vld [vmem:[%s3253 + $0x1e0] sm:$0xff]
    %v3315 = vld [vmem:[%s3253 + $0x1e8] sm:$0xff]
    %v3316 = vld [vmem:[%s3253 + $0x1f0] sm:$0xff]
    %v3317 = vld [vmem:[%s3253 + $0x1f8] sm:$0xff]
    %3318 = vmatprep.subr.mxu0 %v3255
    %3319 = vmatpush1.msra.mxu0 %v3254
    %3320 = vmatprep.subr.mxu0 %v3257
    %3321 = vmatpush1.msra.mxu0 %v3256
    %3322 = vmatprep.subr.mxu0 %v3259
    %3323 = vmatpush1.msra.mxu0 %v3258
    %3324 = vmatprep.subr.mxu0 %v3261
    %3325 = vmatpush1.msra.mxu0 %v3260
    %3326 = vmatprep.subr.mxu0 %v3263
    %3327 = vmatpush1.msra.mxu0 %v3262
    %3328 = vmatprep.subr.mxu0 %v3265
    %3329 = vmatpush1.msra.mxu0 %v3264
    %3330 = vmatprep.subr.mxu0 %v3267
    %3331 = vmatpush1.msra.mxu0 %v3266
    %3332 = vmatprep.subr.mxu0 %v3269
    %3333 = vmatpush1.msra.mxu0 %v3268
    %3334 = vmatprep.subr.mxu0 %v3271
    %3335 = vmatpush1.msra.mxu0 %v3270
    %3336 = vmatprep.subr.mxu0 %v3273
    %3337 = vmatpush1.msra.mxu0 %v3272
    %3338 = vmatprep.subr.mxu0 %v3275
    %3339 = vmatpush1.msra.mxu0 %v3274
    %3340 = vmatprep.subr.mxu0 %v3277
    %3341 = vmatpush1.msra.mxu0 %v3276
    %3342 = vmatprep.subr.mxu0 %v3279
    %3343 = vmatpush1.msra.mxu0 %v3278
    %3344 = vmatprep.subr.mxu0 %v3281
    %3345 = vmatpush1.msra.mxu0 %v3280
    %3346 = vmatprep.subr.mxu0 %v3283
    %3347 = vmatpush1.msra.mxu0 %v3282
    %3348 = vmatprep.subr.mxu0 %v3285
    %3349 = vmatpush1.msra.mxu0 %v3284
    %3350 = vmatprep.subr.mxu0 %v3287
    %3351 = vmatpush1.msra.mxu0 %v3286
    %3352 = vmatprep.subr.mxu0 %v3289
    %3353 = vmatpush1.msra.mxu0 %v3288
    %3354 = vmatprep.subr.mxu0 %v3291
    %3355 = vmatpush1.msra.mxu0 %v3290
    %3356 = vmatprep.subr.mxu0 %v3293
    %3357 = vmatpush1.msra.mxu0 %v3292
    %3358 = vmatprep.subr.mxu0 %v3295
    %3359 = vmatpush1.msra.mxu0 %v3294
    %3360 = vmatprep.subr.mxu0 %v3297
    %3361 = vmatpush1.msra.mxu0 %v3296
    %3362 = vmatprep.subr.mxu0 %v3299
    %3363 = vmatpush1.msra.mxu0 %v3298
    %3364 = vmatprep.subr.mxu0 %v3301
    %3365 = vmatpush1.msra.mxu0 %v3300
    %3366 = vmatprep.subr.mxu0 %v3303
    %3367 = vmatpush1.msra.mxu0 %v3302
    %3368 = vmatprep.subr.mxu0 %v3305
    %3369 = vmatpush1.msra.mxu0 %v3304
    %3370 = vmatprep.subr.mxu0 %v3307
    %3371 = vmatpush1.msra.mxu0 %v3306
    %3372 = vmatprep.subr.mxu0 %v3309
    %3373 = vmatpush1.msra.mxu0 %v3308
    %3374 = vmatprep.subr.mxu0 %v3311
    %3375 = vmatpush1.msra.mxu0 %v3310
    %3376 = vmatprep.subr.mxu0 %v3313
    %3377 = vmatpush1.msra.mxu0 %v3312
    %3378 = vmatprep.subr.mxu0 %v3315
    %3379 = vmatpush1.msra.mxu0 %v3314
    %3380 = vmatprep.subr.mxu0 %v3317
    %3381 = vmatpush1.msra.mxu0 %v3316
    %3382 = vmatprep.mubr.f32.mxu0 %v3230
    %3383 = vmatmul.mubr.f32.gmra.mrb[0].mxu0 %v3227
    %v3384 = vpop.f32.mrb[0].mxu0
    %v3385 = vadd.f32 0.0, %v3384
    %v3386 = vpop.f32.mrb[0].mxu0
    %v3387 = vadd.f32 0.0, %v3386
    %3388 = vmatprep.mubr.f32.mxu0 %v3234
    %3389 = vmatmul.mubr.f32.gmra.mrb[0].mxu0 %v3232
    %v3390 = vpop.f32.mrb[0].mxu0
    %v3391 = vadd.f32 0.0, %v3390
    %v3392 = vpop.f32.mrb[0].mxu0
    %v3393 = vadd.f32 0.0, %v3392
    %3394 = vmatprep.mubr.f32.mxu0 %v3240
    %3395 = vmatmul.mubr.f32.gmra.mrb[0].mxu0 %v3237
    %v3396 = vpop.f32.mrb[0].mxu0
    %v3397 = vadd.f32 0.0, %v3396
    %v3398 = vpop.f32.mrb[0].mxu0
    %v3399 = vadd.f32 0.0, %v3398
    %3400 = vmatprep.mubr.f32.mxu0 %v3244
    %3401 = vmatmul.mubr.f32.gmra.mrb[0].mxu0 %v3242
    %v3402 = vpop.f32.mrb[0].mxu0
    %v3403 = vadd.f32 0.0, %v3402
    %v3404 = vpop.f32.mrb[0].mxu0
    %v3405 = vadd.f32 0.0, %v3404
    %3406 = vdwg.mxu0
    %v3407 = vadd.f32 %v3179, %v3385
    %v3408 = vadd.f32 %v3181, %v3387
    %v3409 = vadd.f32 %v3185, %v3391
    %v3410 = vadd.f32 %v3187, %v3393
    %v3411 = vadd.f32 %v3191, %v3397
    %v3412 = vadd.f32 %v3193, %v3399
    %v3413 = vadd.f32 %v3197, %v3403
    %v3414 = vadd.f32 %v3199, %v3405
    %v3415 = vmax.f32 %v3407, 0.0
    %v3416 = vmax.f32 %v3408, 0.0
    %v3417 = vmax.f32 %v3409, 0.0
    %v3418 = vmax.f32 %v3410, 0.0
    %v3419 = vmax.f32 %v3411, 0.0
    %v3420 = vmax.f32 %v3412, 0.0
    %v3421 = vmax.f32 %v3413, 0.0
    %v3422 = vmax.f32 %v3414, 0.0
    %v3423 = vadd.f32 %v3415, %v1983
    %v3424 = vadd.f32 %v3416, %v1984
    %v3425 = vadd.f32 %v3417, %v1985
    %v3426 = vadd.f32 %v3418, %v1986
    %v3427 = vadd.f32 %v3419, %v1987
    %v3428 = vadd.f32 %v3420, %v1988
    %v3429 = vadd.f32 %v3421, %v1989
    %v3430 = vadd.f32 %v3422, %v1990
    %v3431 = vadd.f32 %v3423, %v3425
    %v3432 = vadd.f32 %v3431, %v3427
    %v3433 = vadd.f32 %v3432, %v3429
    %v3434 = vrot.slane %v3433, 4
    %v3435 = vadd.f32 %v3433, %v3434
    %v3436 = vrot.slane %v3435, 2
    %v3437 = vadd.f32 %v3435, %v3436
    %v3438 = vrot.slane %v3437, 1
    %v3439 = vadd.f32 %v3437, %v3438
    %v3440 = vadd.f32 %v3424, %v3426
    %v3441 = vadd.f32 %v3440, %v3428
    %v3442 = vadd.f32 %v3441, %v3430
    %v3443 = vrot.slane %v3442, 4
    %v3444 = vadd.f32 %v3442, %v3443
    %v3445 = vrot.slane %v3444, 2
    %v3446 = vadd.f32 %v3444, %v3445
    %v3447 = vrot.slane %v3446, 1
    %v3448 = vadd.f32 %v3446, %v3447
    %3449 = vrot.lane.b32.xlu0 %v3439, 16
    %v3450 = vpop.permute.xlu0 %3449
    %3451 = vrot.lane.b32.xlu0 %v3448, 16
    %v3452 = vpop.permute.xlu0 %3451
    %v3453 = vsel %vm1286, %v3450, %v3452
    %v3454 = vsel %vm1286, %v3452, %v3450
    %v3455 = vadd.f32 %v3439, %v3454
    %v3456 = vadd.f32 %v3448, %v3453
    %3457 = vrot.lane.b32.xlu0 %v3455, 32
    %v3458 = vpop.permute.xlu0 %3457
    %3459 = vrot.lane.b32.xlu0 %v3456, 32
    %v3460 = vpop.permute.xlu0 %3459
    %v3461 = vsel %vm1295, %v3458, %v3460
    %v3462 = vsel %vm1295, %v3460, %v3458
    %v3463 = vadd.f32 %v3455, %v3462
    %v3464 = vadd.f32 %v3456, %v3461
    %3465 = vrot.lane.b32.xlu0 %v3463, 64
    %v3466 = vpop.permute.xlu0 %3465
    %3467 = vrot.lane.b32.xlu0 %v3464, 64
    %v3468 = vpop.permute.xlu0 %3467
    %v3469 = vsel %vm1304, %v3466, %v3468
    %v3470 = vsel %vm1304, %v3468, %v3466
    %v3471 = vadd.f32 %v3463, %v3470
    %v3472 = vadd.f32 %v3464, %v3469
    %v3473 = vadd.f32 %v3471, %v3472
    %v3474 = vmul.f32 %v3473, 0.001953125
    %v3475 = vlaneseq
    %v3476 = vshrl.u32 %v3475, 7
    %v3477 = vsub.s32 0, %v3476
    %v3478 = vrot.slane %v3474, %v3477
    %v3479 = vsub.f32 %v3423, %v3478
    %v3480 = vsub.f32 %v3424, %v3478
    %v3481 = vsub.f32 %v3425, %v3478
    %v3482 = vsub.f32 %v3426, %v3478
    %v3483 = vsub.f32 %v3427, %v3478
    %v3484 = vsub.f32 %v3428, %v3478
    %v3485 = vsub.f32 %v3429, %v3478
    %v3486 = vsub.f32 %v3430, %v3478
    %v3487 = vmul.f32 %v3479, %v3479
    %v3488 = vmul.f32 %v3480, %v3480
    %v3489 = vmul.f32 %v3481, %v3481
    %v3490 = vmul.f32 %v3482, %v3482
    %v3491 = vmul.f32 %v3483, %v3483
    %v3492 = vmul.f32 %v3484, %v3484
    %v3493 = vmul.f32 %v3485, %v3485
    %v3494 = vmul.f32 %v3486, %v3486
    %v3495 = vadd.f32 %v3487, %v3489
    %v3496 = vadd.f32 %v3495, %v3491
    %v3497 = vadd.f32 %v3496, %v3493
    %v3498 = vrot.slane %v3497, 4
    %v3499 = vadd.f32 %v3497, %v3498
    %v3500 = vrot.slane %v3499, 2
    %v3501 = vadd.f32 %v3499, %v3500
    %v3502 = vrot.slane %v3501, 1
    %v3503 = vadd.f32 %v3501, %v3502
    %v3504 = vadd.f32 %v3488, %v3490
    %v3505 = vadd.f32 %v3504, %v3492
    %v3506 = vadd.f32 %v3505, %v3494
    %v3507 = vrot.slane %v3506, 4
    %v3508 = vadd.f32 %v3506, %v3507
    %v3509 = vrot.slane %v3508, 2
    %v3510 = vadd.f32 %v3508, %v3509
    %v3511 = vrot.slane %v3510, 1
    %v3512 = vadd.f32 %v3510, %v3511
    %3513 = vrot.lane.b32.xlu0 %v3503, 16
    %v3514 = vpop.permute.xlu0 %3513
    %3515 = vrot.lane.b32.xlu0 %v3512, 16
    %v3516 = vpop.permute.xlu0 %3515
    %v3517 = vsel %vm1286, %v3514, %v3516
    %v3518 = vsel %vm1286, %v3516, %v3514
    %v3519 = vadd.f32 %v3503, %v3518
    %v3520 = vadd.f32 %v3512, %v3517
    %3521 = vrot.lane.b32.xlu0 %v3519, 32
    %v3522 = vpop.permute.xlu0 %3521
    %3523 = vrot.lane.b32.xlu0 %v3520, 32
    %v3524 = vpop.permute.xlu0 %3523
    %v3525 = vsel %vm1295, %v3522, %v3524
    %v3526 = vsel %vm1295, %v3524, %v3522
    %v3527 = vadd.f32 %v3519, %v3526
    %v3528 = vadd.f32 %v3520, %v3525
    %3529 = vrot.lane.b32.xlu0 %v3527, 64
    %v3530 = vpop.permute.xlu0 %3529
    %3531 = vrot.lane.b32.xlu0 %v3528, 64
    %v3532 = vpop.permute.xlu0 %3531
    %v3533 = vsel %vm1304, %v3530, %v3532
    %v3534 = vsel %vm1304, %v3532, %v3530
    %v3535 = vadd.f32 %v3527, %v3534
    %v3536 = vadd.f32 %v3528, %v3533
    %v3537 = vadd.f32 %v3535, %v3536
    %v3538 = vmul.f32 %v3537, 0.001953125
    %v3539 = vadd.f32 %v3538, 1e-05
    %v3540 = vrsqrt.pop %v3539
    %v3541 = vlaneseq
    %v3542 = vshrl.u32 %v3541, 7
    %v3543 = vsub.s32 0, %v3542
    %v3544 = vrot.slane %v3540, %v3543
    %v3545 = vmul.f32 %v3479, %v3544
    %v3546 = vmul.f32 %v3480, %v3544
    %v3547 = vmul.f32 %v3481, %v3544
    %v3548 = vmul.f32 %v3482, %v3544
    %v3549 = vmul.f32 %v3483, %v3544
    %v3550 = vmul.f32 %v3484, %v3544
    %v3551 = vmul.f32 %v3485, %v3544
    %v3552 = vmul.f32 %v3486, %v3544
    %v3553 = vld [vmem:[%s2] sm:$0xff]
    %v3554 = vld [vmem:[%s2 + $0x8] sm:$0xff]
    %v3555 = vld [vmem:[%s2 + $0x10] sm:$0xff]
    %v3556 = vld [vmem:[%s2 + $0x18] sm:$0xff]
    %v3557 = vld [vmem:[%s2 + $0x20] sm:$0xff]
    %v3558 = vld [vmem:[%s2 + $0x28] sm:$0xff]
    %v3559 = vld [vmem:[%s2 + $0x30] sm:$0xff]
    %v3560 = vld [vmem:[%s2 + $0x38] sm:$0xff]
    %v3561 = vld [vmem:[%s2 + $0x40] sm:$0xff]
    %v3562 = vld [vmem:[%s2 + $0x48] sm:$0xff]
    %v3563 = vld [vmem:[%s2 + $0x50] sm:$0xff]
    %v3564 = vld [vmem:[%s2 + $0x58] sm:$0xff]
    %v3565 = vld [vmem:[%s2 + $0x60] sm:$0xff]
    %v3566 = vld [vmem:[%s2 + $0x68] sm:$0xff]
    %v3567 = vld [vmem:[%s2 + $0x70] sm:$0xff]
    %v3568 = vld [vmem:[%s2 + $0x78] sm:$0xff]
    %v3569 = vld [vmem:[%s2 + $0x80] sm:$0xff]
    %v3570 = vld [vmem:[%s2 + $0x88] sm:$0xff]
    %v3571 = vld [vmem:[%s2 + $0x90] sm:$0xff]
    %v3572 = vld [vmem:[%s2 + $0x98] sm:$0xff]
    %v3573 = vld [vmem:[%s2 + $0xa0] sm:$0xff]
    %v3574 = vld [vmem:[%s2 + $0xa8] sm:$0xff]
    %v3575 = vld [vmem:[%s2 + $0xb0] sm:$0xff]
    %v3576 = vld [vmem:[%s2 + $0xb8] sm:$0xff]
    %v3577 = vld [vmem:[%s2 + $0xc0] sm:$0xff]
    %v3578 = vld [vmem:[%s2 + $0xc8] sm:$0xff]
    %v3579 = vld [vmem:[%s2 + $0xd0] sm:$0xff]
    %v3580 = vld [vmem:[%s2 + $0xd8] sm:$0xff]
    %v3581 = vld [vmem:[%s2 + $0xe0] sm:$0xff]
    %v3582 = vld [vmem:[%s2 + $0xe8] sm:$0xff]
    %v3583 = vld [vmem:[%s2 + $0xf0] sm:$0xff]
    %v3584 = vld [vmem:[%s2 + $0xf8] sm:$0xff]
    %3585 = vmatprep.subr.mxu0 0.0
    %3586 = vmatpush1.msra.mxu0 %v3553
    %3587 = vmatprep.subr.mxu0 0.0
    %3588 = vmatpush1.msra.mxu0 %v3554
    %3589 = vmatprep.subr.mxu0 0.0
    %3590 = vmatpush1.msra.mxu0 %v3555
    %3591 = vmatprep.subr.mxu0 0.0
    %3592 = vmatpush1.msra.mxu0 %v3556
    %3593 = vmatprep.subr.mxu0 0.0
    %3594 = vmatpush1.msra.mxu0 %v3557
    %3595 = vmatprep.subr.mxu0 0.0
    %3596 = vmatpush1.msra.mxu0 %v3558
    %3597 = vmatprep.subr.mxu0 0.0
    %3598 = vmatpush1.msra.mxu0 %v3559
    %3599 = vmatprep.subr.mxu0 0.0
    %3600 = vmatpush1.msra.mxu0 %v3560
    %3601 = vmatprep.subr.mxu0 0.0
    %3602 = vmatpush1.msra.mxu0 %v3561
    %3603 = vmatprep.subr.mxu0 0.0
    %3604 = vmatpush1.msra.mxu0 %v3562
    %3605 = vmatprep.subr.mxu0 0.0
    %3606 = vmatpush1.msra.mxu0 %v3563
    %3607 = vmatprep.subr.mxu0 0.0
    %3608 = vmatpush1.msra.mxu0 %v3564
    %3609 = vmatprep.subr.mxu0 0.0
    %3610 = vmatpush1.msra.mxu0 %v3565
    %3611 = vmatprep.subr.mxu0 0.0
    %3612 = vmatpush1.msra.mxu0 %v3566
    %3613 = vmatprep.subr.mxu0 0.0
    %3614 = vmatpush1.msra.mxu0 %v3567
    %3615 = vmatprep.subr.mxu0 0.0
    %3616 = vmatpush1.msra.mxu0 %v3568
    %3617 = vmatprep.subr.mxu0 0.0
    %3618 = vmatpush1.msra.mxu0 %v3569
    %3619 = vmatprep.subr.mxu0 0.0
    %3620 = vmatpush1.msra.mxu0 %v3570
    %3621 = vmatprep.subr.mxu0 0.0
    %3622 = vmatpush1.msra.mxu0 %v3571
    %3623 = vmatprep.subr.mxu0 0.0
    %3624 = vmatpush1.msra.mxu0 %v3572
    %3625 = vmatprep.subr.mxu0 0.0
    %3626 = vmatpush1.msra.mxu0 %v3573
    %3627 = vmatprep.subr.mxu0 0.0
    %3628 = vmatpush1.msra.mxu0 %v3574
    %3629 = vmatprep.subr.mxu0 0.0
    %3630 = vmatpush1.msra.mxu0 %v3575
    %3631 = vmatprep.subr.mxu0 0.0
    %3632 = vmatpush1.msra.mxu0 %v3576
    %3633 = vmatprep.subr.mxu0 0.0
    %3634 = vmatpush1.msra.mxu0 %v3577
    %3635 = vmatprep.subr.mxu0 0.0
    %3636 = vmatpush1.msra.mxu0 %v3578
    %3637 = vmatprep.subr.mxu0 0.0
    %3638 = vmatpush1.msra.mxu0 %v3579
    %3639 = vmatprep.subr.mxu0 0.0
    %3640 = vmatpush1.msra.mxu0 %v3580
    %3641 = vmatprep.subr.mxu0 0.0
    %3642 = vmatpush1.msra.mxu0 %v3581
    %3643 = vmatprep.subr.mxu0 0.0
    %3644 = vmatpush1.msra.mxu0 %v3582
    %3645 = vmatprep.subr.mxu0 0.0
    %3646 = vmatpush1.msra.mxu0 %v3583
    %3647 = vmatprep.subr.mxu0 0.0
    %3648 = vmatpush1.msra.mxu0 %v3584
    %3649 = vmatprep.mubr.f32.mxu0 %v3546
    %3650 = vmatmul.mubr.f32.gmra.mrb[0].mxu0 %v3545
    %v3651 = vpop.f32.mrb[0].mxu0
    %v3652 = vadd.f32 0.0, %v3651
    %v3653 = vpop.f32.mrb[0].mxu0
    %3654 = vmatprep.mubr.f32.mxu0 %v3548
    %3655 = vmatmul.mubr.f32.gmra.mrb[0].mxu0 %v3547
    %v3656 = vpop.f32.mrb[0].mxu0
    %v3657 = vadd.f32 0.0, %v3656
    %v3658 = vpop.f32.mrb[0].mxu0
    %3659 = vmatprep.mubr.f32.mxu0 %v3550
    %3660 = vmatmul.mubr.f32.gmra.mrb[0].mxu0 %v3549
    %v3661 = vpop.f32.mrb[0].mxu0
    %v3662 = vadd.f32 0.0, %v3661
    %v3663 = vpop.f32.mrb[0].mxu0
    %3664 = vmatprep.mubr.f32.mxu0 %v3552
    %3665 = vmatmul.mubr.f32.gmra.mrb[0].mxu0 %v3551
    %v3666 = vpop.f32.mrb[0].mxu0
    %v3667 = vadd.f32 0.0, %v3666
    %v3668 = vpop.f32.mrb[0].mxu0
    %3669 = vdwg.mxu0
    %vm3670 = vcmask 48128
    %v3671 = vsel %vm3670, %v3652, 0.0
    %v3672 = vsel %vm3670, %v3657, 0.0
    %v3673 = vadd.f32 %v3671, %v3672
    %v3674 = vrot.slane %v3673, 4
    %v3675 = vadd.f32 %v3673, %v3674
    %v3676 = vrot.slane %v3675, 2
    %v3677 = vadd.f32 %v3675, %v3676
    %v3678 = vrot.slane %v3677, 1
    %v3679 = vadd.f32 %v3677, %v3678
    %v3680 = vsel %vm3670, %v3662, 0.0
    %v3681 = vsel %vm3670, %v3667, 0.0
    %v3682 = vadd.f32 %v3680, %v3681
    %v3683 = vrot.slane %v3682, 4
    %v3684 = vadd.f32 %v3682, %v3683
    %v3685 = vrot.slane %v3684, 2
    %v3686 = vadd.f32 %v3684, %v3685
    %v3687 = vrot.slane %v3686, 1
    %v3688 = vadd.f32 %v3686, %v3687
    %v3689 = vmul.f32 %v3679, 0.00390625
    %v3690 = vmul.f32 %v3688, 0.00390625
    %v3691 = vld [vmem:[#allocation8] sm:$0x1]
    %v3693 = vlaneseq
    %v3694 = vshrl.u32 %v3693, 7
    %v3695 = vsub.s32 0, %v3694
    %v3696 = vrot.slane %v3691, %v3695
    %v3698 = vadd.f32 %v3689, %v3696
    %v3699 = vadd.f32 %v3690, %v3696
    %v3702 = vrot.slane %v3699, 7
    %vm3703 = vcmask 1041409
    %v3704 = vsel %vm3703, %v3702, %v3698
    %vm3706 = vcmask 41984
    %3707 = vst.msk [vmem:[#allocation9] sm:$0x3] %vm3706, %v3704
    // Predicated region
    $region30: #{tpu_custom_call.1} parent=1 // pred_check
      _
    $region31: #{tpu_custom_call.1} parent=1 // pred_check_branch
      %3709 = sbr.rel (0) target = $region33
    $region32: #{tpu_custom_call.1} parent=1 // pred_region
      %s3711 = ssub.s32 32, 32
      %3712 = vsyncadd [#allocation5], %s3711
      %s3714 = sshll.u32 [#allocation9], 4
      %s3715 = int_to_ptr.vmem [resolvable:$true] %s3714
      %3717 = dma.vmem_to_hbm [thread:$0]  %s3715, 32, %s4, [#allocation5]
    $region33: #{tpu_custom_call.1} parent=1 // pred_fallthru
      _
    // Predicated region
    $region34: #{tpu_custom_call.1} parent=1 // pred_check
      _
    $region35: #{tpu_custom_call.1} parent=1 // pred_check_branch
      %3719 = sbr.rel (0) target = $region37
    $region36: #{tpu_custom_call.1} parent=1 // pred_region
      %3720 = dma.done [#allocation5], 32
    $region37: #{tpu_custom_call.1} parent=1 // pred_fallthru
      _
    %3721 = vsyncpa [#allocation4], 1
    %3722 = vsyncpa [#allocation7], 1
    %3723 = vsyncpa [#allocation5], 1

</llo_original>
